<compile_context>
chip_gen: v6e
topology: v6e:2x2x1
jax: 0.10.0
libtpu: 0.0.40
codegen_flags: <defaults>
</compile_context>

<pallas_src>
import functools

import jax
import jax.numpy as jnp
from jax import lax
from jax.experimental import pallas as pl
from jax.experimental.pallas import tpu as pltpu

HIDDEN = 256            # LSTM hidden size
LSTM_INPUT = 300        # declared LSTM input size
LSTM_K_PAD = 384        # zero-padded LSTM layer-0 contraction dim (3 * 128)
LSTM_LAYERS = 3
NUM_CLASSES = 21
CONV1_K_PAD = 128       # 3*5*5 = 75  -> 128
CONV2_K_PAD = 256       # 8*5*5 = 200 -> 256

_VMEM = pl.BlockSpec(memory_space=pltpu.MemorySpace.VMEM)   # whole-array VMEM blocks (no grid)


# ----------------------------- Pallas kernels ------------------------------

def _conv1_pool_relu_kernel(p_ref, w_ref, b_ref, o_ref):
    """relu(max_pool2d(conv1(x), 2)).

    p_ref : (4, rows, K1pad) bf16 phase-major im2col patches (phase = pooling offset)
    relu(max(phase taps) + bias) == relu(maxpool(conv)) since the bias is phase-independent.
    """
    w = w_ref[...]                                              # (K1pad, 8) bf16, VMEM-resident
    acc = jnp.dot(p_ref[0], w, preferred_element_type=jnp.float32)
    for a in range(1, 4):
        acc = jnp.maximum(acc, jnp.dot(p_ref[a], w, preferred_element_type=jnp.float32))
    o_ref[...] = jnp.maximum(acc + b_ref[...], 0.0).astype(o_ref.dtype)


def _fused_tail_kernel(*refs, sp, hidden, n_layers):
    """conv2+pool+ReLU -> view(-1,256) -> cnn.fc1+ReLU+cnn.fc2 -> LSTM(3) -> fc1 -> log_softmax.

    refs layout (all VMEM-resident for the whole call):
      p2 (4, K2pad, B*sp) bf16, conv2_w (24, K2pad) bf16, conv2_b (24, 1) f32,
      cnn_fc1_w (256,128) bf16, cnn_fc1_b, cnn_fc2_w (128,NC) bf16, cnn_fc2_b,
      [wih_l (K,1024) bf16, b_l (1,1024) f32] * n_layers,
      head_w (256,128) bf16, head_b (1,128) f32, out (1,128) f32.
    """
    p2_ref, w2_ref, b2_ref, f1w_ref, f1b_ref, f2w_ref, f2b_ref = refs[:7]
    lstm_refs = [(refs[7 + 2 * l], refs[8 + 2 * l]) for l in range(n_layers)]
    hw_ref, hb_ref, o_ref = refs[7 + 2 * n_layers:]

    # ---- conv2 as 4 pooling-phase matmuls (weight-stationary, transposed orientation) ----
    # yt[c, col] with col = b*sp + spatial; relu(max(taps) + bias) == relu(maxpool(conv)).
    w2 = w2_ref[...]                                            # (Cout2, K2pad) bf16
    acc = jnp.dot(w2, p2_ref[0], preferred_element_type=jnp.float32)
    for a in range(1, 4):
        acc = jnp.maximum(acc, jnp.dot(w2, p2_ref[a], preferred_element_type=jnp.float32))
    yt = jnp.maximum(acc + b2_ref[...], 0.0)                    # (Cout2, B*sp) f32

    cout2, cols = yt.shape
    batch = cols // sp
    n_rows = (batch * cout2 * sp) // 256

    # ---- x.view(-1, 256): NCHW row-major flatten rebuilt with static slices + concat ----
    # flat[b*cout2*sp + c*sp + s] = yt[c, b*sp + s]; each 16-wide segment stays in one (b, c).
    rows = []
    for r in range(n_rows):
        segs = []
        for j in range(256 // sp):
            f0 = r * 256 + j * sp
            b_i = f0 // (cout2 * sp)
            c_i = (f0 % (cout2 * sp)) // sp
            segs.append(yt[c_i:c_i + 1, b_i * sp:(b_i + 1) * sp])
        rows.append(jnp.concatenate(segs, axis=1))
    v = jnp.concatenate(rows, axis=0) if n_rows > 1 else rows[0]        # (n_rows, 256)

    # ---- cnn.fc1 + ReLU (+ eval-mode dropout identity) + cnn.fc2 ----
    h = jnp.maximum(jnp.dot(v.astype(jnp.bfloat16), f1w_ref[...],
                            preferred_element_type=jnp.float32) + f1b_ref[...], 0.0)
    c_out = jnp.dot(h.astype(jnp.bfloat16), f2w_ref[...],
                    preferred_element_type=jnp.float32) + f2b_ref[...]  # (n_rows, NC)

    # ---- LSTM input: flatten(c_out), zero-pad to the padded 384-wide input row (seq == 1) ----
    k0 = lstm_refs[0][0].shape[0]
    n_feat = n_rows * c_out.shape[1]
    xs = jnp.concatenate([c_out[r:r + 1, :] for r in range(n_rows)]
                         + [jnp.zeros((1, k0 - n_feat), jnp.float32)], axis=1)   # (1, k0)

    # ---- 3-layer LSTM, seq == 1, h0 = c0 = 0 (PyTorch gate order i, f, g, o) ----
    # The recurrent h @ Whh matmul and the f_gate * c_prev term are exactly zero for the
    # single timestep, so they are skipped (bit-identical) and Whh is not even loaded.
    for wih_ref, b_ref in lstm_refs:
        g = jnp.dot(xs.astype(jnp.bfloat16), wih_ref[...],
                    preferred_element_type=jnp.float32) + b_ref[...]    # (1, 4H)
        i_g = jax.nn.sigmoid(g[:, 0:hidden])
        g_g = jnp.tanh(g[:, 2 * hidden:3 * hidden])
        o_g = jax.nn.sigmoid(g[:, 3 * hidden:4 * hidden])
        c = i_g * g_g
        xs = o_g * jnp.tanh(c)                                          # h_t, next layer input

    # ---- Combine.fc1 + log_softmax(dim=1) ----
    z = jnp.dot(xs.astype(jnp.bfloat16), hw_ref[...],
                preferred_element_type=jnp.float32) + hb_ref[...]       # (1, 128)
    m = jnp.max(z, axis=-1, keepdims=True)
    e = z - m
    o_ref[...] = e - jnp.log(jnp.sum(jnp.exp(e), axis=-1, keepdims=True))


# ------------------------------ wrappers ------------------------------------

def conv1_pool_relu(p_phases, w_t, b):
    rows = p_phases.shape[1]
    cout = w_t.shape[1]
    return pl.pallas_call(
        _conv1_pool_relu_kernel,
        out_shape=jax.ShapeDtypeStruct((rows, cout), jnp.bfloat16),
        in_specs=[_VMEM, _VMEM, _VMEM],
        out_specs=_VMEM,
    )(p_phases, w_t, b)


def fused_tail(p2_phases, params, *, sp):
    cout2 = params["conv2_w"].shape[0]
    batch = p2_phases.shape[2] // sp
    n_flat = batch * cout2 * sp
    assert n_flat % 256 == 0 and 256 % sp == 0, "x.view(-1, 256) needs compatible shapes"
    n_rows = n_flat // 256
    n_feat = n_rows * params["cnn_fc2_w_t"].shape[1]
    if n_feat > LSTM_INPUT:
        # TODO(synk): multi-timestep (seq > 1) LSTM-input packing not implemented; the reference
        # reshape is shape-inconsistent anyway and this path never arises for the module shapes.
        raise NotImplementedError("flattened CNN output exceeds LSTM input_size")

    args = [p2_phases, params["conv2_w"], params["conv2_b"],
            params["cnn_fc1_w_t"], params["cnn_fc1_b"],
            params["cnn_fc2_w_t"], params["cnn_fc2_b"]]
    for l in range(LSTM_LAYERS):
        # Whh_l is mathematically inert here (seq == 1, h0 = 0) -> not passed / not DMA'd.
        args += [params[f"lstm_wih_{l}_t"], params[f"lstm_b_{l}"]]
    args += [params["fc1_w_t"], params["fc1_b"]]

    kernel = functools.partial(_fused_tail_kernel, sp=sp, hidden=HIDDEN, n_layers=LSTM_LAYERS)
    return pl.pallas_call(
        kernel,
        out_shape=jax.ShapeDtypeStruct((1, params["fc1_w_t"].shape[1]), jnp.float32),
        in_specs=[_VMEM] * len(args),
        out_specs=_VMEM,
    )(*args)


# ------------------------------ parameters ----------------------------------

def init_params(key, num_classes=NUM_CLASSES):
    ks = jax.random.split(key, 24)
    it = iter(ks)

    def u(shape, fan_in):
        bound = 1.0 / float(fan_in) ** 0.5
        return jax.random.uniform(next(it), shape, jnp.float32, -bound, bound)

    p = {}
    # conv1: PyTorch (8,3,5,5) -> (75, 8) kernel-ready, K zero-padded 75 -> 128, bf16.
    w1 = u((8, 3, 5, 5), 3 * 25).reshape(8, -1).T
    p["conv1_w_t"] = jnp.pad(w1, ((0, CONV1_K_PAD - w1.shape[0]), (0, 0))).astype(jnp.bfloat16)
    p["conv1_b"] = u((1, 8), 3 * 25)
    # conv2: PyTorch (24,8,5,5) -> (24, 200) (Cout x K orientation), K zero-padded 200 -> 256.
    w2 = u((24, 8, 5, 5), 8 * 25).reshape(24, -1)
    p["conv2_w"] = jnp.pad(w2, ((0, 0), (0, CONV2_K_PAD - w2.shape[1]))).astype(jnp.bfloat16)
    p["conv2_b"] = u((24, 1), 8 * 25)
    p["cnn_fc1_w_t"] = u((256, 128), 256).astype(jnp.bfloat16)
    p["cnn_fc1_b"] = u((1, 128), 256)
    p["cnn_fc2_w_t"] = u((128, num_classes), 128).astype(jnp.bfloat16)
    p["cnn_fc2_b"] = u((1, num_classes), 128)
    # nn.LSTM(300, 256, num_layers=3, batch_first=True): weights transposed to (in, 4H) bf16,
    # layer-0 contraction dim zero-padded 300 -> 384, bias = b_ih + b_hh folded once.
    # Whh_l kept for completeness but unused at seq == 1 with zero initial state (exact skip).
    for l in range(LSTM_LAYERS):
        in_l = LSTM_INPUT if l == 0 else HIDDEN
        wih = u((in_l, 4 * HIDDEN), HIDDEN)
        if l == 0:
            wih = jnp.pad(wih, ((0, LSTM_K_PAD - LSTM_INPUT), (0, 0)))
        p[f"lstm_wih_{l}_t"] = wih.astype(jnp.bfloat16)
        p[f"lstm_whh_{l}_t"] = u((HIDDEN, 4 * HIDDEN), HIDDEN).astype(jnp.bfloat16)
        p[f"lstm_b_{l}"] = u((1, 4 * HIDDEN), HIDDEN) + u((1, 4 * HIDDEN), HIDDEN)
    # Combine head: fc1 (fc2 is declared in __init__ but unused in forward).
    p["fc1_w_t"] = u((256, 128), 256).astype(jnp.bfloat16)
    p["fc1_b"] = u((1, 128), 256)
    return p


# ------------------------------ forward pass --------------------------------

def combine_forward(params, x):
    B = x.shape[0]

    # ---- conv1 im2col (XLA), rearranged once to phase-major: (4, B*Hp*Wp, K1pad) bf16 ----
    # feature order of the patches is (cin, kh, kw), matching PyTorch's weight.reshape(Cout,-1).
    p1 = lax.conv_general_dilated_patches(
        x, filter_shape=(5, 5), window_strides=(1, 1), padding="VALID",
        dimension_numbers=("NCHW", "OIHW", "NHWC"))                 # (B, 24, 24, 75)
    _, Ho, Wo, K1 = p1.shape
    Hp, Wp = Ho // 2, Wo // 2
    p1 = (p1.reshape(B, Hp, 2, Wp, 2, K1)
            .transpose(2, 4, 0, 1, 3, 5)
            .reshape(4, B * Hp * Wp, K1))
    p1 = jnp.pad(p1, ((0, 0), (0, 0), (0, CONV1_K_PAD - K1))).astype(jnp.bfloat16)

    y1 = conv1_pool_relu(p1, params["conv1_w_t"], params["conv1_b"])    # (B*Hp*Wp, 8) bf16
    y1 = y1.reshape(B, Hp, Wp, 8)                                       # NHWC

    # ---- conv2 im2col (XLA), phase-major and K-major (transposed): (4, K2pad, B*sp) bf16 ----
    p2 = lax.conv_general_dilated_patches(
        y1, filter_shape=(5, 5), window_strides=(1, 1), padding="VALID",
        dimension_numbers=("NHWC", "HWIO", "NHWC"))                 # (B, 8, 8, 200)
    _, Ho2, Wo2, K2 = p2.shape
    Hp2, Wp2 = Ho2 // 2, Wo2 // 2
    p2 = (p2.reshape(B, Hp2, 2, Wp2, 2, K2)
            .transpose(2, 4, 5, 0, 1, 3)
            .reshape(4, K2, B * Hp2 * Wp2))
    p2 = jnp.pad(p2, ((0, 0), (0, CONV2_K_PAD - K2), (0, 0)))       # already bf16

    # ---- everything else (conv2 .. log_softmax) fused in one kernel ----
    # TODO(synk): the reference `c_out.view(1, batch_size, C*H*W)` is shape-inconsistent for any
    # valid CNN input (and clashes with LSTM input_size=300); as before we feed flatten(c_out)
    # zero-padded to 300 (contraction padded to 384 with zero Wih rows) as a single timestep.
    return fused_tail(p2, params, sp=Hp2 * Wp2)                     # (1, 128) log-probs


if __name__ == "__main__":
    key = jax.random.PRNGKey(0)
    pkey, xkey = jax.random.split(key)
    params = init_params(pkey)
    # Input (NCHW): batch=2, C=3, H=W=28 so that the CNN's view(-1, 256) is valid.
    x = jax.random.normal(xkey, (2, 3, 28, 28), jnp.float32)

    out = jax.jit(combine_forward)(params, x)
    out = jax.block_until_ready(out)

    assert out.shape == (1, 128)
    assert bool(jnp.all(jnp.isfinite(out)))
    # log_softmax rows must exponentiate-sum to 1
    assert bool(jnp.allclose(jnp.sum(jnp.exp(out), axis=1), 1.0, atol=1e-3))
    print("KERNEL_OK")
</pallas_src>

<mosaic_0001>
module attributes {stable_mosaic.version = 11 : i64} {
  func.func @_conv1_pool_relu_kernel(%arg0: memref<4x288x128xbf16, #tpu.memory_space<vmem>>, %arg1: memref<128x8xbf16, #tpu.memory_space<vmem>>, %arg2: memref<1x8xf32, #tpu.memory_space<vmem>>, %arg3: memref<288x8xbf16, #tpu.memory_space<vmem>>) attributes {dimension_semantics = [], scalar_prefetch = 0 : i64, scratch_operands = 0 : i64, tpu.core_type = #tpu.core_type<tc>} {
    %c0 = arith.constant 0 : index
    %c0_0 = arith.constant 0 : index
    %0 = vector.load %arg1[%c0, %c0_0] : memref<128x8xbf16, #tpu.memory_space<vmem>>, vector<128x8xbf16>
    %c0_1 = arith.constant 0 : index
    %c0_2 = arith.constant 0 : index
    %c0_3 = arith.constant 0 : index
    %1 = vector.load %arg0[%c0_1, %c0_2, %c0_3] : memref<4x288x128xbf16, #tpu.memory_space<vmem>>, vector<1x288x128xbf16>
    %2 = vector.shape_cast %1 : vector<1x288x128xbf16> to vector<288x128xbf16>
    %cst = arith.constant dense<0.000000e+00> : vector<288x8xf32>
    %3 = tpu.matmul %2, %0, %cst {dimension_numbers = #tpu.dot_dimension_numbers<[1], [0], [0], [1], [0, 0, 1, 1], [], []>} : vector<288x128xbf16>, vector<128x8xbf16>, vector<288x8xf32> -> vector<288x8xf32>
    %c1 = arith.constant 1 : index
    %c0_4 = arith.constant 0 : index
    %c0_5 = arith.constant 0 : index
    %4 = vector.load %arg0[%c1, %c0_4, %c0_5] : memref<4x288x128xbf16, #tpu.memory_space<vmem>>, vector<1x288x128xbf16>
    %5 = vector.shape_cast %4 : vector<1x288x128xbf16> to vector<288x128xbf16>
    %cst_6 = arith.constant dense<0.000000e+00> : vector<288x8xf32>
    %6 = tpu.matmul %5, %0, %cst_6 {dimension_numbers = #tpu.dot_dimension_numbers<[1], [0], [0], [1], [0, 0, 1, 1], [], []>} : vector<288x128xbf16>, vector<128x8xbf16>, vector<288x8xf32> -> vector<288x8xf32>
    %7 = arith.maximumf %3, %6 : vector<288x8xf32>
    %c2 = arith.constant 2 : index
    %c0_7 = arith.constant 0 : index
    %c0_8 = arith.constant 0 : index
    %8 = vector.load %arg0[%c2, %c0_7, %c0_8] : memref<4x288x128xbf16, #tpu.memory_space<vmem>>, vector<1x288x128xbf16>
    %9 = vector.shape_cast %8 : vector<1x288x128xbf16> to vector<288x128xbf16>
    %cst_9 = arith.constant dense<0.000000e+00> : vector<288x8xf32>
    %10 = tpu.matmul %9, %0, %cst_9 {dimension_numbers = #tpu.dot_dimension_numbers<[1], [0], [0], [1], [0, 0, 1, 1], [], []>} : vector<288x128xbf16>, vector<128x8xbf16>, vector<288x8xf32> -> vector<288x8xf32>
    %11 = arith.maximumf %7, %10 : vector<288x8xf32>
    %c3 = arith.constant 3 : index
    %c0_10 = arith.constant 0 : index
    %c0_11 = arith.constant 0 : index
    %12 = vector.load %arg0[%c3, %c0_10, %c0_11] : memref<4x288x128xbf16, #tpu.memory_space<vmem>>, vector<1x288x128xbf16>
    %13 = vector.shape_cast %12 : vector<1x288x128xbf16> to vector<288x128xbf16>
    %cst_12 = arith.constant dense<0.000000e+00> : vector<288x8xf32>
    %14 = tpu.matmul %13, %0, %cst_12 {dimension_numbers = #tpu.dot_dimension_numbers<[1], [0], [0], [1], [0, 0, 1, 1], [], []>} : vector<288x128xbf16>, vector<128x8xbf16>, vector<288x8xf32> -> vector<288x8xf32>
    %15 = arith.maximumf %11, %14 : vector<288x8xf32>
    %c0_13 = arith.constant 0 : index
    %c0_14 = arith.constant 0 : index
    %16 = vector.load %arg2[%c0_13, %c0_14] : memref<1x8xf32, #tpu.memory_space<vmem>>, vector<1x8xf32>
    %17 = vector.broadcast %16 : vector<1x8xf32> to vector<288x8xf32>
    %18 = arith.addf %15, %17 : vector<288x8xf32>
    %cst_15 = arith.constant 0.000000e+00 : f32
    %19 = vector.broadcast %cst_15 : f32 to vector<288x8xf32>
    %20 = arith.maximumf %18, %19 : vector<288x8xf32>
    %21 = arith.truncf %20 : vector<288x8xf32> to vector<288x8xbf16>
    %c0_16 = arith.constant 0 : index
    %c0_17 = arith.constant 0 : index
    %22 = vector.load %arg3[%c0_16, %c0_17] : memref<288x8xbf16, #tpu.memory_space<vmem>>, vector<288x8xbf16>
    tpu.vector_store %arg3[%c0_16, %c0_17], %21 {strides = array<i32>} : memref<288x8xbf16, #tpu.memory_space<vmem>>, vector<288x8xbf16>,
    return
  }
}

module attributes {stable_mosaic.version = 11 : i64} {
  func.func @_fused_tail_kernel(%arg0: memref<4x256x32xbf16, #tpu.memory_space<vmem>>, %arg1: memref<24x256xbf16, #tpu.memory_space<vmem>>, %arg2: memref<24x1xf32, #tpu.memory_space<vmem>>, %arg3: memref<256x128xbf16, #tpu.memory_space<vmem>>, %arg4: memref<1x128xf32, #tpu.memory_space<vmem>>, %arg5: memref<128x21xbf16, #tpu.memory_space<vmem>>, %arg6: memref<1x21xf32, #tpu.memory_space<vmem>>, %arg7: memref<384x1024xbf16, #tpu.memory_space<vmem>>, %arg8: memref<1x1024xf32, #tpu.memory_space<vmem>>, %arg9: memref<256x1024xbf16, #tpu.memory_space<vmem>>, %arg10: memref<1x1024xf32, #tpu.memory_space<vmem>>, %arg11: memref<256x1024xbf16, #tpu.memory_space<vmem>>, %arg12: memref<1x1024xf32, #tpu.memory_space<vmem>>, %arg13: memref<256x128xbf16, #tpu.memory_space<vmem>>, %arg14: memref<1x128xf32, #tpu.memory_space<vmem>>, %arg15: memref<1x128xf32, #tpu.memory_space<vmem>>) attributes {dimension_semantics = [], scalar_prefetch = 0 : i64, scratch_operands = 0 : i64, tpu.core_type = #tpu.core_type<tc>} {
    %c0 = arith.constant 0 : index
    %c0_0 = arith.constant 0 : index
    %0 = vector.load %arg1[%c0, %c0_0] : memref<24x256xbf16, #tpu.memory_space<vmem>>, vector<24x256xbf16>
    %c0_1 = arith.constant 0 : index
    %c0_2 = arith.constant 0 : index
    %c0_3 = arith.constant 0 : index
    %1 = vector.load %arg0[%c0_1, %c0_2, %c0_3] : memref<4x256x32xbf16, #tpu.memory_space<vmem>>, vector<1x256x32xbf16>
    %2 = vector.shape_cast %1 : vector<1x256x32xbf16> to vector<256x32xbf16>
    %cst = arith.constant dense<0.000000e+00> : vector<24x32xf32>
    %3 = tpu.matmul %0, %2, %cst {dimension_numbers = #tpu.dot_dimension_numbers<[1], [0], [0], [1], [0, 0, 1, 1], [], []>} : vector<24x256xbf16>, vector<256x32xbf16>, vector<24x32xf32> -> vector<24x32xf32>
    %c1 = arith.constant 1 : index
    %c0_4 = arith.constant 0 : index
    %c0_5 = arith.constant 0 : index
    %4 = vector.load %arg0[%c1, %c0_4, %c0_5] : memref<4x256x32xbf16, #tpu.memory_space<vmem>>, vector<1x256x32xbf16>
    %5 = vector.shape_cast %4 : vector<1x256x32xbf16> to vector<256x32xbf16>
    %cst_6 = arith.constant dense<0.000000e+00> : vector<24x32xf32>
    %6 = tpu.matmul %0, %5, %cst_6 {dimension_numbers = #tpu.dot_dimension_numbers<[1], [0], [0], [1], [0, 0, 1, 1], [], []>} : vector<24x256xbf16>, vector<256x32xbf16>, vector<24x32xf32> -> vector<24x32xf32>
    %7 = arith.maximumf %3, %6 : vector<24x32xf32>
    %c2 = arith.constant 2 : index
    %c0_7 = arith.constant 0 : index
    %c0_8 = arith.constant 0 : index
    %8 = vector.load %arg0[%c2, %c0_7, %c0_8] : memref<4x256x32xbf16, #tpu.memory_space<vmem>>, vector<1x256x32xbf16>
    %9 = vector.shape_cast %8 : vector<1x256x32xbf16> to vector<256x32xbf16>
    %cst_9 = arith.constant dense<0.000000e+00> : vector<24x32xf32>
    %10 = tpu.matmul %0, %9, %cst_9 {dimension_numbers = #tpu.dot_dimension_numbers<[1], [0], [0], [1], [0, 0, 1, 1], [], []>} : vector<24x256xbf16>, vector<256x32xbf16>, vector<24x32xf32> -> vector<24x32xf32>
    %11 = arith.maximumf %7, %10 : vector<24x32xf32>
    %c3 = arith.constant 3 : index
    %c0_10 = arith.constant 0 : index
    %c0_11 = arith.constant 0 : index
    %12 = vector.load %arg0[%c3, %c0_10, %c0_11] : memref<4x256x32xbf16, #tpu.memory_space<vmem>>, vector<1x256x32xbf16>
    %13 = vector.shape_cast %12 : vector<1x256x32xbf16> to vector<256x32xbf16>
    %cst_12 = arith.constant dense<0.000000e+00> : vector<24x32xf32>
    %14 = tpu.matmul %0, %13, %cst_12 {dimension_numbers = #tpu.dot_dimension_numbers<[1], [0], [0], [1], [0, 0, 1, 1], [], []>} : vector<24x256xbf16>, vector<256x32xbf16>, vector<24x32xf32> -> vector<24x32xf32>
    %15 = arith.maximumf %11, %14 : vector<24x32xf32>
    %c0_13 = arith.constant 0 : index
    %c0_14 = arith.constant 0 : index
    %16 = vector.load %arg2[%c0_13, %c0_14] : memref<24x1xf32, #tpu.memory_space<vmem>>, vector<24x1xf32>
    %17 = vector.broadcast %16 : vector<24x1xf32> to vector<24x32xf32>
    %18 = arith.addf %15, %17 : vector<24x32xf32>
    %cst_15 = arith.constant 0.000000e+00 : f32
    %19 = vector.broadcast %cst_15 : f32 to vector<24x32xf32>
    %20 = arith.maximumf %18, %19 : vector<24x32xf32>
    %21 = vector.extract_strided_slice %20 {offsets = [0, 0], sizes = [1, 16], strides = [1, 1]} : vector<24x32xf32> to vector<1x16xf32>
    %22 = vector.extract_strided_slice %20 {offsets = [1, 0], sizes = [1, 16], strides = [1, 1]} : vector<24x32xf32> to vector<1x16xf32>
    %23 = vector.extract_strided_slice %20 {offsets = [2, 0], sizes = [1, 16], strides = [1, 1]} : vector<24x32xf32> to vector<1x16xf32>
    %24 = vector.extract_strided_slice %20 {offsets = [3, 0], sizes = [1, 16], strides = [1, 1]} : vector<24x32xf32> to vector<1x16xf32>
    %25 = vector.extract_strided_slice %20 {offsets = [4, 0], sizes = [1, 16], strides = [1, 1]} : vector<24x32xf32> to vector<1x16xf32>
    %26 = vector.extract_strided_slice %20 {offsets = [5, 0], sizes = [1, 16], strides = [1, 1]} : vector<24x32xf32> to vector<1x16xf32>
    %27 = vector.extract_strided_slice %20 {offsets = [6, 0], sizes = [1, 16], strides = [1, 1]} : vector<24x32xf32> to vector<1x16xf32>
    %28 = vector.extract_strided_slice %20 {offsets = [7, 0], sizes = [1, 16], strides = [1, 1]} : vector<24x32xf32> to vector<1x16xf32>
    %29 = vector.extract_strided_slice %20 {offsets = [8, 0], sizes = [1, 16], strides = [1, 1]} : vector<24x32xf32> to vector<1x16xf32>
    %30 = vector.extract_strided_slice %20 {offsets = [9, 0], sizes = [1, 16], strides = [1, 1]} : vector<24x32xf32> to vector<1x16xf32>
    %31 = vector.extract_strided_slice %20 {offsets = [10, 0], sizes = [1, 16], strides = [1, 1]} : vector<24x32xf32> to vector<1x16xf32>
    %32 = vector.extract_strided_slice %20 {offsets = [11, 0], sizes = [1, 16], strides = [1, 1]} : vector<24x32xf32> to vector<1x16xf32>
    %33 = vector.extract_strided_slice %20 {offsets = [12, 0], sizes = [1, 16], strides = [1, 1]} : vector<24x32xf32> to vector<1x16xf32>
    %34 = vector.extract_strided_slice %20 {offsets = [13, 0], sizes = [1, 16], strides = [1, 1]} : vector<24x32xf32> to vector<1x16xf32>
    %35 = vector.extract_strided_slice %20 {offsets = [14, 0], sizes = [1, 16], strides = [1, 1]} : vector<24x32xf32> to vector<1x16xf32>
    %36 = vector.extract_strided_slice %20 {offsets = [15, 0], sizes = [1, 16], strides = [1, 1]} : vector<24x32xf32> to vector<1x16xf32>
    %37 = tpu.concatenate %21, %22, %23, %24, %25, %26, %27, %28, %29, %30, %31, %32, %33, %34, %35, %36 in 1 : vector<1x16xf32>, vector<1x16xf32>, vector<1x16xf32>, vector<1x16xf32>, vector<1x16xf32>, vector<1x16xf32>, vector<1x16xf32>, vector<1x16xf32>, vector<1x16xf32>, vector<1x16xf32>, vector<1x16xf32>, vector<1x16xf32>, vector<1x16xf32>, vector<1x16xf32>, vector<1x16xf32>, vector<1x16xf32> -> vector<1x256xf32>
    %38 = vector.extract_strided_slice %20 {offsets = [16, 0], sizes = [1, 16], strides = [1, 1]} : vector<24x32xf32> to vector<1x16xf32>
    %39 = vector.extract_strided_slice %20 {offsets = [17, 0], sizes = [1, 16], strides = [1, 1]} : vector<24x32xf32> to vector<1x16xf32>
    %40 = vector.extract_strided_slice %20 {offsets = [18, 0], sizes = [1, 16], strides = [1, 1]} : vector<24x32xf32> to vector<1x16xf32>
    %41 = vector.extract_strided_slice %20 {offsets = [19, 0], sizes = [1, 16], strides = [1, 1]} : vector<24x32xf32> to vector<1x16xf32>
    %42 = vector.extract_strided_slice %20 {offsets = [20, 0], sizes = [1, 16], strides = [1, 1]} : vector<24x32xf32> to vector<1x16xf32>
    %43 = vector.extract_strided_slice %20 {offsets = [21, 0], sizes = [1, 16], strides = [1, 1]} : vector<24x32xf32> to vector<1x16xf32>
    %44 = vector.extract_strided_slice %20 {offsets = [22, 0], sizes = [1, 16], strides = [1, 1]} : vector<24x32xf32> to vector<1x16xf32>
    %45 = vector.extract_strided_slice %20 {offsets = [23, 0], sizes = [1, 16], strides = [1, 1]} : vector<24x32xf32> to vector<1x16xf32>
    %46 = vector.extract_strided_slice %20 {offsets = [0, 16], sizes = [1, 16], strides = [1, 1]} : vector<24x32xf32> to vector<1x16xf32>
    %47 = vector.extract_strided_slice %20 {offsets = [1, 16], sizes = [1, 16], strides = [1, 1]} : vector<24x32xf32> to vector<1x16xf32>
    %48 = vector.extract_strided_slice %20 {offsets = [2, 16], sizes = [1, 16], strides = [1, 1]} : vector<24x32xf32> to vector<1x16xf32>
    %49 = vector.extract_strided_slice %20 {offsets = [3, 16], sizes = [1, 16], strides = [1, 1]} : vector<24x32xf32> to vector<1x16xf32>
    %50 = vector.extract_strided_slice %20 {offsets = [4, 16], sizes = [1, 16], strides = [1, 1]} : vector<24x32xf32> to vector<1x16xf32>
    %51 = vector.extract_strided_slice %20 {offsets = [5, 16], sizes = [1, 16], strides = [1, 1]} : vector<24x32xf32> to vector<1x16xf32>
    %52 = vector.extract_strided_slice %20 {offsets = [6, 16], sizes = [1, 16], strides = [1, 1]} : vector<24x32xf32> to vector<1x16xf32>
    %53 = vector.extract_strided_slice %20 {offsets = [7, 16], sizes = [1, 16], strides = [1, 1]} : vector<24x32xf32> to vector<1x16xf32>
    %54 = tpu.concatenate %38, %39, %40, %41, %42, %43, %44, %45, %46, %47, %48, %49, %50, %51, %52, %53 in 1 : vector<1x16xf32>, vector<1x16xf32>, vector<1x16xf32>, vector<1x16xf32>, vector<1x16xf32>, vector<1x16xf32>, vector<1x16xf32>, vector<1x16xf32>, vector<1x16xf32>, vector<1x16xf32>, vector<1x16xf32>, vector<1x16xf32>, vector<1x16xf32>, vector<1x16xf32>, vector<1x16xf32>, vector<1x16xf32> -> vector<1x256xf32>
    %55 = vector.extract_strided_slice %20 {offsets = [8, 16], sizes = [1, 16], strides = [1, 1]} : vector<24x32xf32> to vector<1x16xf32>
    %56 = vector.extract_strided_slice %20 {offsets = [9, 16], sizes = [1, 16], strides = [1, 1]} : vector<24x32xf32> to vector<1x16xf32>
    %57 = vector.extract_strided_slice %20 {offsets = [10, 16], sizes = [1, 16], strides = [1, 1]} : vector<24x32xf32> to vector<1x16xf32>
    %58 = vector.extract_strided_slice %20 {offsets = [11, 16], sizes = [1, 16], strides = [1, 1]} : vector<24x32xf32> to vector<1x16xf32>
    %59 = vector.extract_strided_slice %20 {offsets = [12, 16], sizes = [1, 16], strides = [1, 1]} : vector<24x32xf32> to vector<1x16xf32>
    %60 = vector.extract_strided_slice %20 {offsets = [13, 16], sizes = [1, 16], strides = [1, 1]} : vector<24x32xf32> to vector<1x16xf32>
    %61 = vector.extract_strided_slice %20 {offsets = [14, 16], sizes = [1, 16], strides = [1, 1]} : vector<24x32xf32> to vector<1x16xf32>
    %62 = vector.extract_strided_slice %20 {offsets = [15, 16], sizes = [1, 16], strides = [1, 1]} : vector<24x32xf32> to vector<1x16xf32>
    %63 = vector.extract_strided_slice %20 {offsets = [16, 16], sizes = [1, 16], strides = [1, 1]} : vector<24x32xf32> to vector<1x16xf32>
    %64 = vector.extract_strided_slice %20 {offsets = [17, 16], sizes = [1, 16], strides = [1, 1]} : vector<24x32xf32> to vector<1x16xf32>
    %65 = vector.extract_strided_slice %20 {offsets = [18, 16], sizes = [1, 16], strides = [1, 1]} : vector<24x32xf32> to vector<1x16xf32>
    %66 = vector.extract_strided_slice %20 {offsets = [19, 16], sizes = [1, 16], strides = [1, 1]} : vector<24x32xf32> to vector<1x16xf32>
    %67 = vector.extract_strided_slice %20 {offsets = [20, 16], sizes = [1, 16], strides = [1, 1]} : vector<24x32xf32> to vector<1x16xf32>
    %68 = vector.extract_strided_slice %20 {offsets = [21, 16], sizes = [1, 16], strides = [1, 1]} : vector<24x32xf32> to vector<1x16xf32>
    %69 = vector.extract_strided_slice %20 {offsets = [22, 16], sizes = [1, 16], strides = [1, 1]} : vector<24x32xf32> to vector<1x16xf32>
    %70 = vector.extract_strided_slice %20 {offsets = [23, 16], sizes = [1, 16], strides = [1, 1]} : vector<24x32xf32> to vector<1x16xf32>
    %71 = tpu.concatenate %55, %56, %57, %58, %59, %60, %61, %62, %63, %64, %65, %66, %67, %68, %69, %70 in 1 : vector<1x16xf32>, vector<1x16xf32>, vector<1x16xf32>, vector<1x16xf32>, vector<1x16xf32>, vector<1x16xf32>, vector<1x16xf32>, vector<1x16xf32>, vector<1x16xf32>, vector<1x16xf32>, vector<1x16xf32>, vector<1x16xf32>, vector<1x16xf32>, vector<1x16xf32>, vector<1x16xf32>, vector<1x16xf32> -> vector<1x256xf32>
    %72 = tpu.concatenate %37, %54, %71 in 0 : vector<1x256xf32>, vector<1x256xf32>, vector<1x256xf32> -> vector<3x256xf32>
    %73 = arith.truncf %72 : vector<3x256xf32> to vector<3x256xbf16>
    %c0_16 = arith.constant 0 : index
    %c0_17 = arith.constant 0 : index
    %74 = vector.load %arg3[%c0_16, %c0_17] : memref<256x128xbf16, #tpu.memory_space<vmem>>, vector<256x128xbf16>
    %cst_18 = arith.constant dense<0.000000e+00> : vector<3x128xf32>
    %75 = tpu.matmul %73, %74, %cst_18 {dimension_numbers = #tpu.dot_dimension_numbers<[1], [0], [0], [1], [0, 0, 1, 1], [], []>} : vector<3x256xbf16>, vector<256x128xbf16>, vector<3x128xf32> -> vector<3x128xf32>
    %c0_19 = arith.constant 0 : index
    %c0_20 = arith.constant 0 : index
    %76 = vector.load %arg4[%c0_19, %c0_20] : memref<1x128xf32, #tpu.memory_space<vmem>>, vector<1x128xf32>
    %77 = vector.broadcast %76 : vector<1x128xf32> to vector<3x128xf32>
    %78 = arith.addf %75, %77 : vector<3x128xf32>
    %cst_21 = arith.constant 0.000000e+00 : f32
    %79 = vector.broadcast %cst_21 : f32 to vector<3x128xf32>
    %80 = arith.maximumf %78, %79 : vector<3x128xf32>
    %81 = arith.truncf %80 : vector<3x128xf32> to vector<3x128xbf16>
    %c0_22 = arith.constant 0 : index
    %c0_23 = arith.constant 0 : index
    %82 = vector.load %arg5[%c0_22, %c0_23] : memref<128x21xbf16, #tpu.memory_space<vmem>>, vector<128x21xbf16>
    %cst_24 = arith.constant dense<0.000000e+00> : vector<3x21xf32>
    %83 = tpu.matmul %81, %82, %cst_24 {dimension_numbers = #tpu.dot_dimension_numbers<[1], [0], [0], [1], [0, 0, 1, 1], [], []>} : vector<3x128xbf16>, vector<128x21xbf16>, vector<3x21xf32> -> vector<3x21xf32>
    %c0_25 = arith.constant 0 : index
    %c0_26 = arith.constant 0 : index
    %84 = vector.load %arg6[%c0_25, %c0_26] : memref<1x21xf32, #tpu.memory_space<vmem>>, vector<1x21xf32>
    %85 = vector.broadcast %84 : vector<1x21xf32> to vector<3x21xf32>
    %86 = arith.addf %83, %85 : vector<3x21xf32>
    %87 = vector.extract_strided_slice %86 {offsets = [0, 0], sizes = [1, 21], strides = [1, 1]} : vector<3x21xf32> to vector<1x21xf32>
    %88 = vector.extract_strided_slice %86 {offsets = [1, 0], sizes = [1, 21], strides = [1, 1]} : vector<3x21xf32> to vector<1x21xf32>
    %89 = vector.extract_strided_slice %86 {offsets = [2, 0], sizes = [1, 21], strides = [1, 1]} : vector<3x21xf32> to vector<1x21xf32>
    %cst_27 = arith.constant 0.000000e+00 : f32
    %90 = vector.broadcast %cst_27 : f32 to vector<1x321xf32>
    %91 = tpu.concatenate %87, %88, %89, %90 in 1 : vector<1x21xf32>, vector<1x21xf32>, vector<1x21xf32>, vector<1x321xf32> -> vector<1x384xf32>
    %92 = arith.truncf %91 : vector<1x384xf32> to vector<1x384xbf16>
    %c0_28 = arith.constant 0 : index
    %c0_29 = arith.constant 0 : index
    %93 = vector.load %arg7[%c0_28, %c0_29] : memref<384x1024xbf16, #tpu.memory_space<vmem>>, vector<384x1024xbf16>
    %cst_30 = arith.constant dense<0.000000e+00> : vector<1x1024xf32>
    %94 = tpu.matmul %92, %93, %cst_30 {dimension_numbers = #tpu.dot_dimension_numbers<[1], [0], [0], [1], [0, 0, 1, 1], [], []>} : vector<1x384xbf16>, vector<384x1024xbf16>, vector<1x1024xf32> -> vector<1x1024xf32>
    %c0_31 = arith.constant 0 : index
    %c0_32 = arith.constant 0 : index
    %95 = vector.load %arg8[%c0_31, %c0_32] : memref<1x1024xf32, #tpu.memory_space<vmem>>, vector<1x1024xf32>
    %96 = arith.addf %94, %95 : vector<1x1024xf32>
    %97 = vector.extract_strided_slice %96 {offsets = [0, 0], sizes = [1, 256], strides = [1, 1]} : vector<1x1024xf32> to vector<1x256xf32>
    %98 = arith.negf %97 : vector<1x256xf32>
    %99 = math.exp %98 : vector<1x256xf32>
    %cst_33 = arith.constant 1.000000e+00 : f32
    %100 = vector.broadcast %cst_33 : f32 to vector<1x256xf32>
    %101 = arith.addf %100, %99 : vector<1x256xf32>
    %102 = arith.divf %100, %101 : vector<1x256xf32>
    %103 = vector.extract_strided_slice %96 {offsets = [0, 512], sizes = [1, 256], strides = [1, 1]} : vector<1x1024xf32> to vector<1x256xf32>
    %104 = math.tanh %103 : vector<1x256xf32>
    %105 = vector.extract_strided_slice %96 {offsets = [0, 768], sizes = [1, 256], strides = [1, 1]} : vector<1x1024xf32> to vector<1x256xf32>
    %106 = arith.negf %105 : vector<1x256xf32>
    %107 = math.exp %106 : vector<1x256xf32>
    %cst_34 = arith.constant 1.000000e+00 : f32
    %108 = vector.broadcast %cst_34 : f32 to vector<1x256xf32>
    %109 = arith.addf %108, %107 : vector<1x256xf32>
    %110 = arith.divf %108, %109 : vector<1x256xf32>
    %111 = arith.mulf %102, %104 : vector<1x256xf32>
    %112 = math.tanh %111 : vector<1x256xf32>
    %113 = arith.mulf %110, %112 : vector<1x256xf32>
    %114 = arith.truncf %113 : vector<1x256xf32> to vector<1x256xbf16>
    %c0_35 = arith.constant 0 : index
    %c0_36 = arith.constant 0 : index
    %115 = vector.load %arg9[%c0_35, %c0_36] : memref<256x1024xbf16, #tpu.memory_space<vmem>>, vector<256x1024xbf16>
    %cst_37 = arith.constant dense<0.000000e+00> : vector<1x1024xf32>
    %116 = tpu.matmul %114, %115, %cst_37 {dimension_numbers = #tpu.dot_dimension_numbers<[1], [0], [0], [1], [0, 0, 1, 1], [], []>} : vector<1x256xbf16>, vector<256x1024xbf16>, vector<1x1024xf32> -> vector<1x1024xf32>
    %c0_38 = arith.constant 0 : index
    %c0_39 = arith.constant 0 : index
    %117 = vector.load %arg10[%c0_38, %c0_39] : memref<1x1024xf32, #tpu.memory_space<vmem>>, vector<1x1024xf32>
    %118 = arith.addf %116, %117 : vector<1x1024xf32>
    %119 = vector.extract_strided_slice %118 {offsets = [0, 0], sizes = [1, 256], strides = [1, 1]} : vector<1x1024xf32> to vector<1x256xf32>
    %120 = arith.negf %119 : vector<1x256xf32>
    %121 = math.exp %120 : vector<1x256xf32>
    %cst_40 = arith.constant 1.000000e+00 : f32
    %122 = vector.broadcast %cst_40 : f32 to vector<1x256xf32>
    %123 = arith.addf %122, %121 : vector<1x256xf32>
    %124 = arith.divf %122, %123 : vector<1x256xf32>
    %125 = vector.extract_strided_slice %118 {offsets = [0, 512], sizes = [1, 256], strides = [1, 1]} : vector<1x1024xf32> to vector<1x256xf32>
    %126 = math.tanh %125 : vector<1x256xf32>
    %127 = vector.extract_strided_slice %118 {offsets = [0, 768], sizes = [1, 256], strides = [1, 1]} : vector<1x1024xf32> to vector<1x256xf32>
    %128 = arith.negf %127 : vector<1x256xf32>
    %129 = math.exp %128 : vector<1x256xf32>
    %cst_41 = arith.constant 1.000000e+00 : f32
    %130 = vector.broadcast %cst_41 : f32 to vector<1x256xf32>
    %131 = arith.addf %130, %129 : vector<1x256xf32>
    %132 = arith.divf %130, %131 : vector<1x256xf32>
    %133 = arith.mulf %124, %126 : vector<1x256xf32>
    %134 = math.tanh %133 : vector<1x256xf32>
    %135 = arith.mulf %132, %134 : vector<1x256xf32>
    %136 = arith.truncf %135 : vector<1x256xf32> to vector<1x256xbf16>
    %c0_42 = arith.constant 0 : index
    %c0_43 = arith.constant 0 : index
    %137 = vector.load %arg11[%c0_42, %c0_43] : memref<256x1024xbf16, #tpu.memory_space<vmem>>, vector<256x1024xbf16>
    %cst_44 = arith.constant dense<0.000000e+00> : vector<1x1024xf32>
    %138 = tpu.matmul %136, %137, %cst_44 {dimension_numbers = #tpu.dot_dimension_numbers<[1], [0], [0], [1], [0, 0, 1, 1], [], []>} : vector<1x256xbf16>, vector<256x1024xbf16>, vector<1x1024xf32> -> vector<1x1024xf32>
    %c0_45 = arith.constant 0 : index
    %c0_46 = arith.constant 0 : index
    %139 = vector.load %arg12[%c0_45, %c0_46] : memref<1x1024xf32, #tpu.memory_space<vmem>>, vector<1x1024xf32>
    %140 = arith.addf %138, %139 : vector<1x1024xf32>
    %141 = vector.extract_strided_slice %140 {offsets = [0, 0], sizes = [1, 256], strides = [1, 1]} : vector<1x1024xf32> to vector<1x256xf32>
    %142 = arith.negf %141 : vector<1x256xf32>
    %143 = math.exp %142 : vector<1x256xf32>
    %cst_47 = arith.constant 1.000000e+00 : f32
    %144 = vector.broadcast %cst_47 : f32 to vector<1x256xf32>
    %145 = arith.addf %144, %143 : vector<1x256xf32>
    %146 = arith.divf %144, %145 : vector<1x256xf32>
    %147 = vector.extract_strided_slice %140 {offsets = [0, 512], sizes = [1, 256], strides = [1, 1]} : vector<1x1024xf32> to vector<1x256xf32>
    %148 = math.tanh %147 : vector<1x256xf32>
    %149 = vector.extract_strided_slice %140 {offsets = [0, 768], sizes = [1, 256], strides = [1, 1]} : vector<1x1024xf32> to vector<1x256xf32>
    %150 = arith.negf %149 : vector<1x256xf32>
    %151 = math.exp %150 : vector<1x256xf32>
    %cst_48 = arith.constant 1.000000e+00 : f32
    %152 = vector.broadcast %cst_48 : f32 to vector<1x256xf32>
    %153 = arith.addf %152, %151 : vector<1x256xf32>
    %154 = arith.divf %152, %153 : vector<1x256xf32>
    %155 = arith.mulf %146, %148 : vector<1x256xf32>
    %156 = math.tanh %155 : vector<1x256xf32>
    %157 = arith.mulf %154, %156 : vector<1x256xf32>
    %158 = arith.truncf %157 : vector<1x256xf32> to vector<1x256xbf16>
    %c0_49 = arith.constant 0 : index
    %c0_50 = arith.constant 0 : index
    %159 = vector.load %arg13[%c0_49, %c0_50] : memref<256x128xbf16, #tpu.memory_space<vmem>>, vector<256x128xbf16>
    %cst_51 = arith.constant dense<0.000000e+00> : vector<1x128xf32>
    %160 = tpu.matmul %158, %159, %cst_51 {dimension_numbers = #tpu.dot_dimension_numbers<[1], [0], [0], [1], [0, 0, 1, 1], [], []>} : vector<1x256xbf16>, vector<256x128xbf16>, vector<1x128xf32> -> vector<1x128xf32>
    %c0_52 = arith.constant 0 : index
    %c0_53 = arith.constant 0 : index
    %161 = vector.load %arg14[%c0_52, %c0_53] : memref<1x128xf32, #tpu.memory_space<vmem>>, vector<1x128xf32>
    %162 = arith.addf %160, %161 : vector<1x128xf32>
    %cst_54 = arith.constant dense<0xFF800000> : vector<1xf32>
    %163 = vector.multi_reduction <maximumf>, %162, %cst_54 [1] : vector<1x128xf32> to vector<1xf32>
    %164 = vector.shape_cast %163 : vector<1xf32> to vector<1x1xf32>
    %165 = vector.broadcast %164 : vector<1x1xf32> to vector<1x128xf32>
    %166 = arith.subf %162, %165 : vector<1x128xf32>
    %167 = math.exp %166 : vector<1x128xf32>
    %cst_55 = arith.constant dense<0.000000e+00> : vector<1xf32>
    %168 = vector.multi_reduction <add>, %167, %cst_55 [1] : vector<1x128xf32> to vector<1xf32>
    %169 = vector.shape_cast %168 : vector<1xf32> to vector<1x1xf32>
    %170 = math.log %169 : vector<1x1xf32>
    %171 = vector.broadcast %170 : vector<1x1xf32> to vector<1x128xf32>
    %172 = arith.subf %166, %171 : vector<1x128xf32>
    %c0_56 = arith.constant 0 : index
    %c0_57 = arith.constant 0 : index
    %173 = vector.load %arg15[%c0_56, %c0_57] : memref<1x128xf32, #tpu.memory_space<vmem>>, vector<1x128xf32>
    tpu.vector_store %arg15[%c0_56, %c0_57], %172 {strides = array<i32>} : memref<1x128xf32, #tpu.memory_space<vmem>>, vector<1x128xf32>,
    return
  }
}

</mosaic_0001>

<llo_original>
// kernel: combine_forward.2
$region0: #{combine_forward.2}
  #allocation0 [shape = 'u32[]', space=smem, size = 0x4, offset = 0x4, fixed_abs, tag = 'smem constant byte address 0x4 - core index']
  #allocation1 [shape = 'u32[144,128]{1,0:T(1,128)}', space=vmem, size = 0x12000, scoped, tag = 'internal scratch']
  %s0 = inlined_call_operand.vmem [shape: bf16[4,288,128], index: 0, kind: input, shape index: {}]
  %s1 = inlined_call_operand.vmem [shape: bf16[128,8], index: 1, kind: input, shape index: {}]
  %s2 = inlined_call_operand.vmem [shape: f32[1,8], index: 2, kind: input, shape index: {}]
  %s3 = inlined_call_operand.vmem [shape: bf16[288,8], index: 3, kind: output, shape index: {}]
  %s4 = sld [smem:[#allocation0]]
  $region22: #{combine_forward.2} parent=0
    _
  %s6 = ssub.s32 1, %s4
  %s7 = scalar_select 0, %s6, %s4
  // Predicated region
  $region2: #{combine_forward.2} parent=0 // pred_check
    _
  $region3: #{combine_forward.2} parent=0 // pred_check_branch
    %9 = sbr.rel (0) target = $region5
  $region4: #{combine_forward.2} parent=0 // pred_region
    _
  $region5: #{combine_forward.2} parent=0 // pred_fallthru
    _
  // Predicated region
  $region6: #{combine_forward.2} parent=0 // pred_check
    _
  $region7: #{combine_forward.2} parent=0 // pred_check_branch
    %11 = sbr.rel (0) target = $region9
  $region8: #{combine_forward.2} parent=0 // pred_region
    _
  $region9: #{combine_forward.2} parent=0 // pred_fallthru
    _
  // Predicated region
  $region10: #{combine_forward.2} parent=0 // pred_check
    _
  $region11: #{combine_forward.2} parent=0 // pred_check_branch
    %13 = sbr.rel (0) target = $region13
  $region12: #{combine_forward.2} parent=0 // pred_region
    _
  $region13: #{combine_forward.2} parent=0 // pred_fallthru
    _
  %v15 = vld [vmem:[%s1] sm:$0xf]
  %v16 = vld [vmem:[%s1 + $0x4] sm:$0xf]
  %v17 = vld [vmem:[%s1 + $0x8] sm:$0xf]
  %v18 = vld [vmem:[%s1 + $0xc] sm:$0xf]
  %v19 = vld [vmem:[%s1 + $0x10] sm:$0xf]
  %v20 = vld [vmem:[%s1 + $0x14] sm:$0xf]
  %v21 = vld [vmem:[%s1 + $0x18] sm:$0xf]
  %v22 = vld [vmem:[%s1 + $0x1c] sm:$0xf]
  %v23 = vld [vmem:[%s1 + $0x20] sm:$0xf]
  %v24 = vld [vmem:[%s1 + $0x24] sm:$0xf]
  %v25 = vld [vmem:[%s1 + $0x28] sm:$0xf]
  %v26 = vld [vmem:[%s1 + $0x2c] sm:$0xf]
  %v27 = vld [vmem:[%s1 + $0x30] sm:$0xf]
  %v28 = vld [vmem:[%s1 + $0x34] sm:$0xf]
  %v29 = vld [vmem:[%s1 + $0x38] sm:$0xf]
  %v30 = vld [vmem:[%s1 + $0x3c] sm:$0xf]
  %v31 = vld [vmem:[%s0] sm:$0xf]
  %v32 = vld [vmem:[%s0 + $0x4] sm:$0xf]
  %v33 = vld [vmem:[%s0 + $0x8] sm:$0xf]
  %v34 = vld [vmem:[%s0 + $0xc] sm:$0xf]
  %v35 = vld [vmem:[%s0 + $0x10] sm:$0xf]
  %v36 = vld [vmem:[%s0 + $0x14] sm:$0xf]
  %v37 = vld [vmem:[%s0 + $0x18] sm:$0xf]
  %v38 = vld [vmem:[%s0 + $0x1c] sm:$0xf]
  %v39 = vld [vmem:[%s0 + $0x20] sm:$0xf]
  %v40 = vld [vmem:[%s0 + $0x24] sm:$0xf]
  %v41 = vld [vmem:[%s0 + $0x28] sm:$0xf]
  %v42 = vld [vmem:[%s0 + $0x2c] sm:$0xf]
  %v43 = vld [vmem:[%s0 + $0x30] sm:$0xf]
  %v44 = vld [vmem:[%s0 + $0x34] sm:$0xf]
  %v45 = vld [vmem:[%s0 + $0x38] sm:$0xf]
  %v46 = vld [vmem:[%s0 + $0x3c] sm:$0xf]
  %v47 = vld [vmem:[%s0 + $0x40] sm:$0xf]
  %v48 = vld [vmem:[%s0 + $0x44] sm:$0xf]
  %v49 = vld [vmem:[%s0 + $0x48] sm:$0xf]
  %v50 = vld [vmem:[%s0 + $0x4c] sm:$0xf]
  %v51 = vld [vmem:[%s0 + $0x50] sm:$0xf]
  %v52 = vld [vmem:[%s0 + $0x54] sm:$0xf]
  %v53 = vld [vmem:[%s0 + $0x58] sm:$0xf]
  %v54 = vld [vmem:[%s0 + $0x5c] sm:$0xf]
  %v55 = vld [vmem:[%s0 + $0x60] sm:$0xf]
  %v56 = vld [vmem:[%s0 + $0x64] sm:$0xf]
  %v57 = vld [vmem:[%s0 + $0x68] sm:$0xf]
  %v58 = vld [vmem:[%s0 + $0x6c] sm:$0xf]
  %v59 = vld [vmem:[%s0 + $0x70] sm:$0xf]
  %v60 = vld [vmem:[%s0 + $0x74] sm:$0xf]
  %v61 = vld [vmem:[%s0 + $0x78] sm:$0xf]
  %v62 = vld [vmem:[%s0 + $0x7c] sm:$0xf]
  %v63 = vld [vmem:[%s0 + $0x80] sm:$0xf]
  %v64 = vld [vmem:[%s0 + $0x84] sm:$0xf]
  %v65 = vld [vmem:[%s0 + $0x88] sm:$0xf]
  %v66 = vld [vmem:[%s0 + $0x8c] sm:$0xf]
  %v103 = vunpack.c.l.b16 %v31
  %v104 = vunpack.c.l.b16 %v32
  %v105 = vunpack.c.l.b16 %v33
  %v106 = vunpack.c.l.b16 %v34
  %v107 = vunpack.c.l.b16 %v35
  %v108 = vunpack.c.l.b16 %v36
  %v109 = vunpack.c.l.b16 %v37
  %v110 = vunpack.c.l.b16 %v38
  %v111 = vunpack.c.l.b16 %v39
  %v112 = vunpack.c.l.b16 %v40
  %v113 = vunpack.c.l.b16 %v41
  %v114 = vunpack.c.l.b16 %v42
  %v115 = vunpack.c.l.b16 %v43
  %v116 = vunpack.c.l.b16 %v44
  %v117 = vunpack.c.l.b16 %v45
  %v118 = vunpack.c.l.b16 %v46
  %v119 = vunpack.c.l.b16 %v47
  %v120 = vunpack.c.l.b16 %v48
  %v121 = vunpack.c.l.b16 %v49
  %v122 = vunpack.c.l.b16 %v50
  %v123 = vunpack.c.l.b16 %v51
  %v124 = vunpack.c.l.b16 %v52
  %v125 = vunpack.c.l.b16 %v53
  %v126 = vunpack.c.l.b16 %v54
  %v127 = vunpack.c.l.b16 %v55
  %v128 = vunpack.c.l.b16 %v56
  %v129 = vunpack.c.l.b16 %v57
  %v130 = vunpack.c.l.b16 %v58
  %v131 = vunpack.c.l.b16 %v59
  %v132 = vunpack.c.l.b16 %v60
  %v133 = vunpack.c.l.b16 %v61
  %v134 = vunpack.c.l.b16 %v62
  %v135 = vunpack.c.l.b16 %v63
  %v136 = vunpack.c.l.b16 %v64
  %v137 = vunpack.c.l.b16 %v65
  %v138 = vunpack.c.l.b16 %v66
  %v139 = vpack.c.b16 %v104, %v103
  %v140 = vpack.c.b16 %v106, %v105
  %v141 = vpack.c.b16 %v108, %v107
  %v142 = vpack.c.b16 %v110, %v109
  %v143 = vpack.c.b16 %v112, %v111
  %v144 = vpack.c.b16 %v114, %v113
  %v145 = vpack.c.b16 %v116, %v115
  %v146 = vpack.c.b16 %v118, %v117
  %v147 = vpack.c.b16 %v120, %v119
  %v148 = vpack.c.b16 %v122, %v121
  %v149 = vpack.c.b16 %v124, %v123
  %v150 = vpack.c.b16 %v126, %v125
  %v151 = vpack.c.b16 %v128, %v127
  %v152 = vpack.c.b16 %v130, %v129
  %v153 = vpack.c.b16 %v132, %v131
  %v154 = vpack.c.b16 %v134, %v133
  %v155 = vpack.c.b16 %v136, %v135
  %v156 = vpack.c.b16 %v138, %v137
  %v191 = vunpack.c.l.b16 %v15
  %v192 = vunpack.c.l.b16 %v16
  %v193 = vunpack.c.l.b16 %v17
  %v194 = vunpack.c.l.b16 %v18
  %v195 = vunpack.c.l.b16 %v19
  %v196 = vunpack.c.l.b16 %v20
  %v197 = vunpack.c.l.b16 %v21
  %v198 = vunpack.c.l.b16 %v22
  %v199 = vunpack.c.l.b16 %v23
  %v200 = vunpack.c.l.b16 %v24
  %v201 = vunpack.c.l.b16 %v25
  %v202 = vunpack.c.l.b16 %v26
  %v203 = vunpack.c.l.b16 %v27
  %v204 = vunpack.c.l.b16 %v28
  %v205 = vunpack.c.l.b16 %v29
  %v206 = vunpack.c.l.b16 %v30
  %v207 = vpack.c.b16 %v192, %v191
  %v208 = vpack.c.b16 %v194, %v193
  %v209 = vpack.c.b16 %v196, %v195
  %v210 = vpack.c.b16 %v198, %v197
  %v211 = vpack.c.b16 %v200, %v199
  %v212 = vpack.c.b16 %v202, %v201
  %v213 = vpack.c.b16 %v204, %v203
  %v214 = vpack.c.b16 %v206, %v205
  %223 = vmatprep.subr.bf16.mxu0 0
  %224 = vmatpush1.bf16.msra.mxu0 %v214
  %225 = vmatprep.subr.bf16.mxu0 0
  %226 = vmatpush1.bf16.msra.mxu0 %v213
  %227 = vmatprep.subr.bf16.mxu0 0
  %228 = vmatpush1.bf16.msra.mxu0 %v212
  %229 = vmatprep.subr.bf16.mxu0 0
  %230 = vmatpush1.bf16.msra.mxu0 %v211
  %231 = vmatprep.subr.bf16.mxu0 0
  %232 = vmatpush1.bf16.msra.mxu0 %v210
  %233 = vmatprep.subr.bf16.mxu0 0
  %234 = vmatpush1.bf16.msra.mxu0 %v209
  %235 = vmatprep.subr.bf16.mxu0 0
  %236 = vmatpush1.bf16.msra.mxu0 %v208
  %237 = vmatprep.subr.bf16.mxu0 0
  %238 = vmatpush1.bf16.msra.mxu0 %v207
  %239 = vmatprep.subr.bf16.mxu0 0
  %240 = vmatpush2.bf16.msra.mxu0 0
  %241 = vmatprep.subr.bf16.mxu0 0
  %242 = vmatpush2.bf16.msra.mxu0 0
  %243 = vmatprep.subr.bf16.mxu0 0
  %244 = vmatpush2.bf16.msra.mxu0 0
  %245 = vmatprep.subr.bf16.mxu0 0
  %246 = vmatpush2.bf16.msra.mxu0 0
  %247 = vmatprep.subr.bf16.mxu0 0
  %248 = vmatpush2.bf16.msra.mxu0 0
  %249 = vmatprep.subr.bf16.mxu0 0
  %250 = vmatpush2.bf16.msra.mxu0 0
  %251 = vmatprep.subr.bf16.mxu0 0
  %252 = vmatpush2.bf16.msra.mxu0 0
  %253 = vmatprep.subr.bf16.mxu0 0
  %254 = vmatpush2.bf16.msra.mxu0 0
  %255 = vmatprep.mubr.bf16.mxu0 0
  %256 = vmatmul.mubr.bf16.gmra.mxu0 %v139
  %v257 = vpop.f32.mrf.mxu0
  %v258 = vadd.f32 0.0, %v257
  %v259 = vpop.f32.mrf.mxu0
  %v260 = vpop.f32.mrf.mxu0
  %v261 = vadd.f32 0.0, %v260
  %v262 = vpop.f32.mrf.mxu0
  %263 = vmatprep.mubr.bf16.mxu0 0
  %264 = vmatmul.mubr.bf16.gmra.mxu0 %v140
  %v265 = vpop.f32.mrf.mxu0
  %v266 = vadd.f32 0.0, %v265
  %v267 = vpop.f32.mrf.mxu0
  %v268 = vpop.f32.mrf.mxu0
  %v269 = vadd.f32 0.0, %v268
  %v270 = vpop.f32.mrf.mxu0
  %271 = vmatprep.mubr.bf16.mxu0 0
  %272 = vmatmul.mubr.bf16.gmra.mxu0 %v141
  %v273 = vpop.f32.mrf.mxu0
  %v274 = vadd.f32 0.0, %v273
  %v275 = vpop.f32.mrf.mxu0
  %v276 = vpop.f32.mrf.mxu0
  %v277 = vadd.f32 0.0, %v276
  %v278 = vpop.f32.mrf.mxu0
  %279 = vmatprep.mubr.bf16.mxu0 0
  %280 = vmatmul.mubr.bf16.gmra.mxu0 %v142
  %v281 = vpop.f32.mrf.mxu0
  %v282 = vadd.f32 0.0, %v281
  %v283 = vpop.f32.mrf.mxu0
  %v284 = vpop.f32.mrf.mxu0
  %v285 = vadd.f32 0.0, %v284
  %v286 = vpop.f32.mrf.mxu0
  %287 = vmatprep.mubr.bf16.mxu0 0
  %288 = vmatmul.mubr.bf16.gmra.mxu0 %v143
  %v289 = vpop.f32.mrf.mxu0
  %v290 = vadd.f32 0.0, %v289
  %v291 = vpop.f32.mrf.mxu0
  %v292 = vpop.f32.mrf.mxu0
  %v293 = vadd.f32 0.0, %v292
  %v294 = vpop.f32.mrf.mxu0
  %295 = vmatprep.mubr.bf16.mxu0 0
  %296 = vmatmul.mubr.bf16.gmra.mxu0 %v144
  %v297 = vpop.f32.mrf.mxu0
  %v298 = vadd.f32 0.0, %v297
  %v299 = vpop.f32.mrf.mxu0
  %v300 = vpop.f32.mrf.mxu0
  %v301 = vadd.f32 0.0, %v300
  %v302 = vpop.f32.mrf.mxu0
  %303 = vmatprep.mubr.bf16.mxu0 0
  %304 = vmatmul.mubr.bf16.gmra.mxu0 %v145
  %v305 = vpop.f32.mrf.mxu0
  %v306 = vadd.f32 0.0, %v305
  %v307 = vpop.f32.mrf.mxu0
  %v308 = vpop.f32.mrf.mxu0
  %v309 = vadd.f32 0.0, %v308
  %v310 = vpop.f32.mrf.mxu0
  %311 = vmatprep.mubr.bf16.mxu0 0
  %312 = vmatmul.mubr.bf16.gmra.mxu0 %v146
  %v313 = vpop.f32.mrf.mxu0
  %v314 = vadd.f32 0.0, %v313
  %v315 = vpop.f32.mrf.mxu0
  %v316 = vpop.f32.mrf.mxu0
  %v317 = vadd.f32 0.0, %v316
  %v318 = vpop.f32.mrf.mxu0
  %319 = vmatprep.mubr.bf16.mxu0 0
  %320 = vmatmul.mubr.bf16.gmra.mxu0 %v147
  %v321 = vpop.f32.mrf.mxu0
  %v322 = vadd.f32 0.0, %v321
  %v323 = vpop.f32.mrf.mxu0
  %v324 = vpop.f32.mrf.mxu0
  %v325 = vadd.f32 0.0, %v324
  %v326 = vpop.f32.mrf.mxu0
  %327 = vmatprep.mubr.bf16.mxu0 0
  %328 = vmatmul.mubr.bf16.gmra.mxu0 %v148
  %v329 = vpop.f32.mrf.mxu0
  %v330 = vadd.f32 0.0, %v329
  %v331 = vpop.f32.mrf.mxu0
  %v332 = vpop.f32.mrf.mxu0
  %v333 = vadd.f32 0.0, %v332
  %v334 = vpop.f32.mrf.mxu0
  %335 = vmatprep.mubr.bf16.mxu0 0
  %336 = vmatmul.mubr.bf16.gmra.mxu0 %v149
  %v337 = vpop.f32.mrf.mxu0
  %v338 = vadd.f32 0.0, %v337
  %v339 = vpop.f32.mrf.mxu0
  %v340 = vpop.f32.mrf.mxu0
  %v341 = vadd.f32 0.0, %v340
  %v342 = vpop.f32.mrf.mxu0
  %343 = vmatprep.mubr.bf16.mxu0 0
  %344 = vmatmul.mubr.bf16.gmra.mxu0 %v150
  %v345 = vpop.f32.mrf.mxu0
  %v346 = vadd.f32 0.0, %v345
  %v347 = vpop.f32.mrf.mxu0
  %v348 = vpop.f32.mrf.mxu0
  %v349 = vadd.f32 0.0, %v348
  %v350 = vpop.f32.mrf.mxu0
  %351 = vmatprep.mubr.bf16.mxu0 0
  %352 = vmatmul.mubr.bf16.gmra.mxu0 %v151
  %v353 = vpop.f32.mrf.mxu0
  %v354 = vadd.f32 0.0, %v353
  %v355 = vpop.f32.mrf.mxu0
  %v356 = vpop.f32.mrf.mxu0
  %v357 = vadd.f32 0.0, %v356
  %v358 = vpop.f32.mrf.mxu0
  %359 = vmatprep.mubr.bf16.mxu0 0
  %360 = vmatmul.mubr.bf16.gmra.mxu0 %v152
  %v361 = vpop.f32.mrf.mxu0
  %v362 = vadd.f32 0.0, %v361
  %v363 = vpop.f32.mrf.mxu0
  %v364 = vpop.f32.mrf.mxu0
  %v365 = vadd.f32 0.0, %v364
  %v366 = vpop.f32.mrf.mxu0
  %367 = vmatprep.mubr.bf16.mxu0 0
  %368 = vmatmul.mubr.bf16.gmra.mxu0 %v153
  %v369 = vpop.f32.mrf.mxu0
  %v370 = vadd.f32 0.0, %v369
  %v371 = vpop.f32.mrf.mxu0
  %v372 = vpop.f32.mrf.mxu0
  %v373 = vadd.f32 0.0, %v372
  %v374 = vpop.f32.mrf.mxu0
  %375 = vmatprep.mubr.bf16.mxu0 0
  %376 = vmatmul.mubr.bf16.gmra.mxu0 %v154
  %v377 = vpop.f32.mrf.mxu0
  %v378 = vadd.f32 0.0, %v377
  %v379 = vpop.f32.mrf.mxu0
  %v380 = vpop.f32.mrf.mxu0
  %v381 = vadd.f32 0.0, %v380
  %v382 = vpop.f32.mrf.mxu0
  %383 = vmatprep.mubr.bf16.mxu0 0
  %384 = vmatmul.mubr.bf16.gmra.mxu0 %v155
  %v385 = vpop.f32.mrf.mxu0
  %v386 = vadd.f32 0.0, %v385
  %v387 = vpop.f32.mrf.mxu0
  %v388 = vpop.f32.mrf.mxu0
  %v389 = vadd.f32 0.0, %v388
  %v390 = vpop.f32.mrf.mxu0
  %391 = vmatprep.mubr.bf16.mxu0 0
  %392 = vmatmul.mubr.bf16.gmra.mxu0 %v156
  %v393 = vpop.f32.mrf.mxu0
  %v394 = vadd.f32 0.0, %v393
  %v395 = vpop.f32.mrf.mxu0
  %v396 = vpop.f32.mrf.mxu0
  %v397 = vadd.f32 0.0, %v396
  %v398 = vpop.f32.mrf.mxu0
  %399 = vdwg.mxu0
  %s400 = scalar_lea.vmem %s0, 144
  %v401 = vld [vmem:[%s400] sm:$0xf]
  %v402 = vld [vmem:[%s400 + $0x4] sm:$0xf]
  %v403 = vld [vmem:[%s400 + $0x8] sm:$0xf]
  %v404 = vld [vmem:[%s400 + $0xc] sm:$0xf]
  %v405 = vld [vmem:[%s400 + $0x10] sm:$0xf]
  %v406 = vld [vmem:[%s400 + $0x14] sm:$0xf]
  %v407 = vld [vmem:[%s400 + $0x18] sm:$0xf]
  %v408 = vld [vmem:[%s400 + $0x1c] sm:$0xf]
  %v409 = vld [vmem:[%s400 + $0x20] sm:$0xf]
  %v410 = vld [vmem:[%s400 + $0x24] sm:$0xf]
  %v411 = vld [vmem:[%s400 + $0x28] sm:$0xf]
  %v412 = vld [vmem:[%s400 + $0x2c] sm:$0xf]
  %v413 = vld [vmem:[%s400 + $0x30] sm:$0xf]
  %v414 = vld [vmem:[%s400 + $0x34] sm:$0xf]
  %v415 = vld [vmem:[%s400 + $0x38] sm:$0xf]
  %v416 = vld [vmem:[%s400 + $0x3c] sm:$0xf]
  %v417 = vld [vmem:[%s400 + $0x40] sm:$0xf]
  %v418 = vld [vmem:[%s400 + $0x44] sm:$0xf]
  %v419 = vld [vmem:[%s400 + $0x48] sm:$0xf]
  %v420 = vld [vmem:[%s400 + $0x4c] sm:$0xf]
  %v421 = vld [vmem:[%s400 + $0x50] sm:$0xf]
  %v422 = vld [vmem:[%s400 + $0x54] sm:$0xf]
  %v423 = vld [vmem:[%s400 + $0x58] sm:$0xf]
  %v424 = vld [vmem:[%s400 + $0x5c] sm:$0xf]
  %v425 = vld [vmem:[%s400 + $0x60] sm:$0xf]
  %v426 = vld [vmem:[%s400 + $0x64] sm:$0xf]
  %v427 = vld [vmem:[%s400 + $0x68] sm:$0xf]
  %v428 = vld [vmem:[%s400 + $0x6c] sm:$0xf]
  %v429 = vld [vmem:[%s400 + $0x70] sm:$0xf]
  %v430 = vld [vmem:[%s400 + $0x74] sm:$0xf]
  %v431 = vld [vmem:[%s400 + $0x78] sm:$0xf]
  %v432 = vld [vmem:[%s400 + $0x7c] sm:$0xf]
  %v433 = vld [vmem:[%s400 + $0x80] sm:$0xf]
  %v434 = vld [vmem:[%s400 + $0x84] sm:$0xf]
  %v435 = vld [vmem:[%s400 + $0x88] sm:$0xf]
  %v436 = vld [vmem:[%s400 + $0x8c] sm:$0xf]
  %v473 = vunpack.c.l.b16 %v401
  %v474 = vunpack.c.l.b16 %v402
  %v475 = vunpack.c.l.b16 %v403
  %v476 = vunpack.c.l.b16 %v404
  %v477 = vunpack.c.l.b16 %v405
  %v478 = vunpack.c.l.b16 %v406
  %v479 = vunpack.c.l.b16 %v407
  %v480 = vunpack.c.l.b16 %v408
  %v481 = vunpack.c.l.b16 %v409
  %v482 = vunpack.c.l.b16 %v410
  %v483 = vunpack.c.l.b16 %v411
  %v484 = vunpack.c.l.b16 %v412
  %v485 = vunpack.c.l.b16 %v413
  %v486 = vunpack.c.l.b16 %v414
  %v487 = vunpack.c.l.b16 %v415
  %v488 = vunpack.c.l.b16 %v416
  %v489 = vunpack.c.l.b16 %v417
  %v490 = vunpack.c.l.b16 %v418
  %v491 = vunpack.c.l.b16 %v419
  %v492 = vunpack.c.l.b16 %v420
  %v493 = vunpack.c.l.b16 %v421
  %v494 = vunpack.c.l.b16 %v422
  %v495 = vunpack.c.l.b16 %v423
  %v496 = vunpack.c.l.b16 %v424
  %v497 = vunpack.c.l.b16 %v425
  %v498 = vunpack.c.l.b16 %v426
  %v499 = vunpack.c.l.b16 %v427
  %v500 = vunpack.c.l.b16 %v428
  %v501 = vunpack.c.l.b16 %v429
  %v502 = vunpack.c.l.b16 %v430
  %v503 = vunpack.c.l.b16 %v431
  %v504 = vunpack.c.l.b16 %v432
  %v505 = vunpack.c.l.b16 %v433
  %v506 = vunpack.c.l.b16 %v434
  %v507 = vunpack.c.l.b16 %v435
  %v508 = vunpack.c.l.b16 %v436
  %v509 = vpack.c.b16 %v474, %v473
  %v510 = vpack.c.b16 %v476, %v475
  %v511 = vpack.c.b16 %v478, %v477
  %v512 = vpack.c.b16 %v480, %v479
  %v513 = vpack.c.b16 %v482, %v481
  %v514 = vpack.c.b16 %v484, %v483
  %v515 = vpack.c.b16 %v486, %v485
  %v516 = vpack.c.b16 %v488, %v487
  %v517 = vpack.c.b16 %v490, %v489
  %v518 = vpack.c.b16 %v492, %v491
  %v519 = vpack.c.b16 %v494, %v493
  %v520 = vpack.c.b16 %v496, %v495
  %v521 = vpack.c.b16 %v498, %v497
  %v522 = vpack.c.b16 %v500, %v499
  %v523 = vpack.c.b16 %v502, %v501
  %v524 = vpack.c.b16 %v504, %v503
  %v525 = vpack.c.b16 %v506, %v505
  %v526 = vpack.c.b16 %v508, %v507
  %545 = vmatprep.subr.bf16.mxu0 0
  %546 = vmatpush1.bf16.msra.mxu0 %v214
  %547 = vmatprep.subr.bf16.mxu0 0
  %548 = vmatpush1.bf16.msra.mxu0 %v213
  %549 = vmatprep.subr.bf16.mxu0 0
  %550 = vmatpush1.bf16.msra.mxu0 %v212
  %551 = vmatprep.subr.bf16.mxu0 0
  %552 = vmatpush1.bf16.msra.mxu0 %v211
  %553 = vmatprep.subr.bf16.mxu0 0
  %554 = vmatpush1.bf16.msra.mxu0 %v210
  %555 = vmatprep.subr.bf16.mxu0 0
  %556 = vmatpush1.bf16.msra.mxu0 %v209
  %557 = vmatprep.subr.bf16.mxu0 0
  %558 = vmatpush1.bf16.msra.mxu0 %v208
  %559 = vmatprep.subr.bf16.mxu0 0
  %560 = vmatpush1.bf16.msra.mxu0 %v207
  %561 = vmatprep.subr.bf16.mxu0 0
  %562 = vmatpush2.bf16.msra.mxu0 0
  %563 = vmatprep.subr.bf16.mxu0 0
  %564 = vmatpush2.bf16.msra.mxu0 0
  %565 = vmatprep.subr.bf16.mxu0 0
  %566 = vmatpush2.bf16.msra.mxu0 0
  %567 = vmatprep.subr.bf16.mxu0 0
  %568 = vmatpush2.bf16.msra.mxu0 0
  %569 = vmatprep.subr.bf16.mxu0 0
  %570 = vmatpush2.bf16.msra.mxu0 0
  %571 = vmatprep.subr.bf16.mxu0 0
  %572 = vmatpush2.bf16.msra.mxu0 0
  %573 = vmatprep.subr.bf16.mxu0 0
  %574 = vmatpush2.bf16.msra.mxu0 0
  %575 = vmatprep.subr.bf16.mxu0 0
  %576 = vmatpush2.bf16.msra.mxu0 0
  %577 = vmatprep.mubr.bf16.mxu0 0
  %578 = vmatmul.mubr.bf16.gmra.mxu0 %v509
  %v579 = vpop.f32.mrf.mxu0
  %v580 = vadd.f32 0.0, %v579
  %v581 = vpop.f32.mrf.mxu0
  %v582 = vpop.f32.mrf.mxu0
  %v583 = vadd.f32 0.0, %v582
  %v584 = vpop.f32.mrf.mxu0
  %585 = vmatprep.mubr.bf16.mxu0 0
  %586 = vmatmul.mubr.bf16.gmra.mxu0 %v510
  %v587 = vpop.f32.mrf.mxu0
  %v588 = vadd.f32 0.0, %v587
  %v589 = vpop.f32.mrf.mxu0
  %v590 = vpop.f32.mrf.mxu0
  %v591 = vadd.f32 0.0, %v590
  %v592 = vpop.f32.mrf.mxu0
  %593 = vmatprep.mubr.bf16.mxu0 0
  %594 = vmatmul.mubr.bf16.gmra.mxu0 %v511
  %v595 = vpop.f32.mrf.mxu0
  %v596 = vadd.f32 0.0, %v595
  %v597 = vpop.f32.mrf.mxu0
  %v598 = vpop.f32.mrf.mxu0
  %v599 = vadd.f32 0.0, %v598
  %v600 = vpop.f32.mrf.mxu0
  %601 = vmatprep.mubr.bf16.mxu0 0
  %602 = vmatmul.mubr.bf16.gmra.mxu0 %v512
  %v603 = vpop.f32.mrf.mxu0
  %v604 = vadd.f32 0.0, %v603
  %v605 = vpop.f32.mrf.mxu0
  %v606 = vpop.f32.mrf.mxu0
  %v607 = vadd.f32 0.0, %v606
  %v608 = vpop.f32.mrf.mxu0
  %609 = vmatprep.mubr.bf16.mxu0 0
  %610 = vmatmul.mubr.bf16.gmra.mxu0 %v513
  %v611 = vpop.f32.mrf.mxu0
  %v612 = vadd.f32 0.0, %v611
  %v613 = vpop.f32.mrf.mxu0
  %v614 = vpop.f32.mrf.mxu0
  %v615 = vadd.f32 0.0, %v614
  %v616 = vpop.f32.mrf.mxu0
  %617 = vmatprep.mubr.bf16.mxu0 0
  %618 = vmatmul.mubr.bf16.gmra.mxu0 %v514
  %v619 = vpop.f32.mrf.mxu0
  %v620 = vadd.f32 0.0, %v619
  %v621 = vpop.f32.mrf.mxu0
  %v622 = vpop.f32.mrf.mxu0
  %v623 = vadd.f32 0.0, %v622
  %v624 = vpop.f32.mrf.mxu0
  %625 = vmatprep.mubr.bf16.mxu0 0
  %626 = vmatmul.mubr.bf16.gmra.mxu0 %v515
  %v627 = vpop.f32.mrf.mxu0
  %v628 = vadd.f32 0.0, %v627
  %v629 = vpop.f32.mrf.mxu0
  %v630 = vpop.f32.mrf.mxu0
  %v631 = vadd.f32 0.0, %v630
  %v632 = vpop.f32.mrf.mxu0
  %633 = vmatprep.mubr.bf16.mxu0 0
  %634 = vmatmul.mubr.bf16.gmra.mxu0 %v516
  %v635 = vpop.f32.mrf.mxu0
  %v636 = vadd.f32 0.0, %v635
  %v637 = vpop.f32.mrf.mxu0
  %v638 = vpop.f32.mrf.mxu0
  %v639 = vadd.f32 0.0, %v638
  %v640 = vpop.f32.mrf.mxu0
  %641 = vmatprep.mubr.bf16.mxu0 0
  %642 = vmatmul.mubr.bf16.gmra.mxu0 %v517
  %v643 = vpop.f32.mrf.mxu0
  %v644 = vadd.f32 0.0, %v643
  %v645 = vpop.f32.mrf.mxu0
  %v646 = vpop.f32.mrf.mxu0
  %v647 = vadd.f32 0.0, %v646
  %v648 = vpop.f32.mrf.mxu0
  %649 = vmatprep.mubr.bf16.mxu0 0
  %650 = vmatmul.mubr.bf16.gmra.mxu0 %v518
  %v651 = vpop.f32.mrf.mxu0
  %v652 = vadd.f32 0.0, %v651
  %v653 = vpop.f32.mrf.mxu0
  %v654 = vpop.f32.mrf.mxu0
  %v655 = vadd.f32 0.0, %v654
  %v656 = vpop.f32.mrf.mxu0
  %657 = vmatprep.mubr.bf16.mxu0 0
  %658 = vmatmul.mubr.bf16.gmra.mxu0 %v519
  %v659 = vpop.f32.mrf.mxu0
  %v660 = vadd.f32 0.0, %v659
  %v661 = vpop.f32.mrf.mxu0
  %v662 = vpop.f32.mrf.mxu0
  %v663 = vadd.f32 0.0, %v662
  %v664 = vpop.f32.mrf.mxu0
  %665 = vmatprep.mubr.bf16.mxu0 0
  %666 = vmatmul.mubr.bf16.gmra.mxu0 %v520
  %v667 = vpop.f32.mrf.mxu0
  %v668 = vadd.f32 0.0, %v667
  %v669 = vpop.f32.mrf.mxu0
  %v670 = vpop.f32.mrf.mxu0
  %v671 = vadd.f32 0.0, %v670
  %v672 = vpop.f32.mrf.mxu0
  %673 = vmatprep.mubr.bf16.mxu0 0
  %674 = vmatmul.mubr.bf16.gmra.mxu0 %v521
  %v675 = vpop.f32.mrf.mxu0
  %v676 = vadd.f32 0.0, %v675
  %v677 = vpop.f32.mrf.mxu0
  %v678 = vpop.f32.mrf.mxu0
  %v679 = vadd.f32 0.0, %v678
  %v680 = vpop.f32.mrf.mxu0
  %681 = vmatprep.mubr.bf16.mxu0 0
  %682 = vmatmul.mubr.bf16.gmra.mxu0 %v522
  %v683 = vpop.f32.mrf.mxu0
  %v684 = vadd.f32 0.0, %v683
  %v685 = vpop.f32.mrf.mxu0
  %v686 = vpop.f32.mrf.mxu0
  %v687 = vadd.f32 0.0, %v686
  %v688 = vpop.f32.mrf.mxu0
  %689 = vmatprep.mubr.bf16.mxu0 0
  %690 = vmatmul.mubr.bf16.gmra.mxu0 %v523
  %v691 = vpop.f32.mrf.mxu0
  %v692 = vadd.f32 0.0, %v691
  %v693 = vpop.f32.mrf.mxu0
  %v694 = vpop.f32.mrf.mxu0
  %v695 = vadd.f32 0.0, %v694
  %v696 = vpop.f32.mrf.mxu0
  %697 = vmatprep.mubr.bf16.mxu0 0
  %698 = vmatmul.mubr.bf16.gmra.mxu0 %v524
  %v699 = vpop.f32.mrf.mxu0
  %v700 = vadd.f32 0.0, %v699
  %v701 = vpop.f32.mrf.mxu0
  %v702 = vpop.f32.mrf.mxu0
  %v703 = vadd.f32 0.0, %v702
  %v704 = vpop.f32.mrf.mxu0
  %705 = vmatprep.mubr.bf16.mxu0 0
  %706 = vmatmul.mubr.bf16.gmra.mxu0 %v525
  %v707 = vpop.f32.mrf.mxu0
  %v708 = vadd.f32 0.0, %v707
  %v709 = vpop.f32.mrf.mxu0
  %v710 = vpop.f32.mrf.mxu0
  %v711 = vadd.f32 0.0, %v710
  %v712 = vpop.f32.mrf.mxu0
  %713 = vmatprep.mubr.bf16.mxu0 0
  %714 = vmatmul.mubr.bf16.gmra.mxu0 %v526
  %v715 = vpop.f32.mrf.mxu0
  %v716 = vadd.f32 0.0, %v715
  %v717 = vpop.f32.mrf.mxu0
  %v718 = vpop.f32.mrf.mxu0
  %v719 = vadd.f32 0.0, %v718
  %v720 = vpop.f32.mrf.mxu0
  %721 = vdwg.mxu0
  %v722 = vmax.f32 %v258, %v580
  %v723 = vmax.f32 %v261, %v583
  %v724 = vmax.f32 %v266, %v588
  %v725 = vmax.f32 %v269, %v591
  %v726 = vmax.f32 %v274, %v596
  %v727 = vmax.f32 %v277, %v599
  %v728 = vmax.f32 %v282, %v604
  %v729 = vmax.f32 %v285, %v607
  %v730 = vmax.f32 %v290, %v612
  %v731 = vmax.f32 %v293, %v615
  %v732 = vmax.f32 %v298, %v620
  %v733 = vmax.f32 %v301, %v623
  %v734 = vmax.f32 %v306, %v628
  %v735 = vmax.f32 %v309, %v631
  %v736 = vmax.f32 %v314, %v636
  %v737 = vmax.f32 %v317, %v639
  %v738 = vmax.f32 %v322, %v644
  %v739 = vmax.f32 %v325, %v647
  %v740 = vmax.f32 %v330, %v652
  %v741 = vmax.f32 %v333, %v655
  %v742 = vmax.f32 %v338, %v660
  %v743 = vmax.f32 %v341, %v663
  %v744 = vmax.f32 %v346, %v668
  %v745 = vmax.f32 %v349, %v671
  %v746 = vmax.f32 %v354, %v676
  %v747 = vmax.f32 %v357, %v679
  %v748 = vmax.f32 %v362, %v684
  %v749 = vmax.f32 %v365, %v687
  %v750 = vmax.f32 %v370, %v692
  %v751 = vmax.f32 %v373, %v695
  %v752 = vmax.f32 %v378, %v700
  %v753 = vmax.f32 %v381, %v703
  %v754 = vmax.f32 %v386, %v708
  %v755 = vmax.f32 %v389, %v711
  %v756 = vmax.f32 %v394, %v716
  %v757 = vmax.f32 %v397, %v719
  %s758 = scalar_lea.vmem %s0, 288
  %v759 = vld [vmem:[%s758] sm:$0xf]
  %v760 = vld [vmem:[%s758 + $0x4] sm:$0xf]
  %v761 = vld [vmem:[%s758 + $0x8] sm:$0xf]
  %v762 = vld [vmem:[%s758 + $0xc] sm:$0xf]
  %v763 = vld [vmem:[%s758 + $0x10] sm:$0xf]
  %v764 = vld [vmem:[%s758 + $0x14] sm:$0xf]
  %v765 = vld [vmem:[%s758 + $0x18] sm:$0xf]
  %v766 = vld [vmem:[%s758 + $0x1c] sm:$0xf]
  %v767 = vld [vmem:[%s758 + $0x20] sm:$0xf]
  %v768 = vld [vmem:[%s758 + $0x24] sm:$0xf]
  %v769 = vld [vmem:[%s758 + $0x28] sm:$0xf]
  %v770 = vld [vmem:[%s758 + $0x2c] sm:$0xf]
  %v771 = vld [vmem:[%s758 + $0x30] sm:$0xf]
  %v772 = vld [vmem:[%s758 + $0x34] sm:$0xf]
  %v773 = vld [vmem:[%s758 + $0x38] sm:$0xf]
  %v774 = vld [vmem:[%s758 + $0x3c] sm:$0xf]
  %v775 = vld [vmem:[%s758 + $0x40] sm:$0xf]
  %v776 = vld [vmem:[%s758 + $0x44] sm:$0xf]
  %v777 = vld [vmem:[%s758 + $0x48] sm:$0xf]
  %v778 = vld [vmem:[%s758 + $0x4c] sm:$0xf]
  %v779 = vld [vmem:[%s758 + $0x50] sm:$0xf]
  %v780 = vld [vmem:[%s758 + $0x54] sm:$0xf]
  %v781 = vld [vmem:[%s758 + $0x58] sm:$0xf]
  %v782 = vld [vmem:[%s758 + $0x5c] sm:$0xf]
  %v783 = vld [vmem:[%s758 + $0x60] sm:$0xf]
  %v784 = vld [vmem:[%s758 + $0x64] sm:$0xf]
  %v785 = vld [vmem:[%s758 + $0x68] sm:$0xf]
  %v786 = vld [vmem:[%s758 + $0x6c] sm:$0xf]
  %v787 = vld [vmem:[%s758 + $0x70] sm:$0xf]
  %v788 = vld [vmem:[%s758 + $0x74] sm:$0xf]
  %v789 = vld [vmem:[%s758 + $0x78] sm:$0xf]
  %v790 = vld [vmem:[%s758 + $0x7c] sm:$0xf]
  %v791 = vld [vmem:[%s758 + $0x80] sm:$0xf]
  %v792 = vld [vmem:[%s758 + $0x84] sm:$0xf]
  %v793 = vld [vmem:[%s758 + $0x88] sm:$0xf]
  %v794 = vld [vmem:[%s758 + $0x8c] sm:$0xf]
  %v831 = vunpack.c.l.b16 %v759
  %v832 = vunpack.c.l.b16 %v760
  %v833 = vunpack.c.l.b16 %v761
  %v834 = vunpack.c.l.b16 %v762
  %v835 = vunpack.c.l.b16 %v763
  %v836 = vunpack.c.l.b16 %v764
  %v837 = vunpack.c.l.b16 %v765
  %v838 = vunpack.c.l.b16 %v766
  %v839 = vunpack.c.l.b16 %v767
  %v840 = vunpack.c.l.b16 %v768
  %v841 = vunpack.c.l.b16 %v769
  %v842 = vunpack.c.l.b16 %v770
  %v843 = vunpack.c.l.b16 %v771
  %v844 = vunpack.c.l.b16 %v772
  %v845 = vunpack.c.l.b16 %v773
  %v846 = vunpack.c.l.b16 %v774
  %v847 = vunpack.c.l.b16 %v775
  %v848 = vunpack.c.l.b16 %v776
  %v849 = vunpack.c.l.b16 %v777
  %v850 = vunpack.c.l.b16 %v778
  %v851 = vunpack.c.l.b16 %v779
  %v852 = vunpack.c.l.b16 %v780
  %v853 = vunpack.c.l.b16 %v781
  %v854 = vunpack.c.l.b16 %v782
  %v855 = vunpack.c.l.b16 %v783
  %v856 = vunpack.c.l.b16 %v784
  %v857 = vunpack.c.l.b16 %v785
  %v858 = vunpack.c.l.b16 %v786
  %v859 = vunpack.c.l.b16 %v787
  %v860 = vunpack.c.l.b16 %v788
  %v861 = vunpack.c.l.b16 %v789
  %v862 = vunpack.c.l.b16 %v790
  %v863 = vunpack.c.l.b16 %v791
  %v864 = vunpack.c.l.b16 %v792
  %v865 = vunpack.c.l.b16 %v793
  %v866 = vunpack.c.l.b16 %v794
  %v867 = vpack.c.b16 %v832, %v831
  %v868 = vpack.c.b16 %v834, %v833
  %v869 = vpack.c.b16 %v836, %v835
  %v870 = vpack.c.b16 %v838, %v837
  %v871 = vpack.c.b16 %v840, %v839
  %v872 = vpack.c.b16 %v842, %v841
  %v873 = vpack.c.b16 %v844, %v843
  %v874 = vpack.c.b16 %v846, %v845
  %v875 = vpack.c.b16 %v848, %v847
  %v876 = vpack.c.b16 %v850, %v849
  %v877 = vpack.c.b16 %v852, %v851
  %v878 = vpack.c.b16 %v854, %v853
  %v879 = vpack.c.b16 %v856, %v855
  %v880 = vpack.c.b16 %v858, %v857
  %v881 = vpack.c.b16 %v860, %v859
  %v882 = vpack.c.b16 %v862, %v861
  %v883 = vpack.c.b16 %v864, %v863
  %v884 = vpack.c.b16 %v866, %v865
  %903 = vmatprep.subr.bf16.mxu0 0
  %904 = vmatpush1.bf16.msra.mxu0 %v214
  %905 = vmatprep.subr.bf16.mxu0 0
  %906 = vmatpush1.bf16.msra.mxu0 %v213
  %907 = vmatprep.subr.bf16.mxu0 0
  %908 = vmatpush1.bf16.msra.mxu0 %v212
  %909 = vmatprep.subr.bf16.mxu0 0
  %910 = vmatpush1.bf16.msra.mxu0 %v211
  %911 = vmatprep.subr.bf16.mxu0 0
  %912 = vmatpush1.bf16.msra.mxu0 %v210
  %913 = vmatprep.subr.bf16.mxu0 0
  %914 = vmatpush1.bf16.msra.mxu0 %v209
  %915 = vmatprep.subr.bf16.mxu0 0
  %916 = vmatpush1.bf16.msra.mxu0 %v208
  %917 = vmatprep.subr.bf16.mxu0 0
  %918 = vmatpush1.bf16.msra.mxu0 %v207
  %919 = vmatprep.subr.bf16.mxu0 0
  %920 = vmatpush2.bf16.msra.mxu0 0
  %921 = vmatprep.subr.bf16.mxu0 0
  %922 = vmatpush2.bf16.msra.mxu0 0
  %923 = vmatprep.subr.bf16.mxu0 0
  %924 = vmatpush2.bf16.msra.mxu0 0
  %925 = vmatprep.subr.bf16.mxu0 0
  %926 = vmatpush2.bf16.msra.mxu0 0
  %927 = vmatprep.subr.bf16.mxu0 0
  %928 = vmatpush2.bf16.msra.mxu0 0
  %929 = vmatprep.subr.bf16.mxu0 0
  %930 = vmatpush2.bf16.msra.mxu0 0
  %931 = vmatprep.subr.bf16.mxu0 0
  %932 = vmatpush2.bf16.msra.mxu0 0
  %933 = vmatprep.subr.bf16.mxu0 0
  %934 = vmatpush2.bf16.msra.mxu0 0
  %935 = vmatprep.mubr.bf16.mxu0 0
  %936 = vmatmul.mubr.bf16.gmra.mxu0 %v867
  %v937 = vpop.f32.mrf.mxu0
  %v938 = vadd.f32 0.0, %v937
  %v939 = vpop.f32.mrf.mxu0
  %v940 = vpop.f32.mrf.mxu0
  %v941 = vadd.f32 0.0, %v940
  %v942 = vpop.f32.mrf.mxu0
  %943 = vmatprep.mubr.bf16.mxu0 0
  %944 = vmatmul.mubr.bf16.gmra.mxu0 %v868
  %v945 = vpop.f32.mrf.mxu0
  %v946 = vadd.f32 0.0, %v945
  %v947 = vpop.f32.mrf.mxu0
  %v948 = vpop.f32.mrf.mxu0
  %v949 = vadd.f32 0.0, %v948
  %v950 = vpop.f32.mrf.mxu0
  %951 = vmatprep.mubr.bf16.mxu0 0
  %952 = vmatmul.mubr.bf16.gmra.mxu0 %v869
  %v953 = vpop.f32.mrf.mxu0
  %v954 = vadd.f32 0.0, %v953
  %v955 = vpop.f32.mrf.mxu0
  %v956 = vpop.f32.mrf.mxu0
  %v957 = vadd.f32 0.0, %v956
  %v958 = vpop.f32.mrf.mxu0
  %959 = vmatprep.mubr.bf16.mxu0 0
  %960 = vmatmul.mubr.bf16.gmra.mxu0 %v870
  %v961 = vpop.f32.mrf.mxu0
  %v962 = vadd.f32 0.0, %v961
  %v963 = vpop.f32.mrf.mxu0
  %v964 = vpop.f32.mrf.mxu0
  %v965 = vadd.f32 0.0, %v964
  %v966 = vpop.f32.mrf.mxu0
  %967 = vmatprep.mubr.bf16.mxu0 0
  %968 = vmatmul.mubr.bf16.gmra.mxu0 %v871
  %v969 = vpop.f32.mrf.mxu0
  %v970 = vadd.f32 0.0, %v969
  %v971 = vpop.f32.mrf.mxu0
  %v972 = vpop.f32.mrf.mxu0
  %v973 = vadd.f32 0.0, %v972
  %v974 = vpop.f32.mrf.mxu0
  %975 = vmatprep.mubr.bf16.mxu0 0
  %976 = vmatmul.mubr.bf16.gmra.mxu0 %v872
  %v977 = vpop.f32.mrf.mxu0
  %v978 = vadd.f32 0.0, %v977
  %v979 = vpop.f32.mrf.mxu0
  %v980 = vpop.f32.mrf.mxu0
  %v981 = vadd.f32 0.0, %v980
  %v982 = vpop.f32.mrf.mxu0
  %983 = vmatprep.mubr.bf16.mxu0 0
  %984 = vmatmul.mubr.bf16.gmra.mxu0 %v873
  %v985 = vpop.f32.mrf.mxu0
  %v986 = vadd.f32 0.0, %v985
  %v987 = vpop.f32.mrf.mxu0
  %v988 = vpop.f32.mrf.mxu0
  %v989 = vadd.f32 0.0, %v988
  %v990 = vpop.f32.mrf.mxu0
  %991 = vmatprep.mubr.bf16.mxu0 0
  %992 = vmatmul.mubr.bf16.gmra.mxu0 %v874
  %v993 = vpop.f32.mrf.mxu0
  %v994 = vadd.f32 0.0, %v993
  %v995 = vpop.f32.mrf.mxu0
  %v996 = vpop.f32.mrf.mxu0
  %v997 = vadd.f32 0.0, %v996
  %v998 = vpop.f32.mrf.mxu0
  %999 = vmatprep.mubr.bf16.mxu0 0
  %1000 = vmatmul.mubr.bf16.gmra.mxu0 %v875
  %v1001 = vpop.f32.mrf.mxu0
  %v1002 = vadd.f32 0.0, %v1001
  %v1003 = vpop.f32.mrf.mxu0
  %v1004 = vpop.f32.mrf.mxu0
  %v1005 = vadd.f32 0.0, %v1004
  %v1006 = vpop.f32.mrf.mxu0
  %1007 = vmatprep.mubr.bf16.mxu0 0
  %1008 = vmatmul.mubr.bf16.gmra.mxu0 %v876
  %v1009 = vpop.f32.mrf.mxu0
  %v1010 = vadd.f32 0.0, %v1009
  %v1011 = vpop.f32.mrf.mxu0
  %v1012 = vpop.f32.mrf.mxu0
  %v1013 = vadd.f32 0.0, %v1012
  %v1014 = vpop.f32.mrf.mxu0
  %1015 = vmatprep.mubr.bf16.mxu0 0
  %1016 = vmatmul.mubr.bf16.gmra.mxu0 %v877
  %v1017 = vpop.f32.mrf.mxu0
  %v1018 = vadd.f32 0.0, %v1017
  %v1019 = vpop.f32.mrf.mxu0
  %v1020 = vpop.f32.mrf.mxu0
  %v1021 = vadd.f32 0.0, %v1020
  %v1022 = vpop.f32.mrf.mxu0
  %1023 = vmatprep.mubr.bf16.mxu0 0
  %1024 = vmatmul.mubr.bf16.gmra.mxu0 %v878
  %v1025 = vpop.f32.mrf.mxu0
  %v1026 = vadd.f32 0.0, %v1025
  %v1027 = vpop.f32.mrf.mxu0
  %v1028 = vpop.f32.mrf.mxu0
  %v1029 = vadd.f32 0.0, %v1028
  %v1030 = vpop.f32.mrf.mxu0
  %1031 = vmatprep.mubr.bf16.mxu0 0
  %1032 = vmatmul.mubr.bf16.gmra.mxu0 %v879
  %v1033 = vpop.f32.mrf.mxu0
  %v1034 = vadd.f32 0.0, %v1033
  %v1035 = vpop.f32.mrf.mxu0
  %v1036 = vpop.f32.mrf.mxu0
  %v1037 = vadd.f32 0.0, %v1036
  %v1038 = vpop.f32.mrf.mxu0
  %1039 = vmatprep.mubr.bf16.mxu0 0
  %1040 = vmatmul.mubr.bf16.gmra.mxu0 %v880
  %v1041 = vpop.f32.mrf.mxu0
  %v1042 = vadd.f32 0.0, %v1041
  %v1043 = vpop.f32.mrf.mxu0
  %v1044 = vpop.f32.mrf.mxu0
  %v1045 = vadd.f32 0.0, %v1044
  %v1046 = vpop.f32.mrf.mxu0
  %1047 = vmatprep.mubr.bf16.mxu0 0
  %1048 = vmatmul.mubr.bf16.gmra.mxu0 %v881
  %v1049 = vpop.f32.mrf.mxu0
  %v1050 = vadd.f32 0.0, %v1049
  %v1051 = vpop.f32.mrf.mxu0
  %v1052 = vpop.f32.mrf.mxu0
  %v1053 = vadd.f32 0.0, %v1052
  %v1054 = vpop.f32.mrf.mxu0
  %1055 = vmatprep.mubr.bf16.mxu0 0
  %1056 = vmatmul.mubr.bf16.gmra.mxu0 %v882
  %v1057 = vpop.f32.mrf.mxu0
  %v1058 = vadd.f32 0.0, %v1057
  %v1059 = vpop.f32.mrf.mxu0
  %v1060 = vpop.f32.mrf.mxu0
  %v1061 = vadd.f32 0.0, %v1060
  %v1062 = vpop.f32.mrf.mxu0
  %1063 = vmatprep.mubr.bf16.mxu0 0
  %1064 = vmatmul.mubr.bf16.gmra.mxu0 %v883
  %v1065 = vpop.f32.mrf.mxu0
  %v1066 = vadd.f32 0.0, %v1065
  %v1067 = vpop.f32.mrf.mxu0
  %v1068 = vpop.f32.mrf.mxu0
  %v1069 = vadd.f32 0.0, %v1068
  %v1070 = vpop.f32.mrf.mxu0
  %1071 = vmatprep.mubr.bf16.mxu0 0
  %1072 = vmatmul.mubr.bf16.gmra.mxu0 %v884
  %v1073 = vpop.f32.mrf.mxu0
  %v1074 = vadd.f32 0.0, %v1073
  %v1075 = vpop.f32.mrf.mxu0
  %v1076 = vpop.f32.mrf.mxu0
  %v1077 = vadd.f32 0.0, %v1076
  %v1078 = vpop.f32.mrf.mxu0
  %1079 = vdwg.mxu0
  %v1080 = vmax.f32 %v722, %v938
  %v1081 = vmax.f32 %v723, %v941
  %v1082 = vmax.f32 %v724, %v946
  %v1083 = vmax.f32 %v725, %v949
  %v1084 = vmax.f32 %v726, %v954
  %v1085 = vmax.f32 %v727, %v957
  %v1086 = vmax.f32 %v728, %v962
  %v1087 = vmax.f32 %v729, %v965
  %v1088 = vmax.f32 %v730, %v970
  %v1089 = vmax.f32 %v731, %v973
  %v1090 = vmax.f32 %v732, %v978
  %v1091 = vmax.f32 %v733, %v981
  %v1092 = vmax.f32 %v734, %v986
  %v1093 = vmax.f32 %v735, %v989
  %v1094 = vmax.f32 %v736, %v994
  %v1095 = vmax.f32 %v737, %v997
  %v1096 = vmax.f32 %v738, %v1002
  %v1097 = vmax.f32 %v739, %v1005
  %v1098 = vmax.f32 %v740, %v1010
  %v1099 = vmax.f32 %v741, %v1013
  %v1100 = vmax.f32 %v742, %v1018
  %v1101 = vmax.f32 %v743, %v1021
  %v1102 = vmax.f32 %v744, %v1026
  %v1103 = vmax.f32 %v745, %v1029
  %v1104 = vmax.f32 %v746, %v1034
  %v1105 = vmax.f32 %v747, %v1037
  %v1106 = vmax.f32 %v748, %v1042
  %v1107 = vmax.f32 %v749, %v1045
  %v1108 = vmax.f32 %v750, %v1050
  %v1109 = vmax.f32 %v751, %v1053
  %v1110 = vmax.f32 %v752, %v1058
  %v1111 = vmax.f32 %v753, %v1061
  %v1112 = vmax.f32 %v754, %v1066
  %v1113 = vmax.f32 %v755, %v1069
  %v1114 = vmax.f32 %v756, %v1074
  %v1115 = vmax.f32 %v757, %v1077
  %s1116 = scalar_lea.vmem %s0, 432
  %v1117 = vld [vmem:[%s1116] sm:$0xf]
  %v1118 = vld [vmem:[%s1116 + $0x4] sm:$0xf]
  %v1119 = vld [vmem:[%s1116 + $0x8] sm:$0xf]
  %v1120 = vld [vmem:[%s1116 + $0xc] sm:$0xf]
  %v1121 = vld [vmem:[%s1116 + $0x10] sm:$0xf]
  %v1122 = vld [vmem:[%s1116 + $0x14] sm:$0xf]
  %v1123 = vld [vmem:[%s1116 + $0x18] sm:$0xf]
  %v1124 = vld [vmem:[%s1116 + $0x1c] sm:$0xf]
  %v1125 = vld [vmem:[%s1116 + $0x20] sm:$0xf]
  %v1126 = vld [vmem:[%s1116 + $0x24] sm:$0xf]
  %v1127 = vld [vmem:[%s1116 + $0x28] sm:$0xf]
  %v1128 = vld [vmem:[%s1116 + $0x2c] sm:$0xf]
  %v1129 = vld [vmem:[%s1116 + $0x30] sm:$0xf]
  %v1130 = vld [vmem:[%s1116 + $0x34] sm:$0xf]
  %v1131 = vld [vmem:[%s1116 + $0x38] sm:$0xf]
  %v1132 = vld [vmem:[%s1116 + $0x3c] sm:$0xf]
  %v1133 = vld [vmem:[%s1116 + $0x40] sm:$0xf]
  %v1134 = vld [vmem:[%s1116 + $0x44] sm:$0xf]
  %v1135 = vld [vmem:[%s1116 + $0x48] sm:$0xf]
  %v1136 = vld [vmem:[%s1116 + $0x4c] sm:$0xf]
  %v1137 = vld [vmem:[%s1116 + $0x50] sm:$0xf]
  %v1138 = vld [vmem:[%s1116 + $0x54] sm:$0xf]
  %v1139 = vld [vmem:[%s1116 + $0x58] sm:$0xf]
  %v1140 = vld [vmem:[%s1116 + $0x5c] sm:$0xf]
  %v1141 = vld [vmem:[%s1116 + $0x60] sm:$0xf]
  %v1142 = vld [vmem:[%s1116 + $0x64] sm:$0xf]
  %v1143 = vld [vmem:[%s1116 + $0x68] sm:$0xf]
  %v1144 = vld [vmem:[%s1116 + $0x6c] sm:$0xf]
  %v1145 = vld [vmem:[%s1116 + $0x70] sm:$0xf]
  %v1146 = vld [vmem:[%s1116 + $0x74] sm:$0xf]
  %v1147 = vld [vmem:[%s1116 + $0x78] sm:$0xf]
  %v1148 = vld [vmem:[%s1116 + $0x7c] sm:$0xf]
  %v1149 = vld [vmem:[%s1116 + $0x80] sm:$0xf]
  %v1150 = vld [vmem:[%s1116 + $0x84] sm:$0xf]
  %v1151 = vld [vmem:[%s1116 + $0x88] sm:$0xf]
  %v1152 = vld [vmem:[%s1116 + $0x8c] sm:$0xf]
  %v1189 = vunpack.c.l.b16 %v1117
  %v1190 = vunpack.c.l.b16 %v1118
  %v1191 = vunpack.c.l.b16 %v1119
  %v1192 = vunpack.c.l.b16 %v1120
  %v1193 = vunpack.c.l.b16 %v1121
  %v1194 = vunpack.c.l.b16 %v1122
  %v1195 = vunpack.c.l.b16 %v1123
  %v1196 = vunpack.c.l.b16 %v1124
  %v1197 = vunpack.c.l.b16 %v1125
  %v1198 = vunpack.c.l.b16 %v1126
  %v1199 = vunpack.c.l.b16 %v1127
  %v1200 = vunpack.c.l.b16 %v1128
  %v1201 = vunpack.c.l.b16 %v1129
  %v1202 = vunpack.c.l.b16 %v1130
  %v1203 = vunpack.c.l.b16 %v1131
  %v1204 = vunpack.c.l.b16 %v1132
  %v1205 = vunpack.c.l.b16 %v1133
  %v1206 = vunpack.c.l.b16 %v1134
  %v1207 = vunpack.c.l.b16 %v1135
  %v1208 = vunpack.c.l.b16 %v1136
  %v1209 = vunpack.c.l.b16 %v1137
  %v1210 = vunpack.c.l.b16 %v1138
  %v1211 = vunpack.c.l.b16 %v1139
  %v1212 = vunpack.c.l.b16 %v1140
  %v1213 = vunpack.c.l.b16 %v1141
  %v1214 = vunpack.c.l.b16 %v1142
  %v1215 = vunpack.c.l.b16 %v1143
  %v1216 = vunpack.c.l.b16 %v1144
  %v1217 = vunpack.c.l.b16 %v1145
  %v1218 = vunpack.c.l.b16 %v1146
  %v1219 = vunpack.c.l.b16 %v1147
  %v1220 = vunpack.c.l.b16 %v1148
  %v1221 = vunpack.c.l.b16 %v1149
  %v1222 = vunpack.c.l.b16 %v1150
  %v1223 = vunpack.c.l.b16 %v1151
  %v1224 = vunpack.c.l.b16 %v1152
  %v1225 = vpack.c.b16 %v1190, %v1189
  %v1226 = vpack.c.b16 %v1192, %v1191
  %v1227 = vpack.c.b16 %v1194, %v1193
  %v1228 = vpack.c.b16 %v1196, %v1195
  %v1229 = vpack.c.b16 %v1198, %v1197
  %v1230 = vpack.c.b16 %v1200, %v1199
  %v1231 = vpack.c.b16 %v1202, %v1201
  %v1232 = vpack.c.b16 %v1204, %v1203
  %v1233 = vpack.c.b16 %v1206, %v1205
  %v1234 = vpack.c.b16 %v1208, %v1207
  %v1235 = vpack.c.b16 %v1210, %v1209
  %v1236 = vpack.c.b16 %v1212, %v1211
  %v1237 = vpack.c.b16 %v1214, %v1213
  %v1238 = vpack.c.b16 %v1216, %v1215
  %v1239 = vpack.c.b16 %v1218, %v1217
  %v1240 = vpack.c.b16 %v1220, %v1219
  %v1241 = vpack.c.b16 %v1222, %v1221
  %v1242 = vpack.c.b16 %v1224, %v1223
  %1261 = vmatprep.subr.bf16.mxu0 0
  %1262 = vmatpush1.bf16.msra.mxu0 %v214
  %1263 = vmatprep.subr.bf16.mxu0 0
  %1264 = vmatpush1.bf16.msra.mxu0 %v213
  %1265 = vmatprep.subr.bf16.mxu0 0
  %1266 = vmatpush1.bf16.msra.mxu0 %v212
  %1267 = vmatprep.subr.bf16.mxu0 0
  %1268 = vmatpush1.bf16.msra.mxu0 %v211
  %1269 = vmatprep.subr.bf16.mxu0 0
  %1270 = vmatpush1.bf16.msra.mxu0 %v210
  %1271 = vmatprep.subr.bf16.mxu0 0
  %1272 = vmatpush1.bf16.msra.mxu0 %v209
  %1273 = vmatprep.subr.bf16.mxu0 0
  %1274 = vmatpush1.bf16.msra.mxu0 %v208
  %1275 = vmatprep.subr.bf16.mxu0 0
  %1276 = vmatpush1.bf16.msra.mxu0 %v207
  %1277 = vmatprep.subr.bf16.mxu0 0
  %1278 = vmatpush2.bf16.msra.mxu0 0
  %1279 = vmatprep.subr.bf16.mxu0 0
  %1280 = vmatpush2.bf16.msra.mxu0 0
  %1281 = vmatprep.subr.bf16.mxu0 0
  %1282 = vmatpush2.bf16.msra.mxu0 0
  %1283 = vmatprep.subr.bf16.mxu0 0
  %1284 = vmatpush2.bf16.msra.mxu0 0
  %1285 = vmatprep.subr.bf16.mxu0 0
  %1286 = vmatpush2.bf16.msra.mxu0 0
  %1287 = vmatprep.subr.bf16.mxu0 0
  %1288 = vmatpush2.bf16.msra.mxu0 0
  %1289 = vmatprep.subr.bf16.mxu0 0
  %1290 = vmatpush2.bf16.msra.mxu0 0
  %1291 = vmatprep.subr.bf16.mxu0 0
  %1292 = vmatpush2.bf16.msra.mxu0 0
  %1293 = vmatprep.mubr.bf16.mxu0 0
  %1294 = vmatmul.mubr.bf16.gmra.mxu0 %v1225
  %v1295 = vpop.f32.mrf.mxu0
  %v1296 = vadd.f32 0.0, %v1295
  %v1297 = vpop.f32.mrf.mxu0
  %v1298 = vpop.f32.mrf.mxu0
  %v1299 = vadd.f32 0.0, %v1298
  %v1300 = vpop.f32.mrf.mxu0
  %1301 = vmatprep.mubr.bf16.mxu0 0
  %1302 = vmatmul.mubr.bf16.gmra.mxu0 %v1226
  %v1303 = vpop.f32.mrf.mxu0
  %v1304 = vadd.f32 0.0, %v1303
  %v1305 = vpop.f32.mrf.mxu0
  %v1306 = vpop.f32.mrf.mxu0
  %v1307 = vadd.f32 0.0, %v1306
  %v1308 = vpop.f32.mrf.mxu0
  %1309 = vmatprep.mubr.bf16.mxu0 0
  %1310 = vmatmul.mubr.bf16.gmra.mxu0 %v1227
  %v1311 = vpop.f32.mrf.mxu0
  %v1312 = vadd.f32 0.0, %v1311
  %v1313 = vpop.f32.mrf.mxu0
  %v1314 = vpop.f32.mrf.mxu0
  %v1315 = vadd.f32 0.0, %v1314
  %v1316 = vpop.f32.mrf.mxu0
  %1317 = vmatprep.mubr.bf16.mxu0 0
  %1318 = vmatmul.mubr.bf16.gmra.mxu0 %v1228
  %v1319 = vpop.f32.mrf.mxu0
  %v1320 = vadd.f32 0.0, %v1319
  %v1321 = vpop.f32.mrf.mxu0
  %v1322 = vpop.f32.mrf.mxu0
  %v1323 = vadd.f32 0.0, %v1322
  %v1324 = vpop.f32.mrf.mxu0
  %1325 = vmatprep.mubr.bf16.mxu0 0
  %1326 = vmatmul.mubr.bf16.gmra.mxu0 %v1229
  %v1327 = vpop.f32.mrf.mxu0
  %v1328 = vadd.f32 0.0, %v1327
  %v1329 = vpop.f32.mrf.mxu0
  %v1330 = vpop.f32.mrf.mxu0
  %v1331 = vadd.f32 0.0, %v1330
  %v1332 = vpop.f32.mrf.mxu0
  %1333 = vmatprep.mubr.bf16.mxu0 0
  %1334 = vmatmul.mubr.bf16.gmra.mxu0 %v1230
  %v1335 = vpop.f32.mrf.mxu0
  %v1336 = vadd.f32 0.0, %v1335
  %v1337 = vpop.f32.mrf.mxu0
  %v1338 = vpop.f32.mrf.mxu0
  %v1339 = vadd.f32 0.0, %v1338
  %v1340 = vpop.f32.mrf.mxu0
  %1341 = vmatprep.mubr.bf16.mxu0 0
  %1342 = vmatmul.mubr.bf16.gmra.mxu0 %v1231
  %v1343 = vpop.f32.mrf.mxu0
  %v1344 = vadd.f32 0.0, %v1343
  %v1345 = vpop.f32.mrf.mxu0
  %v1346 = vpop.f32.mrf.mxu0
  %v1347 = vadd.f32 0.0, %v1346
  %v1348 = vpop.f32.mrf.mxu0
  %1349 = vmatprep.mubr.bf16.mxu0 0
  %1350 = vmatmul.mubr.bf16.gmra.mxu0 %v1232
  %v1351 = vpop.f32.mrf.mxu0
  %v1352 = vadd.f32 0.0, %v1351
  %v1353 = vpop.f32.mrf.mxu0
  %v1354 = vpop.f32.mrf.mxu0
  %v1355 = vadd.f32 0.0, %v1354
  %v1356 = vpop.f32.mrf.mxu0
  %1357 = vmatprep.mubr.bf16.mxu0 0
  %1358 = vmatmul.mubr.bf16.gmra.mxu0 %v1233
  %v1359 = vpop.f32.mrf.mxu0
  %v1360 = vadd.f32 0.0, %v1359
  %v1361 = vpop.f32.mrf.mxu0
  %v1362 = vpop.f32.mrf.mxu0
  %v1363 = vadd.f32 0.0, %v1362
  %v1364 = vpop.f32.mrf.mxu0
  %1365 = vmatprep.mubr.bf16.mxu0 0
  %1366 = vmatmul.mubr.bf16.gmra.mxu0 %v1234
  %v1367 = vpop.f32.mrf.mxu0
  %v1368 = vadd.f32 0.0, %v1367
  %v1369 = vpop.f32.mrf.mxu0
  %v1370 = vpop.f32.mrf.mxu0
  %v1371 = vadd.f32 0.0, %v1370
  %v1372 = vpop.f32.mrf.mxu0
  %1373 = vmatprep.mubr.bf16.mxu0 0
  %1374 = vmatmul.mubr.bf16.gmra.mxu0 %v1235
  %v1375 = vpop.f32.mrf.mxu0
  %v1376 = vadd.f32 0.0, %v1375
  %v1377 = vpop.f32.mrf.mxu0
  %v1378 = vpop.f32.mrf.mxu0
  %v1379 = vadd.f32 0.0, %v1378
  %v1380 = vpop.f32.mrf.mxu0
  %1381 = vmatprep.mubr.bf16.mxu0 0
  %1382 = vmatmul.mubr.bf16.gmra.mxu0 %v1236
  %v1383 = vpop.f32.mrf.mxu0
  %v1384 = vadd.f32 0.0, %v1383
  %v1385 = vpop.f32.mrf.mxu0
  %v1386 = vpop.f32.mrf.mxu0
  %v1387 = vadd.f32 0.0, %v1386
  %v1388 = vpop.f32.mrf.mxu0
  %1389 = vmatprep.mubr.bf16.mxu0 0
  %1390 = vmatmul.mubr.bf16.gmra.mxu0 %v1237
  %v1391 = vpop.f32.mrf.mxu0
  %v1392 = vadd.f32 0.0, %v1391
  %v1393 = vpop.f32.mrf.mxu0
  %v1394 = vpop.f32.mrf.mxu0
  %v1395 = vadd.f32 0.0, %v1394
  %v1396 = vpop.f32.mrf.mxu0
  %1397 = vmatprep.mubr.bf16.mxu0 0
  %1398 = vmatmul.mubr.bf16.gmra.mxu0 %v1238
  %v1399 = vpop.f32.mrf.mxu0
  %v1400 = vadd.f32 0.0, %v1399
  %v1401 = vpop.f32.mrf.mxu0
  %v1402 = vpop.f32.mrf.mxu0
  %v1403 = vadd.f32 0.0, %v1402
  %v1404 = vpop.f32.mrf.mxu0
  %1405 = vmatprep.mubr.bf16.mxu0 0
  %1406 = vmatmul.mubr.bf16.gmra.mxu0 %v1239
  %v1407 = vpop.f32.mrf.mxu0
  %v1408 = vadd.f32 0.0, %v1407
  %v1409 = vpop.f32.mrf.mxu0
  %v1410 = vpop.f32.mrf.mxu0
  %v1411 = vadd.f32 0.0, %v1410
  %v1412 = vpop.f32.mrf.mxu0
  %1413 = vmatprep.mubr.bf16.mxu0 0
  %1414 = vmatmul.mubr.bf16.gmra.mxu0 %v1240
  %v1415 = vpop.f32.mrf.mxu0
  %v1416 = vadd.f32 0.0, %v1415
  %v1417 = vpop.f32.mrf.mxu0
  %v1418 = vpop.f32.mrf.mxu0
  %v1419 = vadd.f32 0.0, %v1418
  %v1420 = vpop.f32.mrf.mxu0
  %1421 = vmatprep.mubr.bf16.mxu0 0
  %1422 = vmatmul.mubr.bf16.gmra.mxu0 %v1241
  %v1423 = vpop.f32.mrf.mxu0
  %v1424 = vadd.f32 0.0, %v1423
  %v1425 = vpop.f32.mrf.mxu0
  %v1426 = vpop.f32.mrf.mxu0
  %v1427 = vadd.f32 0.0, %v1426
  %v1428 = vpop.f32.mrf.mxu0
  %1429 = vmatprep.mubr.bf16.mxu0 0
  %1430 = vmatmul.mubr.bf16.gmra.mxu0 %v1242
  %v1431 = vpop.f32.mrf.mxu0
  %v1432 = vadd.f32 0.0, %v1431
  %v1433 = vpop.f32.mrf.mxu0
  %v1434 = vpop.f32.mrf.mxu0
  %v1435 = vadd.f32 0.0, %v1434
  %v1436 = vpop.f32.mrf.mxu0
  %1437 = vdwg.mxu0
  %v1438 = vmax.f32 %v1080, %v1296
  %v1439 = vmax.f32 %v1081, %v1299
  %v1440 = vmax.f32 %v1082, %v1304
  %v1441 = vmax.f32 %v1083, %v1307
  %v1442 = vmax.f32 %v1084, %v1312
  %v1443 = vmax.f32 %v1085, %v1315
  %v1444 = vmax.f32 %v1086, %v1320
  %v1445 = vmax.f32 %v1087, %v1323
  %v1446 = vmax.f32 %v1088, %v1328
  %v1447 = vmax.f32 %v1089, %v1331
  %v1448 = vmax.f32 %v1090, %v1336
  %v1449 = vmax.f32 %v1091, %v1339
  %v1450 = vmax.f32 %v1092, %v1344
  %v1451 = vmax.f32 %v1093, %v1347
  %v1452 = vmax.f32 %v1094, %v1352
  %v1453 = vmax.f32 %v1095, %v1355
  %v1454 = vmax.f32 %v1096, %v1360
  %v1455 = vmax.f32 %v1097, %v1363
  %v1456 = vmax.f32 %v1098, %v1368
  %v1457 = vmax.f32 %v1099, %v1371
  %v1458 = vmax.f32 %v1100, %v1376
  %v1459 = vmax.f32 %v1101, %v1379
  %v1460 = vmax.f32 %v1102, %v1384
  %v1461 = vmax.f32 %v1103, %v1387
  %v1462 = vmax.f32 %v1104, %v1392
  %v1463 = vmax.f32 %v1105, %v1395
  %v1464 = vmax.f32 %v1106, %v1400
  %v1465 = vmax.f32 %v1107, %v1403
  %v1466 = vmax.f32 %v1108, %v1408
  %v1467 = vmax.f32 %v1109, %v1411
  %v1468 = vmax.f32 %v1110, %v1416
  %v1469 = vmax.f32 %v1111, %v1419
  %v1470 = vmax.f32 %v1112, %v1424
  %v1471 = vmax.f32 %v1113, %v1427
  %v1472 = vmax.f32 %v1114, %v1432
  %v1473 = vmax.f32 %v1115, %v1435
  %v1474 = vld [vmem:[%s2] sm:$0x1]
  %v1476 = vlaneseq
  %v1477 = vshrl.u32 %v1476, 7
  %v1478 = vsub.s32 0, %v1477
  %v1479 = vrot.slane %v1474, %v1478
  %v1481 = vadd.f32 %v1438, %v1479
  %v1482 = vadd.f32 %v1439, %v1479
  %v1483 = vadd.f32 %v1440, %v1479
  %v1484 = vadd.f32 %v1441, %v1479
  %v1485 = vadd.f32 %v1442, %v1479
  %v1486 = vadd.f32 %v1443, %v1479
  %v1487 = vadd.f32 %v1444, %v1479
  %v1488 = vadd.f32 %v1445, %v1479
  %v1489 = vadd.f32 %v1446, %v1479
  %v1490 = vadd.f32 %v1447, %v1479
  %v1491 = vadd.f32 %v1448, %v1479
  %v1492 = vadd.f32 %v1449, %v1479
  %v1493 = vadd.f32 %v1450, %v1479
  %v1494 = vadd.f32 %v1451, %v1479
  %v1495 = vadd.f32 %v1452, %v1479
  %v1496 = vadd.f32 %v1453, %v1479
  %v1497 = vadd.f32 %v1454, %v1479
  %v1498 = vadd.f32 %v1455, %v1479
  %v1499 = vadd.f32 %v1456, %v1479
  %v1500 = vadd.f32 %v1457, %v1479
  %v1501 = vadd.f32 %v1458, %v1479
  %v1502 = vadd.f32 %v1459, %v1479
  %v1503 = vadd.f32 %v1460, %v1479
  %v1504 = vadd.f32 %v1461, %v1479
  %v1505 = vadd.f32 %v1462, %v1479
  %v1506 = vadd.f32 %v1463, %v1479
  %v1507 = vadd.f32 %v1464, %v1479
  %v1508 = vadd.f32 %v1465, %v1479
  %v1509 = vadd.f32 %v1466, %v1479
  %v1510 = vadd.f32 %v1467, %v1479
  %v1511 = vadd.f32 %v1468, %v1479
  %v1512 = vadd.f32 %v1469, %v1479
  %v1513 = vadd.f32 %v1470, %v1479
  %v1514 = vadd.f32 %v1471, %v1479
  %v1515 = vadd.f32 %v1472, %v1479
  %v1516 = vadd.f32 %v1473, %v1479
  %v1517 = vmax.f32 %v1481, 0.0
  %v1518 = vmax.f32 %v1482, 0.0
  %v1519 = vmax.f32 %v1483, 0.0
  %v1520 = vmax.f32 %v1484, 0.0
  %v1521 = vmax.f32 %v1485, 0.0
  %v1522 = vmax.f32 %v1486, 0.0
  %v1523 = vmax.f32 %v1487, 0.0
  %v1524 = vmax.f32 %v1488, 0.0
  %v1525 = vmax.f32 %v1489, 0.0
  %v1526 = vmax.f32 %v1490, 0.0
  %v1527 = vmax.f32 %v1491, 0.0
  %v1528 = vmax.f32 %v1492, 0.0
  %v1529 = vmax.f32 %v1493, 0.0
  %v1530 = vmax.f32 %v1494, 0.0
  %v1531 = vmax.f32 %v1495, 0.0
  %v1532 = vmax.f32 %v1496, 0.0
  %v1533 = vmax.f32 %v1497, 0.0
  %v1534 = vmax.f32 %v1498, 0.0
  %v1535 = vmax.f32 %v1499, 0.0
  %v1536 = vmax.f32 %v1500, 0.0
  %v1537 = vmax.f32 %v1501, 0.0
  %v1538 = vmax.f32 %v1502, 0.0
  %v1539 = vmax.f32 %v1503, 0.0
  %v1540 = vmax.f32 %v1504, 0.0
  %v1541 = vmax.f32 %v1505, 0.0
  %v1542 = vmax.f32 %v1506, 0.0
  %v1543 = vmax.f32 %v1507, 0.0
  %v1544 = vmax.f32 %v1508, 0.0
  %v1545 = vmax.f32 %v1509, 0.0
  %v1546 = vmax.f32 %v1510, 0.0
  %v1547 = vmax.f32 %v1511, 0.0
  %v1548 = vmax.f32 %v1512, 0.0
  %v1549 = vmax.f32 %v1513, 0.0
  %v1550 = vmax.f32 %v1514, 0.0
  %v1551 = vmax.f32 %v1515, 0.0
  %v1552 = vmax.f32 %v1516, 0.0
  %v1553 = vpack.c.bf16 %v1518, %v1517
  %v1554 = vpack.c.bf16 %v1520, %v1519
  %v1555 = vpack.c.bf16 %v1522, %v1521
  %v1556 = vpack.c.bf16 %v1524, %v1523
  %v1557 = vpack.c.bf16 %v1526, %v1525
  %v1558 = vpack.c.bf16 %v1528, %v1527
  %v1559 = vpack.c.bf16 %v1530, %v1529
  %v1560 = vpack.c.bf16 %v1532, %v1531
  %v1561 = vpack.c.bf16 %v1534, %v1533
  %v1562 = vpack.c.bf16 %v1536, %v1535
  %v1563 = vpack.c.bf16 %v1538, %v1537
  %v1564 = vpack.c.bf16 %v1540, %v1539
  %v1565 = vpack.c.bf16 %v1542, %v1541
  %v1566 = vpack.c.bf16 %v1544, %v1543
  %v1567 = vpack.c.bf16 %v1546, %v1545
  %v1568 = vpack.c.bf16 %v1548, %v1547
  %v1569 = vpack.c.bf16 %v1550, %v1549
  %v1570 = vpack.c.bf16 %v1552, %v1551
  %v1589 = vunpack.c.l.b16 %v1553
  %v1590 = vunpack.c.h.b16 %v1553
  %v1591 = vunpack.c.l.b16 %v1554
  %v1592 = vunpack.c.h.b16 %v1554
  %v1593 = vunpack.c.l.b16 %v1555
  %v1594 = vunpack.c.h.b16 %v1555
  %v1595 = vunpack.c.l.b16 %v1556
  %v1596 = vunpack.c.h.b16 %v1556
  %v1597 = vunpack.c.l.b16 %v1557
  %v1598 = vunpack.c.h.b16 %v1557
  %v1599 = vunpack.c.l.b16 %v1558
  %v1600 = vunpack.c.h.b16 %v1558
  %v1601 = vunpack.c.l.b16 %v1559
  %v1602 = vunpack.c.h.b16 %v1559
  %v1603 = vunpack.c.l.b16 %v1560
  %v1604 = vunpack.c.h.b16 %v1560
  %v1605 = vunpack.c.l.b16 %v1561
  %v1606 = vunpack.c.h.b16 %v1561
  %v1607 = vunpack.c.l.b16 %v1562
  %v1608 = vunpack.c.h.b16 %v1562
  %v1609 = vunpack.c.l.b16 %v1563
  %v1610 = vunpack.c.h.b16 %v1563
  %v1611 = vunpack.c.l.b16 %v1564
  %v1612 = vunpack.c.h.b16 %v1564
  %v1613 = vunpack.c.l.b16 %v1565
  %v1614 = vunpack.c.h.b16 %v1565
  %v1615 = vunpack.c.l.b16 %v1566
  %v1616 = vunpack.c.h.b16 %v1566
  %v1617 = vunpack.c.l.b16 %v1567
  %v1618 = vunpack.c.h.b16 %v1567
  %v1619 = vunpack.c.l.b16 %v1568
  %v1620 = vunpack.c.h.b16 %v1568
  %v1621 = vunpack.c.l.b16 %v1569
  %v1622 = vunpack.c.h.b16 %v1569
  %v1623 = vunpack.c.l.b16 %v1570
  %v1624 = vunpack.c.h.b16 %v1570
  %v1625 = vpack.c.b16 %v1589, %v1589
  %v1626 = vpack.c.b16 %v1590, %v1590
  %v1627 = vpack.c.b16 %v1591, %v1591
  %v1628 = vpack.c.b16 %v1592, %v1592
  %v1629 = vpack.c.b16 %v1593, %v1593
  %v1630 = vpack.c.b16 %v1594, %v1594
  %v1631 = vpack.c.b16 %v1595, %v1595
  %v1632 = vpack.c.b16 %v1596, %v1596
  %v1633 = vpack.c.b16 %v1597, %v1597
  %v1634 = vpack.c.b16 %v1598, %v1598
  %v1635 = vpack.c.b16 %v1599, %v1599
  %v1636 = vpack.c.b16 %v1600, %v1600
  %v1637 = vpack.c.b16 %v1601, %v1601
  %v1638 = vpack.c.b16 %v1602, %v1602
  %v1639 = vpack.c.b16 %v1603, %v1603
  %v1640 = vpack.c.b16 %v1604, %v1604
  %v1641 = vpack.c.b16 %v1605, %v1605
  %v1642 = vpack.c.b16 %v1606, %v1606
  %v1643 = vpack.c.b16 %v1607, %v1607
  %v1644 = vpack.c.b16 %v1608, %v1608
  %v1645 = vpack.c.b16 %v1609, %v1609
  %v1646 = vpack.c.b16 %v1610, %v1610
  %v1647 = vpack.c.b16 %v1611, %v1611
  %v1648 = vpack.c.b16 %v1612, %v1612
  %v1649 = vpack.c.b16 %v1613, %v1613
  %v1650 = vpack.c.b16 %v1614, %v1614
  %v1651 = vpack.c.b16 %v1615, %v1615
  %v1652 = vpack.c.b16 %v1616, %v1616
  %v1653 = vpack.c.b16 %v1617, %v1617
  %v1654 = vpack.c.b16 %v1618, %v1618
  %v1655 = vpack.c.b16 %v1619, %v1619
  %v1656 = vpack.c.b16 %v1620, %v1620
  %v1657 = vpack.c.b16 %v1621, %v1621
  %v1658 = vpack.c.b16 %v1622, %v1622
  %v1659 = vpack.c.b16 %v1623, %v1623
  %v1660 = vpack.c.b16 %v1624, %v1624
  %vm1697 = vcmask 60416
  %1698 = vst.msk [vmem:[%s3] sm:$0xf] %vm1697, %v1625
  %1699 = vst.msk [vmem:[%s3 + $0x4] sm:$0xf] %vm1697, %v1626
  %1700 = vst.msk [vmem:[%s3 + $0x8] sm:$0xf] %vm1697, %v1627
  %1701 = vst.msk [vmem:[%s3 + $0xc] sm:$0xf] %vm1697, %v1628
  %1702 = vst.msk [vmem:[%s3 + $0x10] sm:$0xf] %vm1697, %v1629
  %1703 = vst.msk [vmem:[%s3 + $0x14] sm:$0xf] %vm1697, %v1630
  %1704 = vst.msk [vmem:[%s3 + $0x18] sm:$0xf] %vm1697, %v1631
  %1705 = vst.msk [vmem:[%s3 + $0x1c] sm:$0xf] %vm1697, %v1632
  %1706 = vst.msk [vmem:[%s3 + $0x20] sm:$0xf] %vm1697, %v1633
  %1707 = vst.msk [vmem:[%s3 + $0x24] sm:$0xf] %vm1697, %v1634
  %1708 = vst.msk [vmem:[%s3 + $0x28] sm:$0xf] %vm1697, %v1635
  %1709 = vst.msk [vmem:[%s3 + $0x2c] sm:$0xf] %vm1697, %v1636
  %1710 = vst.msk [vmem:[%s3 + $0x30] sm:$0xf] %vm1697, %v1637
  %1711 = vst.msk [vmem:[%s3 + $0x34] sm:$0xf] %vm1697, %v1638
  %1712 = vst.msk [vmem:[%s3 + $0x38] sm:$0xf] %vm1697, %v1639
  %1713 = vst.msk [vmem:[%s3 + $0x3c] sm:$0xf] %vm1697, %v1640
  %1714 = vst.msk [vmem:[%s3 + $0x40] sm:$0xf] %vm1697, %v1641
  %1715 = vst.msk [vmem:[%s3 + $0x44] sm:$0xf] %vm1697, %v1642
  %1716 = vst.msk [vmem:[%s3 + $0x48] sm:$0xf] %vm1697, %v1643
  %1717 = vst.msk [vmem:[%s3 + $0x4c] sm:$0xf] %vm1697, %v1644
  %1718 = vst.msk [vmem:[%s3 + $0x50] sm:$0xf] %vm1697, %v1645
  %1719 = vst.msk [vmem:[%s3 + $0x54] sm:$0xf] %vm1697, %v1646
  %1720 = vst.msk [vmem:[%s3 + $0x58] sm:$0xf] %vm1697, %v1647
  %1721 = vst.msk [vmem:[%s3 + $0x5c] sm:$0xf] %vm1697, %v1648
  %1722 = vst.msk [vmem:[%s3 + $0x60] sm:$0xf] %vm1697, %v1649
  %1723 = vst.msk [vmem:[%s3 + $0x64] sm:$0xf] %vm1697, %v1650
  %1724 = vst.msk [vmem:[%s3 + $0x68] sm:$0xf] %vm1697, %v1651
  %1725 = vst.msk [vmem:[%s3 + $0x6c] sm:$0xf] %vm1697, %v1652
  %1726 = vst.msk [vmem:[%s3 + $0x70] sm:$0xf] %vm1697, %v1653
  %1727 = vst.msk [vmem:[%s3 + $0x74] sm:$0xf] %vm1697, %v1654
  %1728 = vst.msk [vmem:[%s3 + $0x78] sm:$0xf] %vm1697, %v1655
  %1729 = vst.msk [vmem:[%s3 + $0x7c] sm:$0xf] %vm1697, %v1656
  %1730 = vst.msk [vmem:[%s3 + $0x80] sm:$0xf] %vm1697, %v1657
  %1731 = vst.msk [vmem:[%s3 + $0x84] sm:$0xf] %vm1697, %v1658
  %1732 = vst.msk [vmem:[%s3 + $0x88] sm:$0xf] %vm1697, %v1659
  %1733 = vst.msk [vmem:[%s3 + $0x8c] sm:$0xf] %vm1697, %v1660
  // Predicated region
  $region14: #{combine_forward.2} parent=0 // pred_check
    _
  $region15: #{combine_forward.2} parent=0 // pred_check_branch
    %1735 = sbr.rel (0) target = $region17
  $region16: #{combine_forward.2} parent=0 // pred_region
    _
  $region17: #{combine_forward.2} parent=0 // pred_fallthru
    _
  // Predicated region
  $region18: #{combine_forward.2} parent=0 // pred_check
    _
  $region19: #{combine_forward.2} parent=0 // pred_check_branch
    %1737 = sbr.rel (0) target = $region21
  $region20: #{combine_forward.2} parent=0 // pred_region
    _
  $region21: #{combine_forward.2} parent=0 // pred_fallthru
    _

// kernel: combine_forward.3
$region0: #{combine_forward.3}
  #allocation0 [shape = 'u32[]', space=smem, size = 0x4, offset = 0x4, fixed_abs, tag = 'smem constant byte address 0x4 - core index']
  #allocation1 [shape = 'u32[144,128]{1,0:T(1,128)}', space=vmem, size = 0x12000, scoped, tag = 'internal scratch']
  %s0 = inlined_call_operand.vmem [shape: bf16[4,256,32], index: 0, kind: input, shape index: {}]
  %s1 = inlined_call_operand.vmem [shape: bf16[24,256], index: 1, kind: input, shape index: {}]
  %s2 = inlined_call_operand.vmem [shape: f32[24,1], index: 2, kind: input, shape index: {}]
  %s3 = inlined_call_operand.vmem [shape: bf16[256,128], index: 3, kind: input, shape index: {}]
  %s4 = inlined_call_operand.vmem [shape: f32[1,128], index: 4, kind: input, shape index: {}]
  %s5 = inlined_call_operand.vmem [shape: bf16[128,21], index: 5, kind: input, shape index: {}]
  %s6 = inlined_call_operand.vmem [shape: f32[1,21], index: 6, kind: input, shape index: {}]
  %s7 = inlined_call_operand.vmem [shape: bf16[384,1024], index: 7, kind: input, shape index: {}]
  %s8 = inlined_call_operand.vmem [shape: f32[1,1024], index: 8, kind: input, shape index: {}]
  %s9 = inlined_call_operand.vmem [shape: bf16[256,1024], index: 9, kind: input, shape index: {}]
  %s10 = inlined_call_operand.vmem [shape: f32[1,1024], index: 10, kind: input, shape index: {}]
  %s11 = inlined_call_operand.vmem [shape: bf16[256,1024], index: 11, kind: input, shape index: {}]
  %s12 = inlined_call_operand.vmem [shape: f32[1,1024], index: 12, kind: input, shape index: {}]
  %s13 = inlined_call_operand.vmem [shape: bf16[256,128], index: 13, kind: input, shape index: {}]
  %s14 = inlined_call_operand.vmem [shape: f32[1,128], index: 14, kind: input, shape index: {}]
  %s15 = inlined_call_operand.hbm [shape: f32[1,128], index: 15, kind: output, shape index: {}]
  %s16 = sld [smem:[#allocation0]]
  $region70: #{combine_forward.3} parent=0
    _
  %s18 = ssub.s32 1, %s16
  %s19 = scalar_select 0, %s18, %s16
  $region1: #{combine_forward.3} parent=0
    #allocation2 [shape = 'u8[512]{0}', space=vmem, size = 0x400, scoped, tag = 'output window, operand 0, single buffered']
    #allocation3 [shape = 's32[1]{0}', space=sflag, size = 0x4, scoped, tag = 'scoped memory for combine_forward.3']
    %20 = vsyncpa [#allocation3], 0
    // Predicated region
    $region2: #{combine_forward.3} parent=1 // pred_check
      _
    $region3: #{combine_forward.3} parent=1 // pred_check_branch
      %22 = sbr.rel (0) target = $region5
    $region4: #{combine_forward.3} parent=1 // pred_region
      _
    $region5: #{combine_forward.3} parent=1 // pred_fallthru
      _
    // Predicated region
    $region6: #{combine_forward.3} parent=1 // pred_check
      _
    $region7: #{combine_forward.3} parent=1 // pred_check_branch
      %24 = sbr.rel (0) target = $region9
    $region8: #{combine_forward.3} parent=1 // pred_region
      _
    $region9: #{combine_forward.3} parent=1 // pred_fallthru
      _
    // Predicated region
    $region10: #{combine_forward.3} parent=1 // pred_check
      _
    $region11: #{combine_forward.3} parent=1 // pred_check_branch
      %26 = sbr.rel (0) target = $region13
    $region12: #{combine_forward.3} parent=1 // pred_region
      _
    $region13: #{combine_forward.3} parent=1 // pred_fallthru
      _
    // Predicated region
    $region14: #{combine_forward.3} parent=1 // pred_check
      _
    $region15: #{combine_forward.3} parent=1 // pred_check_branch
      %28 = sbr.rel (0) target = $region17
    $region16: #{combine_forward.3} parent=1 // pred_region
      _
    $region17: #{combine_forward.3} parent=1 // pred_fallthru
      _
    // Predicated region
    $region18: #{combine_forward.3} parent=1 // pred_check
      _
    $region19: #{combine_forward.3} parent=1 // pred_check_branch
      %30 = sbr.rel (0) target = $region21
    $region20: #{combine_forward.3} parent=1 // pred_region
      _
    $region21: #{combine_forward.3} parent=1 // pred_fallthru
      _
    // Predicated region
    $region22: #{combine_forward.3} parent=1 // pred_check
      _
    $region23: #{combine_forward.3} parent=1 // pred_check_branch
      %32 = sbr.rel (0) target = $region25
    $region24: #{combine_forward.3} parent=1 // pred_region
      _
    $region25: #{combine_forward.3} parent=1 // pred_fallthru
      _
    // Predicated region
    $region26: #{combine_forward.3} parent=1 // pred_check
      _
    $region27: #{combine_forward.3} parent=1 // pred_check_branch
      %34 = sbr.rel (0) target = $region29
    $region28: #{combine_forward.3} parent=1 // pred_region
      _
    $region29: #{combine_forward.3} parent=1 // pred_fallthru
      _
    // Predicated region
    $region30: #{combine_forward.3} parent=1 // pred_check
      _
    $region31: #{combine_forward.3} parent=1 // pred_check_branch
      %36 = sbr.rel (0) target = $region33
    $region32: #{combine_forward.3} parent=1 // pred_region
      _
    $region33: #{combine_forward.3} parent=1 // pred_fallthru
      _
    // Predicated region
    $region34: #{combine_forward.3} parent=1 // pred_check
      _
    $region35: #{combine_forward.3} parent=1 // pred_check_branch
      %38 = sbr.rel (0) target = $region37
    $region36: #{combine_forward.3} parent=1 // pred_region
      _
    $region37: #{combine_forward.3} parent=1 // pred_fallthru
      _
    // Predicated region
    $region38: #{combine_forward.3} parent=1 // pred_check
      _
    $region39: #{combine_forward.3} parent=1 // pred_check_branch
      %40 = sbr.rel (0) target = $region41
    $region40: #{combine_forward.3} parent=1 // pred_region
      _
    $region41: #{combine_forward.3} parent=1 // pred_fallthru
      _
    // Predicated region
    $region42: #{combine_forward.3} parent=1 // pred_check
      _
    $region43: #{combine_forward.3} parent=1 // pred_check_branch
      %42 = sbr.rel (0) target = $region45
    $region44: #{combine_forward.3} parent=1 // pred_region
      _
    $region45: #{combine_forward.3} parent=1 // pred_fallthru
      _
    // Predicated region
    $region46: #{combine_forward.3} parent=1 // pred_check
      _
    $region47: #{combine_forward.3} parent=1 // pred_check_branch
      %44 = sbr.rel (0) target = $region49
    $region48: #{combine_forward.3} parent=1 // pred_region
      _
    $region49: #{combine_forward.3} parent=1 // pred_fallthru
      _
    // Predicated region
    $region50: #{combine_forward.3} parent=1 // pred_check
      _
    $region51: #{combine_forward.3} parent=1 // pred_check_branch
      %46 = sbr.rel (0) target = $region53
    $region52: #{combine_forward.3} parent=1 // pred_region
      _
    $region53: #{combine_forward.3} parent=1 // pred_fallthru
      _
    // Predicated region
    $region54: #{combine_forward.3} parent=1 // pred_check
      _
    $region55: #{combine_forward.3} parent=1 // pred_check_branch
      %48 = sbr.rel (0) target = $region57
    $region56: #{combine_forward.3} parent=1 // pred_region
      _
    $region57: #{combine_forward.3} parent=1 // pred_fallthru
      _
    // Predicated region
    $region58: #{combine_forward.3} parent=1 // pred_check
      _
    $region59: #{combine_forward.3} parent=1 // pred_check_branch
      %50 = sbr.rel (0) target = $region61
    $region60: #{combine_forward.3} parent=1 // pred_region
      _
    $region61: #{combine_forward.3} parent=1 // pred_fallthru
      _
    %v52 = vld [vmem:[%s1] sm:$0xff]
    %v53 = vld [vmem:[%s1 + $0x8] sm:$0xff]
    %v54 = vld [vmem:[%s1 + $0x10] sm:$0xff]
    %v55 = vld [vmem:[%s0] sm:$0xf]
    %v56 = vld [vmem:[%s0 + $0x4] sm:$0xf]
    %v57 = vld [vmem:[%s0 + $0x8] sm:$0xf]
    %v58 = vld [vmem:[%s0 + $0xc] sm:$0xf]
    %v59 = vld [vmem:[%s0 + $0x10] sm:$0xf]
    %v60 = vld [vmem:[%s0 + $0x14] sm:$0xf]
    %v61 = vld [vmem:[%s0 + $0x18] sm:$0xf]
    %v62 = vld [vmem:[%s0 + $0x1c] sm:$0xf]
    %v63 = vld [vmem:[%s0 + $0x20] sm:$0xf]
    %v64 = vld [vmem:[%s0 + $0x24] sm:$0xf]
    %v65 = vld [vmem:[%s0 + $0x28] sm:$0xf]
    %v66 = vld [vmem:[%s0 + $0x2c] sm:$0xf]
    %v67 = vld [vmem:[%s0 + $0x30] sm:$0xf]
    %v68 = vld [vmem:[%s0 + $0x34] sm:$0xf]
    %v69 = vld [vmem:[%s0 + $0x38] sm:$0xf]
    %v70 = vld [vmem:[%s0 + $0x3c] sm:$0xf]
    %v71 = vld [vmem:[%s0 + $0x40] sm:$0xf]
    %v72 = vld [vmem:[%s0 + $0x44] sm:$0xf]
    %v73 = vld [vmem:[%s0 + $0x48] sm:$0xf]
    %v74 = vld [vmem:[%s0 + $0x4c] sm:$0xf]
    %v75 = vld [vmem:[%s0 + $0x50] sm:$0xf]
    %v76 = vld [vmem:[%s0 + $0x54] sm:$0xf]
    %v77 = vld [vmem:[%s0 + $0x58] sm:$0xf]
    %v78 = vld [vmem:[%s0 + $0x5c] sm:$0xf]
    %v79 = vld [vmem:[%s0 + $0x60] sm:$0xf]
    %v80 = vld [vmem:[%s0 + $0x64] sm:$0xf]
    %v81 = vld [vmem:[%s0 + $0x68] sm:$0xf]
    %v82 = vld [vmem:[%s0 + $0x6c] sm:$0xf]
    %v83 = vld [vmem:[%s0 + $0x70] sm:$0xf]
    %v84 = vld [vmem:[%s0 + $0x74] sm:$0xf]
    %v85 = vld [vmem:[%s0 + $0x78] sm:$0xf]
    %v86 = vld [vmem:[%s0 + $0x7c] sm:$0xf]
    %v90 = vunpack.c.l.b16 %v52
    %v91 = vunpack.c.h.b16 %v52
    %v92 = vunpack.c.l.b16 %v53
    %v93 = vunpack.c.h.b16 %v53
    %v94 = vunpack.c.l.b16 %v54
    %v95 = vunpack.c.h.b16 %v54
    %v96 = vpack.c.b16 %v92, %v90
    %v97 = vpack.c.b16 %v93, %v91
    %v98 = vpack.c.b16 %v94, %v94
    %v99 = vpack.c.b16 %v95, %v95
    %v136 = vunpack.c.l.b16 %v55
    %v137 = vunpack.c.l.b16 %v56
    %v138 = vunpack.c.l.b16 %v57
    %v139 = vunpack.c.l.b16 %v58
    %v140 = vunpack.c.l.b16 %v59
    %v141 = vunpack.c.l.b16 %v60
    %v142 = vunpack.c.l.b16 %v61
    %v143 = vunpack.c.l.b16 %v62
    %v144 = vunpack.c.l.b16 %v63
    %v145 = vunpack.c.l.b16 %v64
    %v146 = vunpack.c.l.b16 %v65
    %v147 = vunpack.c.l.b16 %v66
    %v148 = vunpack.c.l.b16 %v67
    %v149 = vunpack.c.l.b16 %v68
    %v150 = vunpack.c.l.b16 %v69
    %v151 = vunpack.c.l.b16 %v70
    %v152 = vunpack.c.l.b16 %v71
    %v153 = vunpack.c.l.b16 %v72
    %v154 = vunpack.c.l.b16 %v73
    %v155 = vunpack.c.l.b16 %v74
    %v156 = vunpack.c.l.b16 %v75
    %v157 = vunpack.c.l.b16 %v76
    %v158 = vunpack.c.l.b16 %v77
    %v159 = vunpack.c.l.b16 %v78
    %v160 = vunpack.c.l.b16 %v79
    %v161 = vunpack.c.l.b16 %v80
    %v162 = vunpack.c.l.b16 %v81
    %v163 = vunpack.c.l.b16 %v82
    %v164 = vunpack.c.l.b16 %v83
    %v165 = vunpack.c.l.b16 %v84
    %v166 = vunpack.c.l.b16 %v85
    %v167 = vunpack.c.l.b16 %v86
    %v168 = vpack.c.b16 %v137, %v136
    %v169 = vpack.c.b16 %v139, %v138
    %v170 = vpack.c.b16 %v141, %v140
    %v171 = vpack.c.b16 %v143, %v142
    %v172 = vpack.c.b16 %v145, %v144
    %v173 = vpack.c.b16 %v147, %v146
    %v174 = vpack.c.b16 %v149, %v148
    %v175 = vpack.c.b16 %v151, %v150
    %v176 = vpack.c.b16 %v153, %v152
    %v177 = vpack.c.b16 %v155, %v154
    %v178 = vpack.c.b16 %v157, %v156
    %v179 = vpack.c.b16 %v159, %v158
    %v180 = vpack.c.b16 %v161, %v160
    %v181 = vpack.c.b16 %v163, %v162
    %v182 = vpack.c.b16 %v165, %v164
    %v183 = vpack.c.b16 %v167, %v166
    %200 = vmatprep.subr.bf16.mxu0 0
    %201 = vmatpush1.bf16.msra.mxu0 %v175
    %202 = vmatprep.subr.bf16.mxu0 0
    %203 = vmatpush1.bf16.msra.mxu0 %v174
    %204 = vmatprep.subr.bf16.mxu0 0
    %205 = vmatpush1.bf16.msra.mxu0 %v173
    %206 = vmatprep.subr.bf16.mxu0 0
    %207 = vmatpush1.bf16.msra.mxu0 %v172
    %208 = vmatprep.subr.bf16.mxu0 0
    %209 = vmatpush1.bf16.msra.mxu0 %v171
    %210 = vmatprep.subr.bf16.mxu0 0
    %211 = vmatpush1.bf16.msra.mxu0 %v170
    %212 = vmatprep.subr.bf16.mxu0 0
    %213 = vmatpush1.bf16.msra.mxu0 %v169
    %214 = vmatprep.subr.bf16.mxu0 0
    %215 = vmatpush1.bf16.msra.mxu0 %v168
    %216 = vmatprep.subr.bf16.mxu0 0
    %217 = vmatpush2.bf16.msra.mxu0 %v183
    %218 = vmatprep.subr.bf16.mxu0 0
    %219 = vmatpush2.bf16.msra.mxu0 %v182
    %220 = vmatprep.subr.bf16.mxu0 0
    %221 = vmatpush2.bf16.msra.mxu0 %v181
    %222 = vmatprep.subr.bf16.mxu0 0
    %223 = vmatpush2.bf16.msra.mxu0 %v180
    %224 = vmatprep.subr.bf16.mxu0 0
    %225 = vmatpush2.bf16.msra.mxu0 %v179
    %226 = vmatprep.subr.bf16.mxu0 0
    %227 = vmatpush2.bf16.msra.mxu0 %v178
    %228 = vmatprep.subr.bf16.mxu0 0
    %229 = vmatpush2.bf16.msra.mxu0 %v177
    %230 = vmatprep.subr.bf16.mxu0 0
    %231 = vmatpush2.bf16.msra.mxu0 %v176
    %232 = vmatprep.mubr.bf16.mxu0 %v97
    %233 = vmatmul.mubr.bf16.gmra.mxu0 %v96
    %v234 = vpop.f32.mrf.mxu0
    %v235 = vadd.f32 0.0, %v234
    %v236 = vpop.f32.mrf.mxu0
    %v237 = vpop.f32.mrf.mxu0
    %v238 = vadd.f32 0.0, %v237
    %v239 = vpop.f32.mrf.mxu0
    %240 = vmatprep.mubr.bf16.mxu0 %v99
    %241 = vmatmul.mubr.bf16.gmra.mxu0 %v98
    %v242 = vpop.f32.mrf.mxu0
    %v243 = vadd.f32 0.0, %v242
    %v244 = vpop.f32.mrf.mxu0
    %v245 = vpop.f32.mrf.mxu0
    %v246 = vpop.f32.mrf.mxu0
    %247 = vdwg.mxu0
    %s248 = scalar_lea.vmem %s0, 128
    %v249 = vld [vmem:[%s248] sm:$0xf]
    %v250 = vld [vmem:[%s248 + $0x4] sm:$0xf]
    %v251 = vld [vmem:[%s248 + $0x8] sm:$0xf]
    %v252 = vld [vmem:[%s248 + $0xc] sm:$0xf]
    %v253 = vld [vmem:[%s248 + $0x10] sm:$0xf]
    %v254 = vld [vmem:[%s248 + $0x14] sm:$0xf]
    %v255 = vld [vmem:[%s248 + $0x18] sm:$0xf]
    %v256 = vld [vmem:[%s248 + $0x1c] sm:$0xf]
    %v257 = vld [vmem:[%s248 + $0x20] sm:$0xf]
    %v258 = vld [vmem:[%s248 + $0x24] sm:$0xf]
    %v259 = vld [vmem:[%s248 + $0x28] sm:$0xf]
    %v260 = vld [vmem:[%s248 + $0x2c] sm:$0xf]
    %v261 = vld [vmem:[%s248 + $0x30] sm:$0xf]
    %v262 = vld [vmem:[%s248 + $0x34] sm:$0xf]
    %v263 = vld [vmem:[%s248 + $0x38] sm:$0xf]
    %v264 = vld [vmem:[%s248 + $0x3c] sm:$0xf]
    %v265 = vld [vmem:[%s248 + $0x40] sm:$0xf]
    %v266 = vld [vmem:[%s248 + $0x44] sm:$0xf]
    %v267 = vld [vmem:[%s248 + $0x48] sm:$0xf]
    %v268 = vld [vmem:[%s248 + $0x4c] sm:$0xf]
    %v269 = vld [vmem:[%s248 + $0x50] sm:$0xf]
    %v270 = vld [vmem:[%s248 + $0x54] sm:$0xf]
    %v271 = vld [vmem:[%s248 + $0x58] sm:$0xf]
    %v272 = vld [vmem:[%s248 + $0x5c] sm:$0xf]
    %v273 = vld [vmem:[%s248 + $0x60] sm:$0xf]
    %v274 = vld [vmem:[%s248 + $0x64] sm:$0xf]
    %v275 = vld [vmem:[%s248 + $0x68] sm:$0xf]
    %v276 = vld [vmem:[%s248 + $0x6c] sm:$0xf]
    %v277 = vld [vmem:[%s248 + $0x70] sm:$0xf]
    %v278 = vld [vmem:[%s248 + $0x74] sm:$0xf]
    %v279 = vld [vmem:[%s248 + $0x78] sm:$0xf]
    %v280 = vld [vmem:[%s248 + $0x7c] sm:$0xf]
    %v313 = vunpack.c.l.b16 %v249
    %v314 = vunpack.c.l.b16 %v250
    %v315 = vunpack.c.l.b16 %v251
    %v316 = vunpack.c.l.b16 %v252
    %v317 = vunpack.c.l.b16 %v253
    %v318 = vunpack.c.l.b16 %v254
    %v319 = vunpack.c.l.b16 %v255
    %v320 = vunpack.c.l.b16 %v256
    %v321 = vunpack.c.l.b16 %v257
    %v322 = vunpack.c.l.b16 %v258
    %v323 = vunpack.c.l.b16 %v259
    %v324 = vunpack.c.l.b16 %v260
    %v325 = vunpack.c.l.b16 %v261
    %v326 = vunpack.c.l.b16 %v262
    %v327 = vunpack.c.l.b16 %v263
    %v328 = vunpack.c.l.b16 %v264
    %v329 = vunpack.c.l.b16 %v265
    %v330 = vunpack.c.l.b16 %v266
    %v331 = vunpack.c.l.b16 %v267
    %v332 = vunpack.c.l.b16 %v268
    %v333 = vunpack.c.l.b16 %v269
    %v334 = vunpack.c.l.b16 %v270
    %v335 = vunpack.c.l.b16 %v271
    %v336 = vunpack.c.l.b16 %v272
    %v337 = vunpack.c.l.b16 %v273
    %v338 = vunpack.c.l.b16 %v274
    %v339 = vunpack.c.l.b16 %v275
    %v340 = vunpack.c.l.b16 %v276
    %v341 = vunpack.c.l.b16 %v277
    %v342 = vunpack.c.l.b16 %v278
    %v343 = vunpack.c.l.b16 %v279
    %v344 = vunpack.c.l.b16 %v280
    %v345 = vpack.c.b16 %v314, %v313
    %v346 = vpack.c.b16 %v316, %v315
    %v347 = vpack.c.b16 %v318, %v317
    %v348 = vpack.c.b16 %v320, %v319
    %v349 = vpack.c.b16 %v322, %v321
    %v350 = vpack.c.b16 %v324, %v323
    %v351 = vpack.c.b16 %v326, %v325
    %v352 = vpack.c.b16 %v328, %v327
    %v353 = vpack.c.b16 %v330, %v329
    %v354 = vpack.c.b16 %v332, %v331
    %v355 = vpack.c.b16 %v334, %v333
    %v356 = vpack.c.b16 %v336, %v335
    %v357 = vpack.c.b16 %v338, %v337
    %v358 = vpack.c.b16 %v340, %v339
    %v359 = vpack.c.b16 %v342, %v341
    %v360 = vpack.c.b16 %v344, %v343
    %377 = vmatprep.subr.bf16.mxu0 0
    %378 = vmatpush1.bf16.msra.mxu0 %v352
    %379 = vmatprep.subr.bf16.mxu0 0
    %380 = vmatpush1.bf16.msra.mxu0 %v351
    %381 = vmatprep.subr.bf16.mxu0 0
    %382 = vmatpush1.bf16.msra.mxu0 %v350
    %383 = vmatprep.subr.bf16.mxu0 0
    %384 = vmatpush1.bf16.msra.mxu0 %v349
    %385 = vmatprep.subr.bf16.mxu0 0
    %386 = vmatpush1.bf16.msra.mxu0 %v348
    %387 = vmatprep.subr.bf16.mxu0 0
    %388 = vmatpush1.bf16.msra.mxu0 %v347
    %389 = vmatprep.subr.bf16.mxu0 0
    %390 = vmatpush1.bf16.msra.mxu0 %v346
    %391 = vmatprep.subr.bf16.mxu0 0
    %392 = vmatpush1.bf16.msra.mxu0 %v345
    %393 = vmatprep.subr.bf16.mxu0 0
    %394 = vmatpush2.bf16.msra.mxu0 %v360
    %395 = vmatprep.subr.bf16.mxu0 0
    %396 = vmatpush2.bf16.msra.mxu0 %v359
    %397 = vmatprep.subr.bf16.mxu0 0
    %398 = vmatpush2.bf16.msra.mxu0 %v358
    %399 = vmatprep.subr.bf16.mxu0 0
    %400 = vmatpush2.bf16.msra.mxu0 %v357
    %401 = vmatprep.subr.bf16.mxu0 0
    %402 = vmatpush2.bf16.msra.mxu0 %v356
    %403 = vmatprep.subr.bf16.mxu0 0
    %404 = vmatpush2.bf16.msra.mxu0 %v355
    %405 = vmatprep.subr.bf16.mxu0 0
    %406 = vmatpush2.bf16.msra.mxu0 %v354
    %407 = vmatprep.subr.bf16.mxu0 0
    %408 = vmatpush2.bf16.msra.mxu0 %v353
    %409 = vmatprep.mubr.bf16.mxu0 %v97
    %410 = vmatmul.mubr.bf16.gmra.mxu0 %v96
    %v411 = vpop.f32.mrf.mxu0
    %v412 = vadd.f32 0.0, %v411
    %v413 = vpop.f32.mrf.mxu0
    %v414 = vpop.f32.mrf.mxu0
    %v415 = vadd.f32 0.0, %v414
    %v416 = vpop.f32.mrf.mxu0
    %417 = vmatprep.mubr.bf16.mxu0 %v99
    %418 = vmatmul.mubr.bf16.gmra.mxu0 %v98
    %v419 = vpop.f32.mrf.mxu0
    %v420 = vadd.f32 0.0, %v419
    %v421 = vpop.f32.mrf.mxu0
    %v422 = vpop.f32.mrf.mxu0
    %v423 = vpop.f32.mrf.mxu0
    %424 = vdwg.mxu0
    %v425 = vmax.f32 %v235, %v412
    %v426 = vmax.f32 %v238, %v415
    %v427 = vmax.f32 %v243, %v420
    %s428 = scalar_lea.vmem %s0, 256
    %v429 = vld [vmem:[%s428] sm:$0xf]
    %v430 = vld [vmem:[%s428 + $0x4] sm:$0xf]
    %v431 = vld [vmem:[%s428 + $0x8] sm:$0xf]
    %v432 = vld [vmem:[%s428 + $0xc] sm:$0xf]
    %v433 = vld [vmem:[%s428 + $0x10] sm:$0xf]
    %v434 = vld [vmem:[%s428 + $0x14] sm:$0xf]
    %v435 = vld [vmem:[%s428 + $0x18] sm:$0xf]
    %v436 = vld [vmem:[%s428 + $0x1c] sm:$0xf]
    %v437 = vld [vmem:[%s428 + $0x20] sm:$0xf]
    %v438 = vld [vmem:[%s428 + $0x24] sm:$0xf]
    %v439 = vld [vmem:[%s428 + $0x28] sm:$0xf]
    %v440 = vld [vmem:[%s428 + $0x2c] sm:$0xf]
    %v441 = vld [vmem:[%s428 + $0x30] sm:$0xf]
    %v442 = vld [vmem:[%s428 + $0x34] sm:$0xf]
    %v443 = vld [vmem:[%s428 + $0x38] sm:$0xf]
    %v444 = vld [vmem:[%s428 + $0x3c] sm:$0xf]
    %v445 = vld [vmem:[%s428 + $0x40] sm:$0xf]
    %v446 = vld [vmem:[%s428 + $0x44] sm:$0xf]
    %v447 = vld [vmem:[%s428 + $0x48] sm:$0xf]
    %v448 = vld [vmem:[%s428 + $0x4c] sm:$0xf]
    %v449 = vld [vmem:[%s428 + $0x50] sm:$0xf]
    %v450 = vld [vmem:[%s428 + $0x54] sm:$0xf]
    %v451 = vld [vmem:[%s428 + $0x58] sm:$0xf]
    %v452 = vld [vmem:[%s428 + $0x5c] sm:$0xf]
    %v453 = vld [vmem:[%s428 + $0x60] sm:$0xf]
    %v454 = vld [vmem:[%s428 + $0x64] sm:$0xf]
    %v455 = vld [vmem:[%s428 + $0x68] sm:$0xf]
    %v456 = vld [vmem:[%s428 + $0x6c] sm:$0xf]
    %v457 = vld [vmem:[%s428 + $0x70] sm:$0xf]
    %v458 = vld [vmem:[%s428 + $0x74] sm:$0xf]
    %v459 = vld [vmem:[%s428 + $0x78] sm:$0xf]
    %v460 = vld [vmem:[%s428 + $0x7c] sm:$0xf]
    %v493 = vunpack.c.l.b16 %v429
    %v494 = vunpack.c.l.b16 %v430
    %v495 = vunpack.c.l.b16 %v431
    %v496 = vunpack.c.l.b16 %v432
    %v497 = vunpack.c.l.b16 %v433
    %v498 = vunpack.c.l.b16 %v434
    %v499 = vunpack.c.l.b16 %v435
    %v500 = vunpack.c.l.b16 %v436
    %v501 = vunpack.c.l.b16 %v437
    %v502 = vunpack.c.l.b16 %v438
    %v503 = vunpack.c.l.b16 %v439
    %v504 = vunpack.c.l.b16 %v440
    %v505 = vunpack.c.l.b16 %v441
    %v506 = vunpack.c.l.b16 %v442
    %v507 = vunpack.c.l.b16 %v443
    %v508 = vunpack.c.l.b16 %v444
    %v509 = vunpack.c.l.b16 %v445
    %v510 = vunpack.c.l.b16 %v446
    %v511 = vunpack.c.l.b16 %v447
    %v512 = vunpack.c.l.b16 %v448
    %v513 = vunpack.c.l.b16 %v449
    %v514 = vunpack.c.l.b16 %v450
    %v515 = vunpack.c.l.b16 %v451
    %v516 = vunpack.c.l.b16 %v452
    %v517 = vunpack.c.l.b16 %v453
    %v518 = vunpack.c.l.b16 %v454
    %v519 = vunpack.c.l.b16 %v455
    %v520 = vunpack.c.l.b16 %v456
    %v521 = vunpack.c.l.b16 %v457
    %v522 = vunpack.c.l.b16 %v458
    %v523 = vunpack.c.l.b16 %v459
    %v524 = vunpack.c.l.b16 %v460
    %v525 = vpack.c.b16 %v494, %v493
    %v526 = vpack.c.b16 %v496, %v495
    %v527 = vpack.c.b16 %v498, %v497
    %v528 = vpack.c.b16 %v500, %v499
    %v529 = vpack.c.b16 %v502, %v501
    %v530 = vpack.c.b16 %v504, %v503
    %v531 = vpack.c.b16 %v506, %v505
    %v532 = vpack.c.b16 %v508, %v507
    %v533 = vpack.c.b16 %v510, %v509
    %v534 = vpack.c.b16 %v512, %v511
    %v535 = vpack.c.b16 %v514, %v513
    %v536 = vpack.c.b16 %v516, %v515
    %v537 = vpack.c.b16 %v518, %v517
    %v538 = vpack.c.b16 %v520, %v519
    %v539 = vpack.c.b16 %v522, %v521
    %v540 = vpack.c.b16 %v524, %v523
    %557 = vmatprep.subr.bf16.mxu0 0
    %558 = vmatpush1.bf16.msra.mxu0 %v532
    %559 = vmatprep.subr.bf16.mxu0 0
    %560 = vmatpush1.bf16.msra.mxu0 %v531
    %561 = vmatprep.subr.bf16.mxu0 0
    %562 = vmatpush1.bf16.msra.mxu0 %v530
    %563 = vmatprep.subr.bf16.mxu0 0
    %564 = vmatpush1.bf16.msra.mxu0 %v529
    %565 = vmatprep.subr.bf16.mxu0 0
    %566 = vmatpush1.bf16.msra.mxu0 %v528
    %567 = vmatprep.subr.bf16.mxu0 0
    %568 = vmatpush1.bf16.msra.mxu0 %v527
    %569 = vmatprep.subr.bf16.mxu0 0
    %570 = vmatpush1.bf16.msra.mxu0 %v526
    %571 = vmatprep.subr.bf16.mxu0 0
    %572 = vmatpush1.bf16.msra.mxu0 %v525
    %573 = vmatprep.subr.bf16.mxu0 0
    %574 = vmatpush2.bf16.msra.mxu0 %v540
    %575 = vmatprep.subr.bf16.mxu0 0
    %576 = vmatpush2.bf16.msra.mxu0 %v539
    %577 = vmatprep.subr.bf16.mxu0 0
    %578 = vmatpush2.bf16.msra.mxu0 %v538
    %579 = vmatprep.subr.bf16.mxu0 0
    %580 = vmatpush2.bf16.msra.mxu0 %v537
    %581 = vmatprep.subr.bf16.mxu0 0
    %582 = vmatpush2.bf16.msra.mxu0 %v536
    %583 = vmatprep.subr.bf16.mxu0 0
    %584 = vmatpush2.bf16.msra.mxu0 %v535
    %585 = vmatprep.subr.bf16.mxu0 0
    %586 = vmatpush2.bf16.msra.mxu0 %v534
    %587 = vmatprep.subr.bf16.mxu0 0
    %588 = vmatpush2.bf16.msra.mxu0 %v533
    %589 = vmatprep.mubr.bf16.mxu0 %v97
    %590 = vmatmul.mubr.bf16.gmra.mxu0 %v96
    %v591 = vpop.f32.mrf.mxu0
    %v592 = vadd.f32 0.0, %v591
    %v593 = vpop.f32.mrf.mxu0
    %v594 = vpop.f32.mrf.mxu0
    %v595 = vadd.f32 0.0, %v594
    %v596 = vpop.f32.mrf.mxu0
    %597 = vmatprep.mubr.bf16.mxu0 %v99
    %598 = vmatmul.mubr.bf16.gmra.mxu0 %v98
    %v599 = vpop.f32.mrf.mxu0
    %v600 = vadd.f32 0.0, %v599
    %v601 = vpop.f32.mrf.mxu0
    %v602 = vpop.f32.mrf.mxu0
    %v603 = vpop.f32.mrf.mxu0
    %604 = vdwg.mxu0
    %v605 = vmax.f32 %v425, %v592
    %v606 = vmax.f32 %v426, %v595
    %v607 = vmax.f32 %v427, %v600
    %s608 = scalar_lea.vmem %s0, 384
    %v609 = vld [vmem:[%s608] sm:$0xf]
    %v610 = vld [vmem:[%s608 + $0x4] sm:$0xf]
    %v611 = vld [vmem:[%s608 + $0x8] sm:$0xf]
    %v612 = vld [vmem:[%s608 + $0xc] sm:$0xf]
    %v613 = vld [vmem:[%s608 + $0x10] sm:$0xf]
    %v614 = vld [vmem:[%s608 + $0x14] sm:$0xf]
    %v615 = vld [vmem:[%s608 + $0x18] sm:$0xf]
    %v616 = vld [vmem:[%s608 + $0x1c] sm:$0xf]
    %v617 = vld [vmem:[%s608 + $0x20] sm:$0xf]
    %v618 = vld [vmem:[%s608 + $0x24] sm:$0xf]
    %v619 = vld [vmem:[%s608 + $0x28] sm:$0xf]
    %v620 = vld [vmem:[%s608 + $0x2c] sm:$0xf]
    %v621 = vld [vmem:[%s608 + $0x30] sm:$0xf]
    %v622 = vld [vmem:[%s608 + $0x34] sm:$0xf]
    %v623 = vld [vmem:[%s608 + $0x38] sm:$0xf]
    %v624 = vld [vmem:[%s608 + $0x3c] sm:$0xf]
    %v625 = vld [vmem:[%s608 + $0x40] sm:$0xf]
    %v626 = vld [vmem:[%s608 + $0x44] sm:$0xf]
    %v627 = vld [vmem:[%s608 + $0x48] sm:$0xf]
    %v628 = vld [vmem:[%s608 + $0x4c] sm:$0xf]
    %v629 = vld [vmem:[%s608 + $0x50] sm:$0xf]
    %v630 = vld [vmem:[%s608 + $0x54] sm:$0xf]
    %v631 = vld [vmem:[%s608 + $0x58] sm:$0xf]
    %v632 = vld [vmem:[%s608 + $0x5c] sm:$0xf]
    %v633 = vld [vmem:[%s608 + $0x60] sm:$0xf]
    %v634 = vld [vmem:[%s608 + $0x64] sm:$0xf]
    %v635 = vld [vmem:[%s608 + $0x68] sm:$0xf]
    %v636 = vld [vmem:[%s608 + $0x6c] sm:$0xf]
    %v637 = vld [vmem:[%s608 + $0x70] sm:$0xf]
    %v638 = vld [vmem:[%s608 + $0x74] sm:$0xf]
    %v639 = vld [vmem:[%s608 + $0x78] sm:$0xf]
    %v640 = vld [vmem:[%s608 + $0x7c] sm:$0xf]
    %v673 = vunpack.c.l.b16 %v609
    %v674 = vunpack.c.l.b16 %v610
    %v675 = vunpack.c.l.b16 %v611
    %v676 = vunpack.c.l.b16 %v612
    %v677 = vunpack.c.l.b16 %v613
    %v678 = vunpack.c.l.b16 %v614
    %v679 = vunpack.c.l.b16 %v615
    %v680 = vunpack.c.l.b16 %v616
    %v681 = vunpack.c.l.b16 %v617
    %v682 = vunpack.c.l.b16 %v618
    %v683 = vunpack.c.l.b16 %v619
    %v684 = vunpack.c.l.b16 %v620
    %v685 = vunpack.c.l.b16 %v621
    %v686 = vunpack.c.l.b16 %v622
    %v687 = vunpack.c.l.b16 %v623
    %v688 = vunpack.c.l.b16 %v624
    %v689 = vunpack.c.l.b16 %v625
    %v690 = vunpack.c.l.b16 %v626
    %v691 = vunpack.c.l.b16 %v627
    %v692 = vunpack.c.l.b16 %v628
    %v693 = vunpack.c.l.b16 %v629
    %v694 = vunpack.c.l.b16 %v630
    %v695 = vunpack.c.l.b16 %v631
    %v696 = vunpack.c.l.b16 %v632
    %v697 = vunpack.c.l.b16 %v633
    %v698 = vunpack.c.l.b16 %v634
    %v699 = vunpack.c.l.b16 %v635
    %v700 = vunpack.c.l.b16 %v636
    %v701 = vunpack.c.l.b16 %v637
    %v702 = vunpack.c.l.b16 %v638
    %v703 = vunpack.c.l.b16 %v639
    %v704 = vunpack.c.l.b16 %v640
    %v705 = vpack.c.b16 %v674, %v673
    %v706 = vpack.c.b16 %v676, %v675
    %v707 = vpack.c.b16 %v678, %v677
    %v708 = vpack.c.b16 %v680, %v679
    %v709 = vpack.c.b16 %v682, %v681
    %v710 = vpack.c.b16 %v684, %v683
    %v711 = vpack.c.b16 %v686, %v685
    %v712 = vpack.c.b16 %v688, %v687
    %v713 = vpack.c.b16 %v690, %v689
    %v714 = vpack.c.b16 %v692, %v691
    %v715 = vpack.c.b16 %v694, %v693
    %v716 = vpack.c.b16 %v696, %v695
    %v717 = vpack.c.b16 %v698, %v697
    %v718 = vpack.c.b16 %v700, %v699
    %v719 = vpack.c.b16 %v702, %v701
    %v720 = vpack.c.b16 %v704, %v703
    %737 = vmatprep.subr.bf16.mxu0 0
    %738 = vmatpush1.bf16.msra.mxu0 %v712
    %739 = vmatprep.subr.bf16.mxu0 0
    %740 = vmatpush1.bf16.msra.mxu0 %v711
    %741 = vmatprep.subr.bf16.mxu0 0
    %742 = vmatpush1.bf16.msra.mxu0 %v710
    %743 = vmatprep.subr.bf16.mxu0 0
    %744 = vmatpush1.bf16.msra.mxu0 %v709
    %745 = vmatprep.subr.bf16.mxu0 0
    %746 = vmatpush1.bf16.msra.mxu0 %v708
    %747 = vmatprep.subr.bf16.mxu0 0
    %748 = vmatpush1.bf16.msra.mxu0 %v707
    %749 = vmatprep.subr.bf16.mxu0 0
    %750 = vmatpush1.bf16.msra.mxu0 %v706
    %751 = vmatprep.subr.bf16.mxu0 0
    %752 = vmatpush1.bf16.msra.mxu0 %v705
    %753 = vmatprep.subr.bf16.mxu0 0
    %754 = vmatpush2.bf16.msra.mxu0 %v720
    %755 = vmatprep.subr.bf16.mxu0 0
    %756 = vmatpush2.bf16.msra.mxu0 %v719
    %757 = vmatprep.subr.bf16.mxu0 0
    %758 = vmatpush2.bf16.msra.mxu0 %v718
    %759 = vmatprep.subr.bf16.mxu0 0
    %760 = vmatpush2.bf16.msra.mxu0 %v717
    %761 = vmatprep.subr.bf16.mxu0 0
    %762 = vmatpush2.bf16.msra.mxu0 %v716
    %763 = vmatprep.subr.bf16.mxu0 0
    %764 = vmatpush2.bf16.msra.mxu0 %v715
    %765 = vmatprep.subr.bf16.mxu0 0
    %766 = vmatpush2.bf16.msra.mxu0 %v714
    %767 = vmatprep.subr.bf16.mxu0 0
    %768 = vmatpush2.bf16.msra.mxu0 %v713
    %769 = vmatprep.mubr.bf16.mxu0 %v97
    %770 = vmatmul.mubr.bf16.gmra.mxu0 %v96
    %v771 = vpop.f32.mrf.mxu0
    %v772 = vadd.f32 0.0, %v771
    %v773 = vpop.f32.mrf.mxu0
    %v774 = vpop.f32.mrf.mxu0
    %v775 = vadd.f32 0.0, %v774
    %v776 = vpop.f32.mrf.mxu0
    %777 = vmatprep.mubr.bf16.mxu0 %v99
    %778 = vmatmul.mubr.bf16.gmra.mxu0 %v98
    %v779 = vpop.f32.mrf.mxu0
    %v780 = vadd.f32 0.0, %v779
    %v781 = vpop.f32.mrf.mxu0
    %v782 = vpop.f32.mrf.mxu0
    %v783 = vpop.f32.mrf.mxu0
    %784 = vdwg.mxu0
    %v785 = vmax.f32 %v605, %v772
    %v786 = vmax.f32 %v606, %v775
    %v787 = vmax.f32 %v607, %v780
    %v788 = vld [vmem:[%s2] sm:$0xff]
    %v789 = vld [vmem:[%s2 + $0x8] sm:$0xff]
    %v790 = vld [vmem:[%s2 + $0x10] sm:$0xff]
    %792 = vset.pattern.permute.xlu0 0
    %793 = vperm.xlu0 %792, %v788
    %v794 = vpop.permute.xlu0 %793
    %797 = vset.pattern.permute.xlu0 0
    %798 = vperm.xlu0 %797, %v789
    %v799 = vpop.permute.xlu0 %798
    %802 = vset.pattern.permute.xlu0 0
    %803 = vperm.xlu0 %802, %v790
    %v804 = vpop.permute.xlu0 %803
    %v806 = vadd.f32 %v785, %v794
    %v807 = vadd.f32 %v786, %v799
    %v808 = vadd.f32 %v787, %v804
    %v809 = vmax.f32 %v806, 0.0
    %v810 = vmax.f32 %v807, 0.0
    %v811 = vmax.f32 %v808, 0.0
    %v813 = vrot.slane %v809, 1
    %814 = vrot.lane.b32.xlu0 %v813, 16
    %v815 = vpop.permute.xlu0 %814
    %v817 = vrot.slane %v809, 2
    %818 = vrot.lane.b32.xlu0 %v817, 32
    %v819 = vpop.permute.xlu0 %818
    %v821 = vrot.slane %v809, 3
    %822 = vrot.lane.b32.xlu0 %v821, 48
    %v823 = vpop.permute.xlu0 %822
    %v825 = vrot.slane %v809, 4
    %826 = vrot.lane.b32.xlu0 %v825, 64
    %v827 = vpop.permute.xlu0 %826
    %v829 = vrot.slane %v809, 5
    %830 = vrot.lane.b32.xlu0 %v829, 80
    %v831 = vpop.permute.xlu0 %830
    %v833 = vrot.slane %v809, 6
    %834 = vrot.lane.b32.xlu0 %v833, 96
    %v835 = vpop.permute.xlu0 %834
    %v837 = vrot.slane %v809, 7
    %838 = vrot.lane.b32.xlu0 %v837, 112
    %v839 = vpop.permute.xlu0 %838
    %v842 = vrot.slane %v810, 1
    %843 = vrot.lane.b32.xlu0 %v842, 16
    %v844 = vpop.permute.xlu0 %843
    %v846 = vrot.slane %v810, 2
    %847 = vrot.lane.b32.xlu0 %v846, 32
    %v848 = vpop.permute.xlu0 %847
    %v850 = vrot.slane %v810, 3
    %851 = vrot.lane.b32.xlu0 %v850, 48
    %v852 = vpop.permute.xlu0 %851
    %v854 = vrot.slane %v810, 4
    %855 = vrot.lane.b32.xlu0 %v854, 64
    %v856 = vpop.permute.xlu0 %855
    %v858 = vrot.slane %v810, 5
    %859 = vrot.lane.b32.xlu0 %v858, 80
    %v860 = vpop.permute.xlu0 %859
    %v862 = vrot.slane %v810, 6
    %863 = vrot.lane.b32.xlu0 %v862, 96
    %v864 = vpop.permute.xlu0 %863
    %v866 = vrot.slane %v810, 7
    %867 = vrot.lane.b32.xlu0 %v866, 112
    %v868 = vpop.permute.xlu0 %867
    %vm870 = vcmask 130048
    %v871 = vsel %vm870, %v809, %v815
    %vm872 = vcmask 261120
    %v873 = vsel %vm872, %v871, %v819
    %vm874 = vcmask 392192
    %v875 = vsel %vm874, %v873, %v823
    %vm876 = vcmask 523264
    %v877 = vsel %vm876, %v875, %v827
    %vm878 = vcmask 654336
    %v879 = vsel %vm878, %v877, %v831
    %vm880 = vcmask 785408
    %v881 = vsel %vm880, %v879, %v835
    %vm882 = vcmask 916480
    %v883 = vsel %vm882, %v881, %v839
    %v884 = vsel %vm870, %v810, %v844
    %v885 = vsel %vm872, %v884, %v848
    %v886 = vsel %vm874, %v885, %v852
    %v887 = vsel %vm876, %v886, %v856
    %v888 = vsel %vm878, %v887, %v860
    %v889 = vsel %vm880, %v888, %v864
    %v890 = vsel %vm882, %v889, %v868
    %v892 = vrot.slane %v811, 1
    %893 = vrot.lane.b32.xlu0 %v892, 16
    %v894 = vpop.permute.xlu0 %893
    %v896 = vrot.slane %v811, 2
    %897 = vrot.lane.b32.xlu0 %v896, 32
    %v898 = vpop.permute.xlu0 %897
    %v900 = vrot.slane %v811, 3
    %901 = vrot.lane.b32.xlu0 %v900, 48
    %v902 = vpop.permute.xlu0 %901
    %v904 = vrot.slane %v811, 4
    %905 = vrot.lane.b32.xlu0 %v904, 64
    %v906 = vpop.permute.xlu0 %905
    %v908 = vrot.slane %v811, 5
    %909 = vrot.lane.b32.xlu0 %v908, 80
    %v910 = vpop.permute.xlu0 %909
    %v912 = vrot.slane %v811, 6
    %913 = vrot.lane.b32.xlu0 %v912, 96
    %v914 = vpop.permute.xlu0 %913
    %v916 = vrot.slane %v811, 7
    %917 = vrot.lane.b32.xlu0 %v916, 112
    %v918 = vpop.permute.xlu0 %917
    %920 = vrot.lane.b32.xlu0 %v809, 112
    %v921 = vpop.permute.xlu0 %920
    %924 = vrot.lane.b32.xlu0 %v817, 16
    %v925 = vpop.permute.xlu0 %924
    %927 = vrot.lane.b32.xlu0 %v821, 32
    %v928 = vpop.permute.xlu0 %927
    %930 = vrot.lane.b32.xlu0 %v825, 48
    %v931 = vpop.permute.xlu0 %930
    %933 = vrot.lane.b32.xlu0 %v829, 64
    %v934 = vpop.permute.xlu0 %933
    %936 = vrot.lane.b32.xlu0 %v833, 80
    %v937 = vpop.permute.xlu0 %936
    %939 = vrot.lane.b32.xlu0 %v837, 96
    %v940 = vpop.permute.xlu0 %939
    %v942 = vsel %vm870, %v811, %v894
    %v943 = vsel %vm872, %v942, %v898
    %v944 = vsel %vm874, %v943, %v902
    %v945 = vsel %vm876, %v944, %v906
    %v946 = vsel %vm878, %v945, %v910
    %v947 = vsel %vm880, %v946, %v914
    %v948 = vsel %vm882, %v947, %v918
    %v949 = vsel %vm870, %v921, %v813
    %v950 = vsel %vm872, %v949, %v925
    %v951 = vsel %vm874, %v950, %v928
    %v952 = vsel %vm876, %v951, %v931
    %v953 = vsel %vm878, %v952, %v934
    %v954 = vsel %vm880, %v953, %v937
    %v955 = vsel %vm882, %v954, %v940
    %956 = vrot.lane.b32.xlu0 %v810, 112
    %v957 = vpop.permute.xlu0 %956
    %960 = vrot.lane.b32.xlu0 %v846, 16
    %v961 = vpop.permute.xlu0 %960
    %963 = vrot.lane.b32.xlu0 %v850, 32
    %v964 = vpop.permute.xlu0 %963
    %966 = vrot.lane.b32.xlu0 %v854, 48
    %v967 = vpop.permute.xlu0 %966
    %969 = vrot.lane.b32.xlu0 %v858, 64
    %v970 = vpop.permute.xlu0 %969
    %972 = vrot.lane.b32.xlu0 %v862, 80
    %v973 = vpop.permute.xlu0 %972
    %975 = vrot.lane.b32.xlu0 %v866, 96
    %v976 = vpop.permute.xlu0 %975
    %978 = vrot.lane.b32.xlu0 %v811, 112
    %v979 = vpop.permute.xlu0 %978
    %982 = vrot.lane.b32.xlu0 %v896, 16
    %v983 = vpop.permute.xlu0 %982
    %985 = vrot.lane.b32.xlu0 %v900, 32
    %v986 = vpop.permute.xlu0 %985
    %988 = vrot.lane.b32.xlu0 %v904, 48
    %v989 = vpop.permute.xlu0 %988
    %991 = vrot.lane.b32.xlu0 %v908, 64
    %v992 = vpop.permute.xlu0 %991
    %994 = vrot.lane.b32.xlu0 %v912, 80
    %v995 = vpop.permute.xlu0 %994
    %997 = vrot.lane.b32.xlu0 %v916, 96
    %v998 = vpop.permute.xlu0 %997
    %v1000 = vsel %vm870, %v957, %v842
    %v1001 = vsel %vm872, %v1000, %v961
    %v1002 = vsel %vm874, %v1001, %v964
    %v1003 = vsel %vm876, %v1002, %v967
    %v1004 = vsel %vm878, %v1003, %v970
    %v1005 = vsel %vm880, %v1004, %v973
    %v1006 = vsel %vm882, %v1005, %v976
    %v1007 = vsel %vm870, %v979, %v892
    %v1008 = vsel %vm872, %v1007, %v983
    %v1009 = vsel %vm874, %v1008, %v986
    %v1010 = vsel %vm876, %v1009, %v989
    %v1011 = vsel %vm878, %v1010, %v992
    %v1012 = vsel %vm880, %v1011, %v995
    %v1013 = vsel %vm882, %v1012, %v998
    %v1016 = vrot.slane %v948, 7
    %v1017 = vrot.slane %v955, 7
    %v1022 = vrot.slane %v1006, 6
    %v1023 = vrot.slane %v1013, 6
    %vm1026 = vcmask 1040384
    %v1027 = vsel %vm1026, %v883, %v1016
    %v1028 = vsel %vm1026, %v890, %v1017
    %vm1029 = vcmask 1041408
    %v1030 = vsel %vm1029, %v1027, %v1022
    %v1031 = vsel %vm1029, %v1028, %v1023
    %v1032 = vpack.c.bf16 %v1030, %v1030
    %v1033 = vpack.c.bf16 %v1031, %v1031
    %v1034 = vld [vmem:[%s3] sm:$0xf]
    %v1035 = vld [vmem:[%s3 + $0x4] sm:$0xf]
    %v1036 = vld [vmem:[%s3 + $0x8] sm:$0xf]
    %v1037 = vld [vmem:[%s3 + $0xc] sm:$0xf]
    %v1038 = vld [vmem:[%s3 + $0x10] sm:$0xf]
    %v1039 = vld [vmem:[%s3 + $0x14] sm:$0xf]
    %v1040 = vld [vmem:[%s3 + $0x18] sm:$0xf]
    %v1041 = vld [vmem:[%s3 + $0x1c] sm:$0xf]
    %v1042 = vld [vmem:[%s3 + $0x20] sm:$0xf]
    %v1043 = vld [vmem:[%s3 + $0x24] sm:$0xf]
    %v1044 = vld [vmem:[%s3 + $0x28] sm:$0xf]
    %v1045 = vld [vmem:[%s3 + $0x2c] sm:$0xf]
    %v1046 = vld [vmem:[%s3 + $0x30] sm:$0xf]
    %v1047 = vld [vmem:[%s3 + $0x34] sm:$0xf]
    %v1048 = vld [vmem:[%s3 + $0x38] sm:$0xf]
    %v1049 = vld [vmem:[%s3 + $0x3c] sm:$0xf]
    %v1050 = vld [vmem:[%s3 + $0x40] sm:$0xf]
    %v1051 = vld [vmem:[%s3 + $0x44] sm:$0xf]
    %v1052 = vld [vmem:[%s3 + $0x48] sm:$0xf]
    %v1053 = vld [vmem:[%s3 + $0x4c] sm:$0xf]
    %v1054 = vld [vmem:[%s3 + $0x50] sm:$0xf]
    %v1055 = vld [vmem:[%s3 + $0x54] sm:$0xf]
    %v1056 = vld [vmem:[%s3 + $0x58] sm:$0xf]
    %v1057 = vld [vmem:[%s3 + $0x5c] sm:$0xf]
    %v1058 = vld [vmem:[%s3 + $0x60] sm:$0xf]
    %v1059 = vld [vmem:[%s3 + $0x64] sm:$0xf]
    %v1060 = vld [vmem:[%s3 + $0x68] sm:$0xf]
    %v1061 = vld [vmem:[%s3 + $0x6c] sm:$0xf]
    %v1062 = vld [vmem:[%s3 + $0x70] sm:$0xf]
    %v1063 = vld [vmem:[%s3 + $0x74] sm:$0xf]
    %v1064 = vld [vmem:[%s3 + $0x78] sm:$0xf]
    %v1065 = vld [vmem:[%s3 + $0x7c] sm:$0xf]
    %v1066 = vld [vmem:[%s4] sm:$0x1]
    %v1068 = vlaneseq
    %v1069 = vshrl.u32 %v1068, 7
    %v1070 = vsub.s32 0, %v1069
    %v1071 = vrot.slane %v1066, %v1070
    %v1105 = vunpack.c.l.b16 %v1034
    %v1106 = vunpack.c.l.b16 %v1035
    %v1107 = vunpack.c.l.b16 %v1036
    %v1108 = vunpack.c.l.b16 %v1037
    %v1109 = vunpack.c.l.b16 %v1038
    %v1110 = vunpack.c.l.b16 %v1039
    %v1111 = vunpack.c.l.b16 %v1040
    %v1112 = vunpack.c.l.b16 %v1041
    %v1113 = vunpack.c.l.b16 %v1042
    %v1114 = vunpack.c.l.b16 %v1043
    %v1115 = vunpack.c.l.b16 %v1044
    %v1116 = vunpack.c.l.b16 %v1045
    %v1117 = vunpack.c.l.b16 %v1046
    %v1118 = vunpack.c.l.b16 %v1047
    %v1119 = vunpack.c.l.b16 %v1048
    %v1120 = vunpack.c.l.b16 %v1049
    %v1121 = vunpack.c.l.b16 %v1050
    %v1122 = vunpack.c.l.b16 %v1051
    %v1123 = vunpack.c.l.b16 %v1052
    %v1124 = vunpack.c.l.b16 %v1053
    %v1125 = vunpack.c.l.b16 %v1054
    %v1126 = vunpack.c.l.b16 %v1055
    %v1127 = vunpack.c.l.b16 %v1056
    %v1128 = vunpack.c.l.b16 %v1057
    %v1129 = vunpack.c.l.b16 %v1058
    %v1130 = vunpack.c.l.b16 %v1059
    %v1131 = vunpack.c.l.b16 %v1060
    %v1132 = vunpack.c.l.b16 %v1061
    %v1133 = vunpack.c.l.b16 %v1062
    %v1134 = vunpack.c.l.b16 %v1063
    %v1135 = vunpack.c.l.b16 %v1064
    %v1136 = vunpack.c.l.b16 %v1065
    %v1137 = vpack.c.b16 %v1106, %v1105
    %v1138 = vpack.c.b16 %v1108, %v1107
    %v1139 = vpack.c.b16 %v1110, %v1109
    %v1140 = vpack.c.b16 %v1112, %v1111
    %v1141 = vpack.c.b16 %v1114, %v1113
    %v1142 = vpack.c.b16 %v1116, %v1115
    %v1143 = vpack.c.b16 %v1118, %v1117
    %v1144 = vpack.c.b16 %v1120, %v1119
    %v1145 = vpack.c.b16 %v1122, %v1121
    %v1146 = vpack.c.b16 %v1124, %v1123
    %v1147 = vpack.c.b16 %v1126, %v1125
    %v1148 = vpack.c.b16 %v1128, %v1127
    %v1149 = vpack.c.b16 %v1130, %v1129
    %v1150 = vpack.c.b16 %v1132, %v1131
    %v1151 = vpack.c.b16 %v1134, %v1133
    %v1152 = vpack.c.b16 %v1136, %v1135
    %1169 = vmatprep.subr.bf16.mxu0 0
    %1170 = vmatpush1.bf16.msra.mxu0 %v1144
    %1171 = vmatprep.subr.bf16.mxu0 0
    %1172 = vmatpush1.bf16.msra.mxu0 %v1143
    %1173 = vmatprep.subr.bf16.mxu0 0
    %1174 = vmatpush1.bf16.msra.mxu0 %v1142
    %1175 = vmatprep.subr.bf16.mxu0 0
    %1176 = vmatpush1.bf16.msra.mxu0 %v1141
    %1177 = vmatprep.subr.bf16.mxu0 0
    %1178 = vmatpush1.bf16.msra.mxu0 %v1140
    %1179 = vmatprep.subr.bf16.mxu0 0
    %1180 = vmatpush1.bf16.msra.mxu0 %v1139
    %1181 = vmatprep.subr.bf16.mxu0 0
    %1182 = vmatpush1.bf16.msra.mxu0 %v1138
    %1183 = vmatprep.subr.bf16.mxu0 0
    %1184 = vmatpush1.bf16.msra.mxu0 %v1137
    %1185 = vmatprep.subr.bf16.mxu0 0
    %1186 = vmatpush2.bf16.msra.mxu0 %v1152
    %1187 = vmatprep.subr.bf16.mxu0 0
    %1188 = vmatpush2.bf16.msra.mxu0 %v1151
    %1189 = vmatprep.subr.bf16.mxu0 0
    %1190 = vmatpush2.bf16.msra.mxu0 %v1150
    %1191 = vmatprep.subr.bf16.mxu0 0
    %1192 = vmatpush2.bf16.msra.mxu0 %v1149
    %1193 = vmatprep.subr.bf16.mxu0 0
    %1194 = vmatpush2.bf16.msra.mxu0 %v1148
    %1195 = vmatprep.subr.bf16.mxu0 0
    %1196 = vmatpush2.bf16.msra.mxu0 %v1147
    %1197 = vmatprep.subr.bf16.mxu0 0
    %1198 = vmatpush2.bf16.msra.mxu0 %v1146
    %1199 = vmatprep.subr.bf16.mxu0 0
    %1200 = vmatpush2.bf16.msra.mxu0 %v1145
    %1201 = vmatprep.mubr.bf16.mxu0 %v1033
    %1202 = vmatmul.mubr.bf16.gmra.mxu0 %v1032
    %v1203 = vpop.f32.mrf.mxu0
    %v1204 = vadd.f32 %v1071, %v1203
    %v1205 = vpop.f32.mrf.mxu0
    %v1206 = vpop.f32.mrf.mxu0
    %v1207 = vpop.f32.mrf.mxu0
    %1208 = vdwg.mxu0
    %v1209 = vmax.f32 %v1204, 0.0
    %v1210 = vpack.c.bf16 %v1209, %v1209
    %v1211 = vld [vmem:[%s5] sm:$0xf]
    %v1212 = vld [vmem:[%s5 + $0x4] sm:$0xf]
    %v1213 = vld [vmem:[%s5 + $0x8] sm:$0xf]
    %v1214 = vld [vmem:[%s5 + $0xc] sm:$0xf]
    %v1215 = vld [vmem:[%s5 + $0x10] sm:$0xf]
    %v1216 = vld [vmem:[%s5 + $0x14] sm:$0xf]
    %v1217 = vld [vmem:[%s5 + $0x18] sm:$0xf]
    %v1218 = vld [vmem:[%s5 + $0x1c] sm:$0xf]
    %v1219 = vld [vmem:[%s5 + $0x20] sm:$0xf]
    %v1220 = vld [vmem:[%s5 + $0x24] sm:$0xf]
    %v1221 = vld [vmem:[%s5 + $0x28] sm:$0xf]
    %v1222 = vld [vmem:[%s5 + $0x2c] sm:$0xf]
    %v1223 = vld [vmem:[%s5 + $0x30] sm:$0xf]
    %v1224 = vld [vmem:[%s5 + $0x34] sm:$0xf]
    %v1225 = vld [vmem:[%s5 + $0x38] sm:$0xf]
    %v1226 = vld [vmem:[%s5 + $0x3c] sm:$0xf]
    %v1227 = vld [vmem:[%s6] sm:$0x1]
    %v1229 = vlaneseq
    %v1230 = vshrl.u32 %v1229, 7
    %v1231 = vsub.s32 0, %v1230
    %v1232 = vrot.slane %v1227, %v1231
    %v1250 = vunpack.c.l.b16 %v1211
    %v1251 = vunpack.c.l.b16 %v1212
    %v1252 = vunpack.c.l.b16 %v1213
    %v1253 = vunpack.c.l.b16 %v1214
    %v1254 = vunpack.c.l.b16 %v1215
    %v1255 = vunpack.c.l.b16 %v1216
    %v1256 = vunpack.c.l.b16 %v1217
    %v1257 = vunpack.c.l.b16 %v1218
    %v1258 = vunpack.c.l.b16 %v1219
    %v1259 = vunpack.c.l.b16 %v1220
    %v1260 = vunpack.c.l.b16 %v1221
    %v1261 = vunpack.c.l.b16 %v1222
    %v1262 = vunpack.c.l.b16 %v1223
    %v1263 = vunpack.c.l.b16 %v1224
    %v1264 = vunpack.c.l.b16 %v1225
    %v1265 = vunpack.c.l.b16 %v1226
    %v1266 = vpack.c.b16 %v1251, %v1250
    %v1267 = vpack.c.b16 %v1253, %v1252
    %v1268 = vpack.c.b16 %v1255, %v1254
    %v1269 = vpack.c.b16 %v1257, %v1256
    %v1270 = vpack.c.b16 %v1259, %v1258
    %v1271 = vpack.c.b16 %v1261, %v1260
    %v1272 = vpack.c.b16 %v1263, %v1262
    %v1273 = vpack.c.b16 %v1265, %v1264
    %1282 = vmatprep.subr.bf16.mxu0 0
    %1283 = vmatpush1.bf16.msra.mxu0 %v1273
    %1284 = vmatprep.subr.bf16.mxu0 0
    %1285 = vmatpush1.bf16.msra.mxu0 %v1272
    %1286 = vmatprep.subr.bf16.mxu0 0
    %1287 = vmatpush1.bf16.msra.mxu0 %v1271
    %1288 = vmatprep.subr.bf16.mxu0 0
    %1289 = vmatpush1.bf16.msra.mxu0 %v1270
    %1290 = vmatprep.subr.bf16.mxu0 0
    %1291 = vmatpush1.bf16.msra.mxu0 %v1269
    %1292 = vmatprep.subr.bf16.mxu0 0
    %1293 = vmatpush1.bf16.msra.mxu0 %v1268
    %1294 = vmatprep.subr.bf16.mxu0 0
    %1295 = vmatpush1.bf16.msra.mxu0 %v1267
    %1296 = vmatprep.subr.bf16.mxu0 0
    %1297 = vmatpush1.bf16.msra.mxu0 %v1266
    %1298 = vmatprep.subr.bf16.mxu0 0
    %1299 = vmatpush2.bf16.msra.mxu0 0
    %1300 = vmatprep.subr.bf16.mxu0 0
    %1301 = vmatpush2.bf16.msra.mxu0 0
    %1302 = vmatprep.subr.bf16.mxu0 0
    %1303 = vmatpush2.bf16.msra.mxu0 0
    %1304 = vmatprep.subr.bf16.mxu0 0
    %1305 = vmatpush2.bf16.msra.mxu0 0
    %1306 = vmatprep.subr.bf16.mxu0 0
    %1307 = vmatpush2.bf16.msra.mxu0 0
    %1308 = vmatprep.subr.bf16.mxu0 0
    %1309 = vmatpush2.bf16.msra.mxu0 0
    %1310 = vmatprep.subr.bf16.mxu0 0
    %1311 = vmatpush2.bf16.msra.mxu0 0
    %1312 = vmatprep.subr.bf16.mxu0 0
    %1313 = vmatpush2.bf16.msra.mxu0 0
    %1314 = vmatprep.mubr.bf16.mxu0 0
    %1315 = vmatmul.mubr.bf16.gmra.mxu0 %v1210
    %v1316 = vpop.f32.mrf.mxu0
    %v1317 = vadd.f32 %v1232, %v1316
    %v1318 = vpop.f32.mrf.mxu0
    %v1319 = vpop.f32.mrf.mxu0
    %v1320 = vpop.f32.mrf.mxu0
    %1321 = vdwg.mxu0
    %v1323 = vrot.slane %v1317, 1
    %1324 = vrot.lane.b32.xlu0 %v1323, 21
    %v1325 = vpop.permute.xlu0 %1324
    %v1327 = vrot.slane %v1317, 2
    %1328 = vrot.lane.b32.xlu0 %v1327, 42
    %v1329 = vpop.permute.xlu0 %1328
    %vm1331 = vcmask 171008
    %v1332 = vsel %vm1331, %v1317, %v1325
    %vm1333 = vcmask 343040
    %v1334 = vsel %vm1333, %v1332, %v1329
    %vm1335 = vcmask 515072
    %v1336 = vsel %vm1335, %v1334, 0.0
    %v1337 = vpack.c.bf16 %v1336, %v1336
    %v1338 = vpack.c.bf16 0.0, 0.0
    %v1339 = vld [vmem:[%s7] sm:$0xff]
    %v1340 = vld [vmem:[%s7 + $0x10] sm:$0xff]
    %v1341 = vld [vmem:[%s7 + $0x18] sm:$0xff]
    %v1342 = vld [vmem:[%s7 + $0x20] sm:$0xff]
    %v1343 = vld [vmem:[%s7 + $0x30] sm:$0xff]
    %v1344 = vld [vmem:[%s7 + $0x38] sm:$0xff]
    %v1345 = vld [vmem:[%s7 + $0x40] sm:$0xff]
    %v1346 = vld [vmem:[%s7 + $0x50] sm:$0xff]
    %v1347 = vld [vmem:[%s7 + $0x58] sm:$0xff]
    %v1348 = vld [vmem:[%s7 + $0x60] sm:$0xff]
    %v1349 = vld [vmem:[%s7 + $0x70] sm:$0xff]
    %v1350 = vld [vmem:[%s7 + $0x78] sm:$0xff]
    %v1351 = vld [vmem:[%s7 + $0x80] sm:$0xff]
    %v1352 = vld [vmem:[%s7 + $0x90] sm:$0xff]
    %v1353 = vld [vmem:[%s7 + $0x98] sm:$0xff]
    %v1354 = vld [vmem:[%s7 + $0xa0] sm:$0xff]
    %v1355 = vld [vmem:[%s7 + $0xb0] sm:$0xff]
    %v1356 = vld [vmem:[%s7 + $0xb8] sm:$0xff]
    %v1357 = vld [vmem:[%s7 + $0xc0] sm:$0xff]
    %v1358 = vld [vmem:[%s7 + $0xd0] sm:$0xff]
    %v1359 = vld [vmem:[%s7 + $0xd8] sm:$0xff]
    %v1360 = vld [vmem:[%s7 + $0xe0] sm:$0xff]
    %v1361 = vld [vmem:[%s7 + $0xf0] sm:$0xff]
    %v1362 = vld [vmem:[%s7 + $0xf8] sm:$0xff]
    %v1363 = vld [vmem:[%s7 + $0x100] sm:$0xff]
    %v1364 = vld [vmem:[%s7 + $0x110] sm:$0xff]
    %v1365 = vld [vmem:[%s7 + $0x118] sm:$0xff]
    %v1366 = vld [vmem:[%s7 + $0x120] sm:$0xff]
    %v1367 = vld [vmem:[%s7 + $0x130] sm:$0xff]
    %v1368 = vld [vmem:[%s7 + $0x138] sm:$0xff]
    %v1369 = vld [vmem:[%s7 + $0x140] sm:$0xff]
    %v1370 = vld [vmem:[%s7 + $0x150] sm:$0xff]
    %v1371 = vld [vmem:[%s7 + $0x158] sm:$0xff]
    %v1372 = vld [vmem:[%s7 + $0x160] sm:$0xff]
    %v1373 = vld [vmem:[%s7 + $0x170] sm:$0xff]
    %v1374 = vld [vmem:[%s7 + $0x178] sm:$0xff]
    %v1375 = vld [vmem:[%s7 + $0x180] sm:$0xff]
    %v1376 = vld [vmem:[%s7 + $0x190] sm:$0xff]
    %v1377 = vld [vmem:[%s7 + $0x198] sm:$0xff]
    %v1378 = vld [vmem:[%s7 + $0x1a0] sm:$0xff]
    %v1379 = vld [vmem:[%s7 + $0x1b0] sm:$0xff]
    %v1380 = vld [vmem:[%s7 + $0x1b8] sm:$0xff]
    %v1381 = vld [vmem:[%s7 + $0x1c0] sm:$0xff]
    %v1382 = vld [vmem:[%s7 + $0x1d0] sm:$0xff]
    %v1383 = vld [vmem:[%s7 + $0x1d8] sm:$0xff]
    %v1384 = vld [vmem:[%s7 + $0x1e0] sm:$0xff]
    %v1385 = vld [vmem:[%s7 + $0x1f0] sm:$0xff]
    %v1386 = vld [vmem:[%s7 + $0x1f8] sm:$0xff]
    %v1387 = vld [vmem:[%s7 + $0x200] sm:$0xff]
    %v1388 = vld [vmem:[%s7 + $0x210] sm:$0xff]
    %v1389 = vld [vmem:[%s7 + $0x218] sm:$0xff]
    %v1390 = vld [vmem:[%s7 + $0x220] sm:$0xff]
    %v1391 = vld [vmem:[%s7 + $0x230] sm:$0xff]
    %v1392 = vld [vmem:[%s7 + $0x238] sm:$0xff]
    %v1393 = vld [vmem:[%s7 + $0x240] sm:$0xff]
    %v1394 = vld [vmem:[%s7 + $0x250] sm:$0xff]
    %v1395 = vld [vmem:[%s7 + $0x258] sm:$0xff]
    %v1396 = vld [vmem:[%s7 + $0x260] sm:$0xff]
    %v1397 = vld [vmem:[%s7 + $0x270] sm:$0xff]
    %v1398 = vld [vmem:[%s7 + $0x278] sm:$0xff]
    %v1399 = vld [vmem:[%s7 + $0x280] sm:$0xff]
    %v1400 = vld [vmem:[%s7 + $0x290] sm:$0xff]
    %v1401 = vld [vmem:[%s7 + $0x298] sm:$0xff]
    %v1402 = vld [vmem:[%s7 + $0x2a0] sm:$0xff]
    %v1403 = vld [vmem:[%s7 + $0x2b0] sm:$0xff]
    %v1404 = vld [vmem:[%s7 + $0x2b8] sm:$0xff]
    %v1405 = vld [vmem:[%s7 + $0x2c0] sm:$0xff]
    %v1406 = vld [vmem:[%s7 + $0x2d0] sm:$0xff]
    %v1407 = vld [vmem:[%s7 + $0x2d8] sm:$0xff]
    %v1408 = vld [vmem:[%s7 + $0x2e0] sm:$0xff]
    %v1409 = vld [vmem:[%s7 + $0x2f0] sm:$0xff]
    %v1410 = vld [vmem:[%s7 + $0x2f8] sm:$0xff]
    %v1411 = vld [vmem:[%s7 + $0x300] sm:$0xff]
    %v1412 = vld [vmem:[%s7 + $0x310] sm:$0xff]
    %v1413 = vld [vmem:[%s7 + $0x318] sm:$0xff]
    %v1414 = vld [vmem:[%s7 + $0x320] sm:$0xff]
    %v1415 = vld [vmem:[%s7 + $0x330] sm:$0xff]
    %v1416 = vld [vmem:[%s7 + $0x338] sm:$0xff]
    %v1417 = vld [vmem:[%s7 + $0x340] sm:$0xff]
    %v1418 = vld [vmem:[%s7 + $0x350] sm:$0xff]
    %v1419 = vld [vmem:[%s7 + $0x358] sm:$0xff]
    %v1420 = vld [vmem:[%s7 + $0x360] sm:$0xff]
    %v1421 = vld [vmem:[%s7 + $0x370] sm:$0xff]
    %v1422 = vld [vmem:[%s7 + $0x378] sm:$0xff]
    %v1423 = vld [vmem:[%s7 + $0x380] sm:$0xff]
    %v1424 = vld [vmem:[%s7 + $0x390] sm:$0xff]
    %v1425 = vld [vmem:[%s7 + $0x398] sm:$0xff]
    %v1426 = vld [vmem:[%s7 + $0x3a0] sm:$0xff]
    %v1427 = vld [vmem:[%s7 + $0x3b0] sm:$0xff]
    %v1428 = vld [vmem:[%s7 + $0x3b8] sm:$0xff]
    %v1429 = vld [vmem:[%s7 + $0x3c0] sm:$0xff]
    %v1430 = vld [vmem:[%s7 + $0x3d0] sm:$0xff]
    %v1431 = vld [vmem:[%s7 + $0x3d8] sm:$0xff]
    %v1432 = vld [vmem:[%s7 + $0x3e0] sm:$0xff]
    %v1433 = vld [vmem:[%s7 + $0x3f0] sm:$0xff]
    %v1434 = vld [vmem:[%s7 + $0x3f8] sm:$0xff]
    %v1435 = vld [vmem:[%s7 + $0x400] sm:$0xff]
    %v1436 = vld [vmem:[%s7 + $0x410] sm:$0xff]
    %v1437 = vld [vmem:[%s7 + $0x418] sm:$0xff]
    %v1438 = vld [vmem:[%s7 + $0x420] sm:$0xff]
    %v1439 = vld [vmem:[%s7 + $0x430] sm:$0xff]
    %v1440 = vld [vmem:[%s7 + $0x438] sm:$0xff]
    %v1441 = vld [vmem:[%s7 + $0x440] sm:$0xff]
    %v1442 = vld [vmem:[%s7 + $0x450] sm:$0xff]
    %v1443 = vld [vmem:[%s7 + $0x458] sm:$0xff]
    %v1444 = vld [vmem:[%s7 + $0x460] sm:$0xff]
    %v1445 = vld [vmem:[%s7 + $0x470] sm:$0xff]
    %v1446 = vld [vmem:[%s7 + $0x478] sm:$0xff]
    %v1447 = vld [vmem:[%s7 + $0x480] sm:$0xff]
    %v1448 = vld [vmem:[%s7 + $0x490] sm:$0xff]
    %v1449 = vld [vmem:[%s7 + $0x498] sm:$0xff]
    %v1450 = vld [vmem:[%s7 + $0x4a0] sm:$0xff]
    %v1451 = vld [vmem:[%s7 + $0x4b0] sm:$0xff]
    %v1452 = vld [vmem:[%s7 + $0x4b8] sm:$0xff]
    %v1453 = vld [vmem:[%s7 + $0x4c0] sm:$0xff]
    %v1454 = vld [vmem:[%s7 + $0x4d0] sm:$0xff]
    %v1455 = vld [vmem:[%s7 + $0x4d8] sm:$0xff]
    %v1456 = vld [vmem:[%s7 + $0x4e0] sm:$0xff]
    %v1457 = vld [vmem:[%s7 + $0x4f0] sm:$0xff]
    %v1458 = vld [vmem:[%s7 + $0x4f8] sm:$0xff]
    %v1459 = vld [vmem:[%s7 + $0x500] sm:$0xff]
    %v1460 = vld [vmem:[%s7 + $0x510] sm:$0xff]
    %v1461 = vld [vmem:[%s7 + $0x518] sm:$0xff]
    %v1462 = vld [vmem:[%s7 + $0x520] sm:$0xff]
    %v1463 = vld [vmem:[%s7 + $0x530] sm:$0xff]
    %v1464 = vld [vmem:[%s7 + $0x538] sm:$0xff]
    %v1465 = vld [vmem:[%s7 + $0x540] sm:$0xff]
    %v1466 = vld [vmem:[%s7 + $0x550] sm:$0xff]
    %v1467 = vld [vmem:[%s7 + $0x558] sm:$0xff]
    %v1468 = vld [vmem:[%s7 + $0x560] sm:$0xff]
    %v1469 = vld [vmem:[%s7 + $0x570] sm:$0xff]
    %v1470 = vld [vmem:[%s7 + $0x578] sm:$0xff]
    %v1471 = vld [vmem:[%s7 + $0x580] sm:$0xff]
    %v1472 = vld [vmem:[%s7 + $0x590] sm:$0xff]
    %v1473 = vld [vmem:[%s7 + $0x598] sm:$0xff]
    %v1474 = vld [vmem:[%s7 + $0x5a0] sm:$0xff]
    %v1475 = vld [vmem:[%s7 + $0x5b0] sm:$0xff]
    %v1476 = vld [vmem:[%s7 + $0x5b8] sm:$0xff]
    %v1477 = vld [vmem:[%s7 + $0x5c0] sm:$0xff]
    %v1478 = vld [vmem:[%s7 + $0x5d0] sm:$0xff]
    %v1479 = vld [vmem:[%s7 + $0x5d8] sm:$0xff]
    %v1480 = vld [vmem:[%s7 + $0x5e0] sm:$0xff]
    %v1481 = vld [vmem:[%s7 + $0x5f0] sm:$0xff]
    %v1482 = vld [vmem:[%s7 + $0x5f8] sm:$0xff]
    %v1483 = vld [vmem:[%s8] sm:$0xff]
    %v1628 = vunpack.c.l.b16 %v1339
    %v1629 = vunpack.c.h.b16 %v1339
    %v1630 = vunpack.c.l.b16 %v1340
    %v1631 = vunpack.c.h.b16 %v1340
    %v1632 = vunpack.c.l.b16 %v1341
    %v1633 = vunpack.c.h.b16 %v1341
    %v1634 = vunpack.c.l.b16 %v1342
    %v1635 = vunpack.c.h.b16 %v1342
    %v1636 = vunpack.c.l.b16 %v1343
    %v1637 = vunpack.c.h.b16 %v1343
    %v1638 = vunpack.c.l.b16 %v1344
    %v1639 = vunpack.c.h.b16 %v1344
    %v1640 = vunpack.c.l.b16 %v1345
    %v1641 = vunpack.c.h.b16 %v1345
    %v1642 = vunpack.c.l.b16 %v1346
    %v1643 = vunpack.c.h.b16 %v1346
    %v1644 = vunpack.c.l.b16 %v1347
    %v1645 = vunpack.c.h.b16 %v1347
    %v1646 = vunpack.c.l.b16 %v1348
    %v1647 = vunpack.c.h.b16 %v1348
    %v1648 = vunpack.c.l.b16 %v1349
    %v1649 = vunpack.c.h.b16 %v1349
    %v1650 = vunpack.c.l.b16 %v1350
    %v1651 = vunpack.c.h.b16 %v1350
    %v1652 = vunpack.c.l.b16 %v1351
    %v1653 = vunpack.c.h.b16 %v1351
    %v1654 = vunpack.c.l.b16 %v1352
    %v1655 = vunpack.c.h.b16 %v1352
    %v1656 = vunpack.c.l.b16 %v1353
    %v1657 = vunpack.c.h.b16 %v1353
    %v1658 = vunpack.c.l.b16 %v1354
    %v1659 = vunpack.c.h.b16 %v1354
    %v1660 = vunpack.c.l.b16 %v1355
    %v1661 = vunpack.c.h.b16 %v1355
    %v1662 = vunpack.c.l.b16 %v1356
    %v1663 = vunpack.c.h.b16 %v1356
    %v1664 = vunpack.c.l.b16 %v1357
    %v1665 = vunpack.c.h.b16 %v1357
    %v1666 = vunpack.c.l.b16 %v1358
    %v1667 = vunpack.c.h.b16 %v1358
    %v1668 = vunpack.c.l.b16 %v1359
    %v1669 = vunpack.c.h.b16 %v1359
    %v1670 = vunpack.c.l.b16 %v1360
    %v1671 = vunpack.c.h.b16 %v1360
    %v1672 = vunpack.c.l.b16 %v1361
    %v1673 = vunpack.c.h.b16 %v1361
    %v1674 = vunpack.c.l.b16 %v1362
    %v1675 = vunpack.c.h.b16 %v1362
    %v1676 = vunpack.c.l.b16 %v1363
    %v1677 = vunpack.c.h.b16 %v1363
    %v1678 = vunpack.c.l.b16 %v1364
    %v1679 = vunpack.c.h.b16 %v1364
    %v1680 = vunpack.c.l.b16 %v1365
    %v1681 = vunpack.c.h.b16 %v1365
    %v1682 = vunpack.c.l.b16 %v1366
    %v1683 = vunpack.c.h.b16 %v1366
    %v1684 = vunpack.c.l.b16 %v1367
    %v1685 = vunpack.c.h.b16 %v1367
    %v1686 = vunpack.c.l.b16 %v1368
    %v1687 = vunpack.c.h.b16 %v1368
    %v1688 = vunpack.c.l.b16 %v1369
    %v1689 = vunpack.c.h.b16 %v1369
    %v1690 = vunpack.c.l.b16 %v1370
    %v1691 = vunpack.c.h.b16 %v1370
    %v1692 = vunpack.c.l.b16 %v1371
    %v1693 = vunpack.c.h.b16 %v1371
    %v1694 = vunpack.c.l.b16 %v1372
    %v1695 = vunpack.c.h.b16 %v1372
    %v1696 = vunpack.c.l.b16 %v1373
    %v1697 = vunpack.c.h.b16 %v1373
    %v1698 = vunpack.c.l.b16 %v1374
    %v1699 = vunpack.c.h.b16 %v1374
    %v1700 = vunpack.c.l.b16 %v1375
    %v1701 = vunpack.c.h.b16 %v1375
    %v1702 = vunpack.c.l.b16 %v1376
    %v1703 = vunpack.c.h.b16 %v1376
    %v1704 = vunpack.c.l.b16 %v1377
    %v1705 = vunpack.c.h.b16 %v1377
    %v1706 = vunpack.c.l.b16 %v1378
    %v1707 = vunpack.c.h.b16 %v1378
    %v1708 = vunpack.c.l.b16 %v1379
    %v1709 = vunpack.c.h.b16 %v1379
    %v1710 = vunpack.c.l.b16 %v1380
    %v1711 = vunpack.c.h.b16 %v1380
    %v1712 = vunpack.c.l.b16 %v1381
    %v1713 = vunpack.c.h.b16 %v1381
    %v1714 = vunpack.c.l.b16 %v1382
    %v1715 = vunpack.c.h.b16 %v1382
    %v1716 = vunpack.c.l.b16 %v1383
    %v1717 = vunpack.c.h.b16 %v1383
    %v1718 = vunpack.c.l.b16 %v1384
    %v1719 = vunpack.c.h.b16 %v1384
    %v1720 = vunpack.c.l.b16 %v1385
    %v1721 = vunpack.c.h.b16 %v1385
    %v1722 = vunpack.c.l.b16 %v1386
    %v1723 = vunpack.c.h.b16 %v1386
    %v1724 = vunpack.c.l.b16 %v1387
    %v1725 = vunpack.c.h.b16 %v1387
    %v1726 = vunpack.c.l.b16 %v1388
    %v1727 = vunpack.c.h.b16 %v1388
    %v1728 = vunpack.c.l.b16 %v1389
    %v1729 = vunpack.c.h.b16 %v1389
    %v1730 = vunpack.c.l.b16 %v1390
    %v1731 = vunpack.c.h.b16 %v1390
    %v1732 = vunpack.c.l.b16 %v1391
    %v1733 = vunpack.c.h.b16 %v1391
    %v1734 = vunpack.c.l.b16 %v1392
    %v1735 = vunpack.c.h.b16 %v1392
    %v1736 = vunpack.c.l.b16 %v1393
    %v1737 = vunpack.c.h.b16 %v1393
    %v1738 = vunpack.c.l.b16 %v1394
    %v1739 = vunpack.c.h.b16 %v1394
    %v1740 = vunpack.c.l.b16 %v1395
    %v1741 = vunpack.c.h.b16 %v1395
    %v1742 = vunpack.c.l.b16 %v1396
    %v1743 = vunpack.c.h.b16 %v1396
    %v1744 = vunpack.c.l.b16 %v1397
    %v1745 = vunpack.c.h.b16 %v1397
    %v1746 = vunpack.c.l.b16 %v1398
    %v1747 = vunpack.c.h.b16 %v1398
    %v1748 = vunpack.c.l.b16 %v1399
    %v1749 = vunpack.c.h.b16 %v1399
    %v1750 = vunpack.c.l.b16 %v1400
    %v1751 = vunpack.c.h.b16 %v1400
    %v1752 = vunpack.c.l.b16 %v1401
    %v1753 = vunpack.c.h.b16 %v1401
    %v1754 = vunpack.c.l.b16 %v1402
    %v1755 = vunpack.c.h.b16 %v1402
    %v1756 = vunpack.c.l.b16 %v1403
    %v1757 = vunpack.c.h.b16 %v1403
    %v1758 = vunpack.c.l.b16 %v1404
    %v1759 = vunpack.c.h.b16 %v1404
    %v1760 = vunpack.c.l.b16 %v1405
    %v1761 = vunpack.c.h.b16 %v1405
    %v1762 = vunpack.c.l.b16 %v1406
    %v1763 = vunpack.c.h.b16 %v1406
    %v1764 = vunpack.c.l.b16 %v1407
    %v1765 = vunpack.c.h.b16 %v1407
    %v1766 = vunpack.c.l.b16 %v1408
    %v1767 = vunpack.c.h.b16 %v1408
    %v1768 = vunpack.c.l.b16 %v1409
    %v1769 = vunpack.c.h.b16 %v1409
    %v1770 = vunpack.c.l.b16 %v1410
    %v1771 = vunpack.c.h.b16 %v1410
    %v1772 = vunpack.c.l.b16 %v1411
    %v1773 = vunpack.c.h.b16 %v1411
    %v1774 = vunpack.c.l.b16 %v1412
    %v1775 = vunpack.c.h.b16 %v1412
    %v1776 = vunpack.c.l.b16 %v1413
    %v1777 = vunpack.c.h.b16 %v1413
    %v1778 = vunpack.c.l.b16 %v1414
    %v1779 = vunpack.c.h.b16 %v1414
    %v1780 = vunpack.c.l.b16 %v1415
    %v1781 = vunpack.c.h.b16 %v1415
    %v1782 = vunpack.c.l.b16 %v1416
    %v1783 = vunpack.c.h.b16 %v1416
    %v1784 = vunpack.c.l.b16 %v1417
    %v1785 = vunpack.c.h.b16 %v1417
    %v1786 = vunpack.c.l.b16 %v1418
    %v1787 = vunpack.c.h.b16 %v1418
    %v1788 = vunpack.c.l.b16 %v1419
    %v1789 = vunpack.c.h.b16 %v1419
    %v1790 = vunpack.c.l.b16 %v1420
    %v1791 = vunpack.c.h.b16 %v1420
    %v1792 = vunpack.c.l.b16 %v1421
    %v1793 = vunpack.c.h.b16 %v1421
    %v1794 = vunpack.c.l.b16 %v1422
    %v1795 = vunpack.c.h.b16 %v1422
    %v1796 = vunpack.c.l.b16 %v1423
    %v1797 = vunpack.c.h.b16 %v1423
    %v1798 = vunpack.c.l.b16 %v1424
    %v1799 = vunpack.c.h.b16 %v1424
    %v1800 = vunpack.c.l.b16 %v1425
    %v1801 = vunpack.c.h.b16 %v1425
    %v1802 = vunpack.c.l.b16 %v1426
    %v1803 = vunpack.c.h.b16 %v1426
    %v1804 = vunpack.c.l.b16 %v1427
    %v1805 = vunpack.c.h.b16 %v1427
    %v1806 = vunpack.c.l.b16 %v1428
    %v1807 = vunpack.c.h.b16 %v1428
    %v1808 = vunpack.c.l.b16 %v1429
    %v1809 = vunpack.c.h.b16 %v1429
    %v1810 = vunpack.c.l.b16 %v1430
    %v1811 = vunpack.c.h.b16 %v1430
    %v1812 = vunpack.c.l.b16 %v1431
    %v1813 = vunpack.c.h.b16 %v1431
    %v1814 = vunpack.c.l.b16 %v1432
    %v1815 = vunpack.c.h.b16 %v1432
    %v1816 = vunpack.c.l.b16 %v1433
    %v1817 = vunpack.c.h.b16 %v1433
    %v1818 = vunpack.c.l.b16 %v1434
    %v1819 = vunpack.c.h.b16 %v1434
    %v1820 = vunpack.c.l.b16 %v1435
    %v1821 = vunpack.c.h.b16 %v1435
    %v1822 = vunpack.c.l.b16 %v1436
    %v1823 = vunpack.c.h.b16 %v1436
    %v1824 = vunpack.c.l.b16 %v1437
    %v1825 = vunpack.c.h.b16 %v1437
    %v1826 = vunpack.c.l.b16 %v1438
    %v1827 = vunpack.c.h.b16 %v1438
    %v1828 = vunpack.c.l.b16 %v1439
    %v1829 = vunpack.c.h.b16 %v1439
    %v1830 = vunpack.c.l.b16 %v1440
    %v1831 = vunpack.c.h.b16 %v1440
    %v1832 = vunpack.c.l.b16 %v1441
    %v1833 = vunpack.c.h.b16 %v1441
    %v1834 = vunpack.c.l.b16 %v1442
    %v1835 = vunpack.c.h.b16 %v1442
    %v1836 = vunpack.c.l.b16 %v1443
    %v1837 = vunpack.c.h.b16 %v1443
    %v1838 = vunpack.c.l.b16 %v1444
    %v1839 = vunpack.c.h.b16 %v1444
    %v1840 = vunpack.c.l.b16 %v1445
    %v1841 = vunpack.c.h.b16 %v1445
    %v1842 = vunpack.c.l.b16 %v1446
    %v1843 = vunpack.c.h.b16 %v1446
    %v1844 = vunpack.c.l.b16 %v1447
    %v1845 = vunpack.c.h.b16 %v1447
    %v1846 = vunpack.c.l.b16 %v1448
    %v1847 = vunpack.c.h.b16 %v1448
    %v1848 = vunpack.c.l.b16 %v1449
    %v1849 = vunpack.c.h.b16 %v1449
    %v1850 = vunpack.c.l.b16 %v1450
    %v1851 = vunpack.c.h.b16 %v1450
    %v1852 = vunpack.c.l.b16 %v1451
    %v1853 = vunpack.c.h.b16 %v1451
    %v1854 = vunpack.c.l.b16 %v1452
    %v1855 = vunpack.c.h.b16 %v1452
    %v1856 = vunpack.c.l.b16 %v1453
    %v1857 = vunpack.c.h.b16 %v1453
    %v1858 = vunpack.c.l.b16 %v1454
    %v1859 = vunpack.c.h.b16 %v1454
    %v1860 = vunpack.c.l.b16 %v1455
    %v1861 = vunpack.c.h.b16 %v1455
    %v1862 = vunpack.c.l.b16 %v1456
    %v1863 = vunpack.c.h.b16 %v1456
    %v1864 = vunpack.c.l.b16 %v1457
    %v1865 = vunpack.c.h.b16 %v1457
    %v1866 = vunpack.c.l.b16 %v1458
    %v1867 = vunpack.c.h.b16 %v1458
    %v1868 = vunpack.c.l.b16 %v1459
    %v1869 = vunpack.c.h.b16 %v1459
    %v1870 = vunpack.c.l.b16 %v1460
    %v1871 = vunpack.c.h.b16 %v1460
    %v1872 = vunpack.c.l.b16 %v1461
    %v1873 = vunpack.c.h.b16 %v1461
    %v1874 = vunpack.c.l.b16 %v1462
    %v1875 = vunpack.c.h.b16 %v1462
    %v1876 = vunpack.c.l.b16 %v1463
    %v1877 = vunpack.c.h.b16 %v1463
    %v1878 = vunpack.c.l.b16 %v1464
    %v1879 = vunpack.c.h.b16 %v1464
    %v1880 = vunpack.c.l.b16 %v1465
    %v1881 = vunpack.c.h.b16 %v1465
    %v1882 = vunpack.c.l.b16 %v1466
    %v1883 = vunpack.c.h.b16 %v1466
    %v1884 = vunpack.c.l.b16 %v1467
    %v1885 = vunpack.c.h.b16 %v1467
    %v1886 = vunpack.c.l.b16 %v1468
    %v1887 = vunpack.c.h.b16 %v1468
    %v1888 = vunpack.c.l.b16 %v1469
    %v1889 = vunpack.c.h.b16 %v1469
    %v1890 = vunpack.c.l.b16 %v1470
    %v1891 = vunpack.c.h.b16 %v1470
    %v1892 = vunpack.c.l.b16 %v1471
    %v1893 = vunpack.c.h.b16 %v1471
    %v1894 = vunpack.c.l.b16 %v1472
    %v1895 = vunpack.c.h.b16 %v1472
    %v1896 = vunpack.c.l.b16 %v1473
    %v1897 = vunpack.c.h.b16 %v1473
    %v1898 = vunpack.c.l.b16 %v1474
    %v1899 = vunpack.c.h.b16 %v1474
    %v1900 = vunpack.c.l.b16 %v1475
    %v1901 = vunpack.c.h.b16 %v1475
    %v1902 = vunpack.c.l.b16 %v1476
    %v1903 = vunpack.c.h.b16 %v1476
    %v1904 = vunpack.c.l.b16 %v1477
    %v1905 = vunpack.c.h.b16 %v1477
    %v1906 = vunpack.c.l.b16 %v1478
    %v1907 = vunpack.c.h.b16 %v1478
    %v1908 = vunpack.c.l.b16 %v1479
    %v1909 = vunpack.c.h.b16 %v1479
    %v1910 = vunpack.c.l.b16 %v1480
    %v1911 = vunpack.c.h.b16 %v1480
    %v1912 = vunpack.c.l.b16 %v1481
    %v1913 = vunpack.c.h.b16 %v1481
    %v1914 = vunpack.c.l.b16 %v1482
    %v1915 = vunpack.c.h.b16 %v1482
    %v1916 = vpack.c.b16 %v1634, %v1628
    %v1917 = vpack.c.b16 %v1635, %v1629
    %v1918 = vpack.c.b16 %v1636, %v1630
    %v1919 = vpack.c.b16 %v1637, %v1631
    %v1920 = vpack.c.b16 %v1638, %v1632
    %v1921 = vpack.c.b16 %v1639, %v1633
    %v1922 = vpack.c.b16 %v1646, %v1640
    %v1923 = vpack.c.b16 %v1647, %v1641
    %v1924 = vpack.c.b16 %v1648, %v1642
    %v1925 = vpack.c.b16 %v1649, %v1643
    %v1926 = vpack.c.b16 %v1650, %v1644
    %v1927 = vpack.c.b16 %v1651, %v1645
    %v1928 = vpack.c.b16 %v1658, %v1652
    %v1929 = vpack.c.b16 %v1659, %v1653
    %v1930 = vpack.c.b16 %v1660, %v1654
    %v1931 = vpack.c.b16 %v1661, %v1655
    %v1932 = vpack.c.b16 %v1662, %v1656
    %v1933 = vpack.c.b16 %v1663, %v1657
    %v1934 = vpack.c.b16 %v1670, %v1664
    %v1935 = vpack.c.b16 %v1671, %v1665
    %v1936 = vpack.c.b16 %v1672, %v1666
    %v1937 = vpack.c.b16 %v1673, %v1667
    %v1938 = vpack.c.b16 %v1674, %v1668
    %v1939 = vpack.c.b16 %v1675, %v1669
    %v1940 = vpack.c.b16 %v1682, %v1676
    %v1941 = vpack.c.b16 %v1683, %v1677
    %v1942 = vpack.c.b16 %v1684, %v1678
    %v1943 = vpack.c.b16 %v1685, %v1679
    %v1944 = vpack.c.b16 %v1686, %v1680
    %v1945 = vpack.c.b16 %v1687, %v1681
    %v1946 = vpack.c.b16 %v1694, %v1688
    %v1947 = vpack.c.b16 %v1695, %v1689
    %v1948 = vpack.c.b16 %v1696, %v1690
    %v1949 = vpack.c.b16 %v1697, %v1691
    %v1950 = vpack.c.b16 %v1698, %v1692
    %v1951 = vpack.c.b16 %v1699, %v1693
    %v1952 = vpack.c.b16 %v1706, %v1700
    %v1953 = vpack.c.b16 %v1707, %v1701
    %v1954 = vpack.c.b16 %v1708, %v1702
    %v1955 = vpack.c.b16 %v1709, %v1703
    %v1956 = vpack.c.b16 %v1710, %v1704
    %v1957 = vpack.c.b16 %v1711, %v1705
    %v1958 = vpack.c.b16 %v1718, %v1712
    %v1959 = vpack.c.b16 %v1719, %v1713
    %v1960 = vpack.c.b16 %v1720, %v1714
    %v1961 = vpack.c.b16 %v1721, %v1715
    %v1962 = vpack.c.b16 %v1722, %v1716
    %v1963 = vpack.c.b16 %v1723, %v1717
    %v1964 = vpack.c.b16 %v1730, %v1724
    %v1965 = vpack.c.b16 %v1731, %v1725
    %v1966 = vpack.c.b16 %v1732, %v1726
    %v1967 = vpack.c.b16 %v1733, %v1727
    %v1968 = vpack.c.b16 %v1734, %v1728
    %v1969 = vpack.c.b16 %v1735, %v1729
    %v1970 = vpack.c.b16 %v1742, %v1736
    %v1971 = vpack.c.b16 %v1743, %v1737
    %v1972 = vpack.c.b16 %v1744, %v1738
    %v1973 = vpack.c.b16 %v1745, %v1739
    %v1974 = vpack.c.b16 %v1746, %v1740
    %v1975 = vpack.c.b16 %v1747, %v1741
    %v1976 = vpack.c.b16 %v1754, %v1748
    %v1977 = vpack.c.b16 %v1755, %v1749
    %v1978 = vpack.c.b16 %v1756, %v1750
    %v1979 = vpack.c.b16 %v1757, %v1751
    %v1980 = vpack.c.b16 %v1758, %v1752
    %v1981 = vpack.c.b16 %v1759, %v1753
    %v1982 = vpack.c.b16 %v1766, %v1760
    %v1983 = vpack.c.b16 %v1767, %v1761
    %v1984 = vpack.c.b16 %v1768, %v1762
    %v1985 = vpack.c.b16 %v1769, %v1763
    %v1986 = vpack.c.b16 %v1770, %v1764
    %v1987 = vpack.c.b16 %v1771, %v1765
    %v1988 = vpack.c.b16 %v1778, %v1772
    %v1989 = vpack.c.b16 %v1779, %v1773
    %v1990 = vpack.c.b16 %v1780, %v1774
    %v1991 = vpack.c.b16 %v1781, %v1775
    %v1992 = vpack.c.b16 %v1782, %v1776
    %v1993 = vpack.c.b16 %v1783, %v1777
    %v1994 = vpack.c.b16 %v1790, %v1784
    %v1995 = vpack.c.b16 %v1791, %v1785
    %v1996 = vpack.c.b16 %v1792, %v1786
    %v1997 = vpack.c.b16 %v1793, %v1787
    %v1998 = vpack.c.b16 %v1794, %v1788
    %v1999 = vpack.c.b16 %v1795, %v1789
    %v2000 = vpack.c.b16 %v1802, %v1796
    %v2001 = vpack.c.b16 %v1803, %v1797
    %v2002 = vpack.c.b16 %v1804, %v1798
    %v2003 = vpack.c.b16 %v1805, %v1799
    %v2004 = vpack.c.b16 %v1806, %v1800
    %v2005 = vpack.c.b16 %v1807, %v1801
    %v2006 = vpack.c.b16 %v1814, %v1808
    %v2007 = vpack.c.b16 %v1815, %v1809
    %v2008 = vpack.c.b16 %v1816, %v1810
    %v2009 = vpack.c.b16 %v1817, %v1811
    %v2010 = vpack.c.b16 %v1818, %v1812
    %v2011 = vpack.c.b16 %v1819, %v1813
    %v2012 = vpack.c.b16 %v1826, %v1820
    %v2013 = vpack.c.b16 %v1827, %v1821
    %v2014 = vpack.c.b16 %v1828, %v1822
    %v2015 = vpack.c.b16 %v1829, %v1823
    %v2016 = vpack.c.b16 %v1830, %v1824
    %v2017 = vpack.c.b16 %v1831, %v1825
    %v2018 = vpack.c.b16 %v1838, %v1832
    %v2019 = vpack.c.b16 %v1839, %v1833
    %v2020 = vpack.c.b16 %v1840, %v1834
    %v2021 = vpack.c.b16 %v1841, %v1835
    %v2022 = vpack.c.b16 %v1842, %v1836
    %v2023 = vpack.c.b16 %v1843, %v1837
    %v2024 = vpack.c.b16 %v1850, %v1844
    %v2025 = vpack.c.b16 %v1851, %v1845
    %v2026 = vpack.c.b16 %v1852, %v1846
    %v2027 = vpack.c.b16 %v1853, %v1847
    %v2028 = vpack.c.b16 %v1854, %v1848
    %v2029 = vpack.c.b16 %v1855, %v1849
    %v2030 = vpack.c.b16 %v1862, %v1856
    %v2031 = vpack.c.b16 %v1863, %v1857
    %v2032 = vpack.c.b16 %v1864, %v1858
    %v2033 = vpack.c.b16 %v1865, %v1859
    %v2034 = vpack.c.b16 %v1866, %v1860
    %v2035 = vpack.c.b16 %v1867, %v1861
    %v2036 = vpack.c.b16 %v1874, %v1868
    %v2037 = vpack.c.b16 %v1875, %v1869
    %v2038 = vpack.c.b16 %v1876, %v1870
    %v2039 = vpack.c.b16 %v1877, %v1871
    %v2040 = vpack.c.b16 %v1878, %v1872
    %v2041 = vpack.c.b16 %v1879, %v1873
    %v2042 = vpack.c.b16 %v1886, %v1880
    %v2043 = vpack.c.b16 %v1887, %v1881
    %v2044 = vpack.c.b16 %v1888, %v1882
    %v2045 = vpack.c.b16 %v1889, %v1883
    %v2046 = vpack.c.b16 %v1890, %v1884
    %v2047 = vpack.c.b16 %v1891, %v1885
    %v2048 = vpack.c.b16 %v1898, %v1892
    %v2049 = vpack.c.b16 %v1899, %v1893
    %v2050 = vpack.c.b16 %v1900, %v1894
    %v2051 = vpack.c.b16 %v1901, %v1895
    %v2052 = vpack.c.b16 %v1902, %v1896
    %v2053 = vpack.c.b16 %v1903, %v1897
    %v2054 = vpack.c.b16 %v1910, %v1904
    %v2055 = vpack.c.b16 %v1911, %v1905
    %v2056 = vpack.c.b16 %v1912, %v1906
    %v2057 = vpack.c.b16 %v1913, %v1907
    %v2058 = vpack.c.b16 %v1914, %v1908
    %v2059 = vpack.c.b16 %v1915, %v1909
    %v2205 = vlaneseq
    %v2206 = vshrl.u32 %v2205, 7
    %v2207 = vsub.s32 0, %v2206
    %v2208 = vrot.slane %v1483, %v2207
    %v2209 = vlaneseq
    %v2210 = vshrl.u32 %v2209, 7
    %v2211 = vsub.s32 1, %v2210
    %v2212 = vrot.slane %v1483, %v2211
    %v2213 = vlaneseq
    %v2214 = vshrl.u32 %v2213, 7
    %v2215 = vsub.s32 4, %v2214
    %v2216 = vrot.slane %v1483, %v2215
    %v2217 = vlaneseq
    %v2218 = vshrl.u32 %v2217, 7
    %v2219 = vsub.s32 5, %v2218
    %v2220 = vrot.slane %v1483, %v2219
    %v2221 = vlaneseq
    %v2222 = vshrl.u32 %v2221, 7
    %v2223 = vsub.s32 6, %v2222
    %v2224 = vrot.slane %v1483, %v2223
    %v2225 = vlaneseq
    %v2226 = vshrl.u32 %v2225, 7
    %v2227 = vsub.s32 7, %v2226
    %v2228 = vrot.slane %v1483, %v2227
    %2235 = vmatprep.subr.bf16.mxu0 %v1959
    %2236 = vmatpush1.bf16.msra.mxu0 %v1958
    %2237 = vmatprep.subr.bf16.mxu0 %v1953
    %2238 = vmatpush1.bf16.msra.mxu0 %v1952
    %2239 = vmatprep.subr.bf16.mxu0 %v1947
    %2240 = vmatpush1.bf16.msra.mxu0 %v1946
    %2241 = vmatprep.subr.bf16.mxu0 %v1941
    %2242 = vmatpush1.bf16.msra.mxu0 %v1940
    %2243 = vmatprep.subr.bf16.mxu0 %v1935
    %2244 = vmatpush1.bf16.msra.mxu0 %v1934
    %2245 = vmatprep.subr.bf16.mxu0 %v1929
    %2246 = vmatpush1.bf16.msra.mxu0 %v1928
    %2247 = vmatprep.subr.bf16.mxu0 %v1923
    %2248 = vmatpush1.bf16.msra.mxu0 %v1922
    %2249 = vmatprep.subr.bf16.mxu0 %v1917
    %2250 = vmatpush1.bf16.msra.mxu0 %v1916
    %2251 = vmatprep.subr.bf16.mxu0 %v2007
    %2252 = vmatpush2.bf16.msra.mxu0 %v2006
    %2253 = vmatprep.subr.bf16.mxu0 %v2001
    %2254 = vmatpush2.bf16.msra.mxu0 %v2000
    %2255 = vmatprep.subr.bf16.mxu0 %v1995
    %2256 = vmatpush2.bf16.msra.mxu0 %v1994
    %2257 = vmatprep.subr.bf16.mxu0 %v1989
    %2258 = vmatpush2.bf16.msra.mxu0 %v1988
    %2259 = vmatprep.subr.bf16.mxu0 %v1983
    %2260 = vmatpush2.bf16.msra.mxu0 %v1982
    %2261 = vmatprep.subr.bf16.mxu0 %v1977
    %2262 = vmatpush2.bf16.msra.mxu0 %v1976
    %2263 = vmatprep.subr.bf16.mxu0 %v1971
    %2264 = vmatpush2.bf16.msra.mxu0 %v1970
    %2265 = vmatprep.subr.bf16.mxu0 %v1965
    %2266 = vmatpush2.bf16.msra.mxu0 %v1964
    %2267 = vmatprep.mubr.bf16.mxu0 %v1338
    %2268 = vmatmul.mubr.bf16.gmra.mxu0 %v1337
    %v2269 = vpop.f32.mrf.mxu0
    %v2270 = vadd.f32 %v2208, %v2269
    %v2271 = vpop.f32.mrf.mxu0
    %v2272 = vadd.f32 %v2212, %v2271
    %v2273 = vpop.f32.mrf.mxu0
    %v2274 = vpop.f32.mrf.mxu0
    %2275 = vdwg.mxu0
    %2276 = vmatprep.subr.bf16.mxu0 %v2055
    %2277 = vmatpush1.bf16.msra.mxu0 %v2054
    %2278 = vmatprep.subr.bf16.mxu0 %v2049
    %2279 = vmatpush1.bf16.msra.mxu0 %v2048
    %2280 = vmatprep.subr.bf16.mxu0 %v2043
    %2281 = vmatpush1.bf16.msra.mxu0 %v2042
    %2282 = vmatprep.subr.bf16.mxu0 %v2037
    %2283 = vmatpush1.bf16.msra.mxu0 %v2036
    %2284 = vmatprep.subr.bf16.mxu0 %v2031
    %2285 = vmatpush1.bf16.msra.mxu0 %v2030
    %2286 = vmatprep.subr.bf16.mxu0 %v2025
    %2287 = vmatpush1.bf16.msra.mxu0 %v2024
    %2288 = vmatprep.subr.bf16.mxu0 %v2019
    %2289 = vmatpush1.bf16.msra.mxu0 %v2018
    %2290 = vmatprep.subr.bf16.mxu0 %v2013
    %2291 = vmatpush1.bf16.msra.mxu0 %v2012
    %2292 = vmatprep.subr.bf16.mxu0 0
    %2293 = vmatpush2.bf16.msra.mxu0 0
    %2294 = vmatprep.subr.bf16.mxu0 0
    %2295 = vmatpush2.bf16.msra.mxu0 0
    %2296 = vmatprep.subr.bf16.mxu0 0
    %2297 = vmatpush2.bf16.msra.mxu0 0
    %2298 = vmatprep.subr.bf16.mxu0 0
    %2299 = vmatpush2.bf16.msra.mxu0 0
    %2300 = vmatprep.subr.bf16.mxu0 0
    %2301 = vmatpush2.bf16.msra.mxu0 0
    %2302 = vmatprep.subr.bf16.mxu0 0
    %2303 = vmatpush2.bf16.msra.mxu0 0
    %2304 = vmatprep.subr.bf16.mxu0 0
    %2305 = vmatpush2.bf16.msra.mxu0 0
    %2306 = vmatprep.subr.bf16.mxu0 0
    %2307 = vmatpush2.bf16.msra.mxu0 0
    %2308 = vmatprep.mubr.bf16.mxu0 0
    %2309 = vmatmul.mubr.bf16.gmra.mxu0 %v1338
    %v2310 = vpop.f32.mrf.mxu0
    %v2311 = vadd.f32 %v2270, %v2310
    %v2312 = vpop.f32.mrf.mxu0
    %v2313 = vadd.f32 %v2272, %v2312
    %v2314 = vpop.f32.mrf.mxu0
    %v2315 = vpop.f32.mrf.mxu0
    %2316 = vdwg.mxu0
    %2317 = vmatprep.subr.bf16.mxu0 %v1961
    %2318 = vmatpush1.bf16.msra.mxu0 %v1960
    %2319 = vmatprep.subr.bf16.mxu0 %v1955
    %2320 = vmatpush1.bf16.msra.mxu0 %v1954
    %2321 = vmatprep.subr.bf16.mxu0 %v1949
    %2322 = vmatpush1.bf16.msra.mxu0 %v1948
    %2323 = vmatprep.subr.bf16.mxu0 %v1943
    %2324 = vmatpush1.bf16.msra.mxu0 %v1942
    %2325 = vmatprep.subr.bf16.mxu0 %v1937
    %2326 = vmatpush1.bf16.msra.mxu0 %v1936
    %2327 = vmatprep.subr.bf16.mxu0 %v1931
    %2328 = vmatpush1.bf16.msra.mxu0 %v1930
    %2329 = vmatprep.subr.bf16.mxu0 %v1925
    %2330 = vmatpush1.bf16.msra.mxu0 %v1924
    %2331 = vmatprep.subr.bf16.mxu0 %v1919
    %2332 = vmatpush1.bf16.msra.mxu0 %v1918
    %2333 = vmatprep.subr.bf16.mxu0 %v2009
    %2334 = vmatpush2.bf16.msra.mxu0 %v2008
    %2335 = vmatprep.subr.bf16.mxu0 %v2003
    %2336 = vmatpush2.bf16.msra.mxu0 %v2002
    %2337 = vmatprep.subr.bf16.mxu0 %v1997
    %2338 = vmatpush2.bf16.msra.mxu0 %v1996
    %2339 = vmatprep.subr.bf16.mxu0 %v1991
    %2340 = vmatpush2.bf16.msra.mxu0 %v1990
    %2341 = vmatprep.subr.bf16.mxu0 %v1985
    %2342 = vmatpush2.bf16.msra.mxu0 %v1984
    %2343 = vmatprep.subr.bf16.mxu0 %v1979
    %2344 = vmatpush2.bf16.msra.mxu0 %v1978
    %2345 = vmatprep.subr.bf16.mxu0 %v1973
    %2346 = vmatpush2.bf16.msra.mxu0 %v1972
    %2347 = vmatprep.subr.bf16.mxu0 %v1967
    %2348 = vmatpush2.bf16.msra.mxu0 %v1966
    %2349 = vmatprep.mubr.bf16.mxu0 %v1338
    %2350 = vmatmul.mubr.bf16.gmra.mxu0 %v1337
    %v2351 = vpop.f32.mrf.mxu0
    %v2352 = vadd.f32 %v2216, %v2351
    %v2353 = vpop.f32.mrf.mxu0
    %v2354 = vadd.f32 %v2220, %v2353
    %v2355 = vpop.f32.mrf.mxu0
    %v2356 = vpop.f32.mrf.mxu0
    %2357 = vdwg.mxu0
    %2358 = vmatprep.subr.bf16.mxu0 %v2057
    %2359 = vmatpush1.bf16.msra.mxu0 %v2056
    %2360 = vmatprep.subr.bf16.mxu0 %v2051
    %2361 = vmatpush1.bf16.msra.mxu0 %v2050
    %2362 = vmatprep.subr.bf16.mxu0 %v2045
    %2363 = vmatpush1.bf16.msra.mxu0 %v2044
    %2364 = vmatprep.subr.bf16.mxu0 %v2039
    %2365 = vmatpush1.bf16.msra.mxu0 %v2038
    %2366 = vmatprep.subr.bf16.mxu0 %v2033
    %2367 = vmatpush1.bf16.msra.mxu0 %v2032
    %2368 = vmatprep.subr.bf16.mxu0 %v2027
    %2369 = vmatpush1.bf16.msra.mxu0 %v2026
    %2370 = vmatprep.subr.bf16.mxu0 %v2021
    %2371 = vmatpush1.bf16.msra.mxu0 %v2020
    %2372 = vmatprep.subr.bf16.mxu0 %v2015
    %2373 = vmatpush1.bf16.msra.mxu0 %v2014
    %2374 = vmatprep.subr.bf16.mxu0 0
    %2375 = vmatpush2.bf16.msra.mxu0 0
    %2376 = vmatprep.subr.bf16.mxu0 0
    %2377 = vmatpush2.bf16.msra.mxu0 0
    %2378 = vmatprep.subr.bf16.mxu0 0
    %2379 = vmatpush2.bf16.msra.mxu0 0
    %2380 = vmatprep.subr.bf16.mxu0 0
    %2381 = vmatpush2.bf16.msra.mxu0 0
    %2382 = vmatprep.subr.bf16.mxu0 0
    %2383 = vmatpush2.bf16.msra.mxu0 0
    %2384 = vmatprep.subr.bf16.mxu0 0
    %2385 = vmatpush2.bf16.msra.mxu0 0
    %2386 = vmatprep.subr.bf16.mxu0 0
    %2387 = vmatpush2.bf16.msra.mxu0 0
    %2388 = vmatprep.subr.bf16.mxu0 0
    %2389 = vmatpush2.bf16.msra.mxu0 0
    %2390 = vmatprep.mubr.bf16.mxu0 0
    %2391 = vmatmul.mubr.bf16.gmra.mxu0 %v1338
    %v2392 = vpop.f32.mrf.mxu0
    %v2393 = vadd.f32 %v2352, %v2392
    %v2394 = vpop.f32.mrf.mxu0
    %v2395 = vadd.f32 %v2354, %v2394
    %v2396 = vpop.f32.mrf.mxu0
    %v2397 = vpop.f32.mrf.mxu0
    %2398 = vdwg.mxu0
    %2399 = vmatprep.subr.bf16.mxu0 %v1963
    %2400 = vmatpush1.bf16.msra.mxu0 %v1962
    %2401 = vmatprep.subr.bf16.mxu0 %v1957
    %2402 = vmatpush1.bf16.msra.mxu0 %v1956
    %2403 = vmatprep.subr.bf16.mxu0 %v1951
    %2404 = vmatpush1.bf16.msra.mxu0 %v1950
    %2405 = vmatprep.subr.bf16.mxu0 %v1945
    %2406 = vmatpush1.bf16.msra.mxu0 %v1944
    %2407 = vmatprep.subr.bf16.mxu0 %v1939
    %2408 = vmatpush1.bf16.msra.mxu0 %v1938
    %2409 = vmatprep.subr.bf16.mxu0 %v1933
    %2410 = vmatpush1.bf16.msra.mxu0 %v1932
    %2411 = vmatprep.subr.bf16.mxu0 %v1927
    %2412 = vmatpush1.bf16.msra.mxu0 %v1926
    %2413 = vmatprep.subr.bf16.mxu0 %v1921
    %2414 = vmatpush1.bf16.msra.mxu0 %v1920
    %2415 = vmatprep.subr.bf16.mxu0 %v2011
    %2416 = vmatpush2.bf16.msra.mxu0 %v2010
    %2417 = vmatprep.subr.bf16.mxu0 %v2005
    %2418 = vmatpush2.bf16.msra.mxu0 %v2004
    %2419 = vmatprep.subr.bf16.mxu0 %v1999
    %2420 = vmatpush2.bf16.msra.mxu0 %v1998
    %2421 = vmatprep.subr.bf16.mxu0 %v1993
    %2422 = vmatpush2.bf16.msra.mxu0 %v1992
    %2423 = vmatprep.subr.bf16.mxu0 %v1987
    %2424 = vmatpush2.bf16.msra.mxu0 %v1986
    %2425 = vmatprep.subr.bf16.mxu0 %v1981
    %2426 = vmatpush2.bf16.msra.mxu0 %v1980
    %2427 = vmatprep.subr.bf16.mxu0 %v1975
    %2428 = vmatpush2.bf16.msra.mxu0 %v1974
    %2429 = vmatprep.subr.bf16.mxu0 %v1969
    %2430 = vmatpush2.bf16.msra.mxu0 %v1968
    %2431 = vmatprep.mubr.bf16.mxu0 %v1338
    %2432 = vmatmul.mubr.bf16.gmra.mxu0 %v1337
    %v2433 = vpop.f32.mrf.mxu0
    %v2434 = vadd.f32 %v2224, %v2433
    %v2435 = vpop.f32.mrf.mxu0
    %v2436 = vadd.f32 %v2228, %v2435
    %v2437 = vpop.f32.mrf.mxu0
    %v2438 = vpop.f32.mrf.mxu0
    %2439 = vdwg.mxu0
    %2440 = vmatprep.subr.bf16.mxu0 %v2059
    %2441 = vmatpush1.bf16.msra.mxu0 %v2058
    %2442 = vmatprep.subr.bf16.mxu0 %v2053
    %2443 = vmatpush1.bf16.msra.mxu0 %v2052
    %2444 = vmatprep.subr.bf16.mxu0 %v2047
    %2445 = vmatpush1.bf16.msra.mxu0 %v2046
    %2446 = vmatprep.subr.bf16.mxu0 %v2041
    %2447 = vmatpush1.bf16.msra.mxu0 %v2040
    %2448 = vmatprep.subr.bf16.mxu0 %v2035
    %2449 = vmatpush1.bf16.msra.mxu0 %v2034
    %2450 = vmatprep.subr.bf16.mxu0 %v2029
    %2451 = vmatpush1.bf16.msra.mxu0 %v2028
    %2452 = vmatprep.subr.bf16.mxu0 %v2023
    %2453 = vmatpush1.bf16.msra.mxu0 %v2022
    %2454 = vmatprep.subr.bf16.mxu0 %v2017
    %2455 = vmatpush1.bf16.msra.mxu0 %v2016
    %2456 = vmatprep.subr.bf16.mxu0 0
    %2457 = vmatpush2.bf16.msra.mxu0 0
    %2458 = vmatprep.subr.bf16.mxu0 0
    %2459 = vmatpush2.bf16.msra.mxu0 0
    %2460 = vmatprep.subr.bf16.mxu0 0
    %2461 = vmatpush2.bf16.msra.mxu0 0
    %2462 = vmatprep.subr.bf16.mxu0 0
    %2463 = vmatpush2.bf16.msra.mxu0 0
    %2464 = vmatprep.subr.bf16.mxu0 0
    %2465 = vmatpush2.bf16.msra.mxu0 0
    %2466 = vmatprep.subr.bf16.mxu0 0
    %2467 = vmatpush2.bf16.msra.mxu0 0
    %2468 = vmatprep.subr.bf16.mxu0 0
    %2469 = vmatpush2.bf16.msra.mxu0 0
    %2470 = vmatprep.subr.bf16.mxu0 0
    %2471 = vmatpush2.bf16.msra.mxu0 0
    %2472 = vmatprep.mubr.bf16.mxu0 0
    %2473 = vmatmul.mubr.bf16.gmra.mxu0 %v1338
    %v2474 = vpop.f32.mrf.mxu0
    %v2475 = vadd.f32 %v2434, %v2474
    %v2476 = vpop.f32.mrf.mxu0
    %v2477 = vadd.f32 %v2436, %v2476
    %v2478 = vpop.f32.mrf.mxu0
    %v2479 = vpop.f32.mrf.mxu0
    %2480 = vdwg.mxu0
    %v2481 = vxor.u32 %v2311, 2147483648
    %v2482 = vxor.u32 %v2313, 2147483648
    %v2483 = vmul.f32 %v2481, 1.442695
    %v2484 = vpow.pop %v2483
    %v2485 = vmul.f32 %v2482, 1.442695
    %v2486 = vpow.pop %v2485
    %v2487 = vadd.f32 %v2484, 1.0
    %v2488 = vadd.f32 %v2486, 1.0
    %v2489 = vrcp.pop %v2487
    %v2490 = vmul.f32 1.0, %v2489
    %v2491 = vrcp.pop %v2488
    %v2492 = vmul.f32 1.0, %v2491
    %v2493 = vtanh.pop %v2393
    %v2494 = vtanh.pop %v2395
    %v2495 = vxor.u32 %v2475, 2147483648
    %v2496 = vxor.u32 %v2477, 2147483648
    %v2497 = vmul.f32 %v2495, 1.442695
    %v2498 = vpow.pop %v2497
    %v2499 = vmul.f32 %v2496, 1.442695
    %v2500 = vpow.pop %v2499
    %v2501 = vadd.f32 %v2498, 1.0
    %v2502 = vadd.f32 %v2500, 1.0
    %v2503 = vrcp.pop %v2501
    %v2504 = vmul.f32 1.0, %v2503
    %v2505 = vrcp.pop %v2502
    %v2506 = vmul.f32 1.0, %v2505
    %v2507 = vmul.f32 %v2490, %v2493
    %v2508 = vmul.f32 %v2492, %v2494
    %v2509 = vtanh.pop %v2507
    %v2510 = vtanh.pop %v2508
    %v2511 = vmul.f32 %v2504, %v2509
    %v2512 = vmul.f32 %v2506, %v2510
    %v2513 = vpack.c.bf16 %v2511, %v2511
    %v2514 = vpack.c.bf16 %v2512, %v2512
    %v2515 = vld [vmem:[%s9] sm:$0xff]
    %v2516 = vld [vmem:[%s9 + $0x10] sm:$0xff]
    %v2517 = vld [vmem:[%s9 + $0x18] sm:$0xff]
    %v2518 = vld [vmem:[%s9 + $0x20] sm:$0xff]
    %v2519 = vld [vmem:[%s9 + $0x30] sm:$0xff]
    %v2520 = vld [vmem:[%s9 + $0x38] sm:$0xff]
    %v2521 = vld [vmem:[%s9 + $0x40] sm:$0xff]
    %v2522 = vld [vmem:[%s9 + $0x50] sm:$0xff]
    %v2523 = vld [vmem:[%s9 + $0x58] sm:$0xff]
    %v2524 = vld [vmem:[%s9 + $0x60] sm:$0xff]
    %v2525 = vld [vmem:[%s9 + $0x70] sm:$0xff]
    %v2526 = vld [vmem:[%s9 + $0x78] sm:$0xff]
    %v2527 = vld [vmem:[%s9 + $0x80] sm:$0xff]
    %v2528 = vld [vmem:[%s9 + $0x90] sm:$0xff]
    %v2529 = vld [vmem:[%s9 + $0x98] sm:$0xff]
    %v2530 = vld [vmem:[%s9 + $0xa0] sm:$0xff]
    %v2531 = vld [vmem:[%s9 + $0xb0] sm:$0xff]
    %v2532 = vld [vmem:[%s9 + $0xb8] sm:$0xff]
    %v2533 = vld [vmem:[%s9 + $0xc0] sm:$0xff]
    %v2534 = vld [vmem:[%s9 + $0xd0] sm:$0xff]
    %v2535 = vld [vmem:[%s9 + $0xd8] sm:$0xff]
    %v2536 = vld [vmem:[%s9 + $0xe0] sm:$0xff]
    %v2537 = vld [vmem:[%s9 + $0xf0] sm:$0xff]
    %v2538 = vld [vmem:[%s9 + $0xf8] sm:$0xff]
    %v2539 = vld [vmem:[%s9 + $0x100] sm:$0xff]
    %v2540 = vld [vmem:[%s9 + $0x110] sm:$0xff]
    %v2541 = vld [vmem:[%s9 + $0x118] sm:$0xff]
    %v2542 = vld [vmem:[%s9 + $0x120] sm:$0xff]
    %v2543 = vld [vmem:[%s9 + $0x130] sm:$0xff]
    %v2544 = vld [vmem:[%s9 + $0x138] sm:$0xff]
    %v2545 = vld [vmem:[%s9 + $0x140] sm:$0xff]
    %v2546 = vld [vmem:[%s9 + $0x150] sm:$0xff]
    %v2547 = vld [vmem:[%s9 + $0x158] sm:$0xff]
    %v2548 = vld [vmem:[%s9 + $0x160] sm:$0xff]
    %v2549 = vld [vmem:[%s9 + $0x170] sm:$0xff]
    %v2550 = vld [vmem:[%s9 + $0x178] sm:$0xff]
    %v2551 = vld [vmem:[%s9 + $0x180] sm:$0xff]
    %v2552 = vld [vmem:[%s9 + $0x190] sm:$0xff]
    %v2553 = vld [vmem:[%s9 + $0x198] sm:$0xff]
    %v2554 = vld [vmem:[%s9 + $0x1a0] sm:$0xff]
    %v2555 = vld [vmem:[%s9 + $0x1b0] sm:$0xff]
    %v2556 = vld [vmem:[%s9 + $0x1b8] sm:$0xff]
    %v2557 = vld [vmem:[%s9 + $0x1c0] sm:$0xff]
    %v2558 = vld [vmem:[%s9 + $0x1d0] sm:$0xff]
    %v2559 = vld [vmem:[%s9 + $0x1d8] sm:$0xff]
    %v2560 = vld [vmem:[%s9 + $0x1e0] sm:$0xff]
    %v2561 = vld [vmem:[%s9 + $0x1f0] sm:$0xff]
    %v2562 = vld [vmem:[%s9 + $0x1f8] sm:$0xff]
    %v2563 = vld [vmem:[%s9 + $0x200] sm:$0xff]
    %v2564 = vld [vmem:[%s9 + $0x210] sm:$0xff]
    %v2565 = vld [vmem:[%s9 + $0x218] sm:$0xff]
    %v2566 = vld [vmem:[%s9 + $0x220] sm:$0xff]
    %v2567 = vld [vmem:[%s9 + $0x230] sm:$0xff]
    %v2568 = vld [vmem:[%s9 + $0x238] sm:$0xff]
    %v2569 = vld [vmem:[%s9 + $0x240] sm:$0xff]
    %v2570 = vld [vmem:[%s9 + $0x250] sm:$0xff]
    %v2571 = vld [vmem:[%s9 + $0x258] sm:$0xff]
    %v2572 = vld [vmem:[%s9 + $0x260] sm:$0xff]
    %v2573 = vld [vmem:[%s9 + $0x270] sm:$0xff]
    %v2574 = vld [vmem:[%s9 + $0x278] sm:$0xff]
    %v2575 = vld [vmem:[%s9 + $0x280] sm:$0xff]
    %v2576 = vld [vmem:[%s9 + $0x290] sm:$0xff]
    %v2577 = vld [vmem:[%s9 + $0x298] sm:$0xff]
    %v2578 = vld [vmem:[%s9 + $0x2a0] sm:$0xff]
    %v2579 = vld [vmem:[%s9 + $0x2b0] sm:$0xff]
    %v2580 = vld [vmem:[%s9 + $0x2b8] sm:$0xff]
    %v2581 = vld [vmem:[%s9 + $0x2c0] sm:$0xff]
    %v2582 = vld [vmem:[%s9 + $0x2d0] sm:$0xff]
    %v2583 = vld [vmem:[%s9 + $0x2d8] sm:$0xff]
    %v2584 = vld [vmem:[%s9 + $0x2e0] sm:$0xff]
    %v2585 = vld [vmem:[%s9 + $0x2f0] sm:$0xff]
    %v2586 = vld [vmem:[%s9 + $0x2f8] sm:$0xff]
    %v2587 = vld [vmem:[%s9 + $0x300] sm:$0xff]
    %v2588 = vld [vmem:[%s9 + $0x310] sm:$0xff]
    %v2589 = vld [vmem:[%s9 + $0x318] sm:$0xff]
    %v2590 = vld [vmem:[%s9 + $0x320] sm:$0xff]
    %v2591 = vld [vmem:[%s9 + $0x330] sm:$0xff]
    %v2592 = vld [vmem:[%s9 + $0x338] sm:$0xff]
    %v2593 = vld [vmem:[%s9 + $0x340] sm:$0xff]
    %v2594 = vld [vmem:[%s9 + $0x350] sm:$0xff]
    %v2595 = vld [vmem:[%s9 + $0x358] sm:$0xff]
    %v2596 = vld [vmem:[%s9 + $0x360] sm:$0xff]
    %v2597 = vld [vmem:[%s9 + $0x370] sm:$0xff]
    %v2598 = vld [vmem:[%s9 + $0x378] sm:$0xff]
    %v2599 = vld [vmem:[%s9 + $0x380] sm:$0xff]
    %v2600 = vld [vmem:[%s9 + $0x390] sm:$0xff]
    %v2601 = vld [vmem:[%s9 + $0x398] sm:$0xff]
    %v2602 = vld [vmem:[%s9 + $0x3a0] sm:$0xff]
    %v2603 = vld [vmem:[%s9 + $0x3b0] sm:$0xff]
    %v2604 = vld [vmem:[%s9 + $0x3b8] sm:$0xff]
    %v2605 = vld [vmem:[%s9 + $0x3c0] sm:$0xff]
    %v2606 = vld [vmem:[%s9 + $0x3d0] sm:$0xff]
    %v2607 = vld [vmem:[%s9 + $0x3d8] sm:$0xff]
    %v2608 = vld [vmem:[%s9 + $0x3e0] sm:$0xff]
    %v2609 = vld [vmem:[%s9 + $0x3f0] sm:$0xff]
    %v2610 = vld [vmem:[%s9 + $0x3f8] sm:$0xff]
    %v2611 = vld [vmem:[%s10] sm:$0xff]
    %v2708 = vunpack.c.l.b16 %v2515
    %v2709 = vunpack.c.h.b16 %v2515
    %v2710 = vunpack.c.l.b16 %v2516
    %v2711 = vunpack.c.h.b16 %v2516
    %v2712 = vunpack.c.l.b16 %v2517
    %v2713 = vunpack.c.h.b16 %v2517
    %v2714 = vunpack.c.l.b16 %v2518
    %v2715 = vunpack.c.h.b16 %v2518
    %v2716 = vunpack.c.l.b16 %v2519
    %v2717 = vunpack.c.h.b16 %v2519
    %v2718 = vunpack.c.l.b16 %v2520
    %v2719 = vunpack.c.h.b16 %v2520
    %v2720 = vunpack.c.l.b16 %v2521
    %v2721 = vunpack.c.h.b16 %v2521
    %v2722 = vunpack.c.l.b16 %v2522
    %v2723 = vunpack.c.h.b16 %v2522
    %v2724 = vunpack.c.l.b16 %v2523
    %v2725 = vunpack.c.h.b16 %v2523
    %v2726 = vunpack.c.l.b16 %v2524
    %v2727 = vunpack.c.h.b16 %v2524
    %v2728 = vunpack.c.l.b16 %v2525
    %v2729 = vunpack.c.h.b16 %v2525
    %v2730 = vunpack.c.l.b16 %v2526
    %v2731 = vunpack.c.h.b16 %v2526
    %v2732 = vunpack.c.l.b16 %v2527
    %v2733 = vunpack.c.h.b16 %v2527
    %v2734 = vunpack.c.l.b16 %v2528
    %v2735 = vunpack.c.h.b16 %v2528
    %v2736 = vunpack.c.l.b16 %v2529
    %v2737 = vunpack.c.h.b16 %v2529
    %v2738 = vunpack.c.l.b16 %v2530
    %v2739 = vunpack.c.h.b16 %v2530
    %v2740 = vunpack.c.l.b16 %v2531
    %v2741 = vunpack.c.h.b16 %v2531
    %v2742 = vunpack.c.l.b16 %v2532
    %v2743 = vunpack.c.h.b16 %v2532
    %v2744 = vunpack.c.l.b16 %v2533
    %v2745 = vunpack.c.h.b16 %v2533
    %v2746 = vunpack.c.l.b16 %v2534
    %v2747 = vunpack.c.h.b16 %v2534
    %v2748 = vunpack.c.l.b16 %v2535
    %v2749 = vunpack.c.h.b16 %v2535
    %v2750 = vunpack.c.l.b16 %v2536
    %v2751 = vunpack.c.h.b16 %v2536
    %v2752 = vunpack.c.l.b16 %v2537
    %v2753 = vunpack.c.h.b16 %v2537
    %v2754 = vunpack.c.l.b16 %v2538
    %v2755 = vunpack.c.h.b16 %v2538
    %v2756 = vunpack.c.l.b16 %v2539
    %v2757 = vunpack.c.h.b16 %v2539
    %v2758 = vunpack.c.l.b16 %v2540
    %v2759 = vunpack.c.h.b16 %v2540
    %v2760 = vunpack.c.l.b16 %v2541
    %v2761 = vunpack.c.h.b16 %v2541
    %v2762 = vunpack.c.l.b16 %v2542
    %v2763 = vunpack.c.h.b16 %v2542
    %v2764 = vunpack.c.l.b16 %v2543
    %v2765 = vunpack.c.h.b16 %v2543
    %v2766 = vunpack.c.l.b16 %v2544
    %v2767 = vunpack.c.h.b16 %v2544
    %v2768 = vunpack.c.l.b16 %v2545
    %v2769 = vunpack.c.h.b16 %v2545
    %v2770 = vunpack.c.l.b16 %v2546
    %v2771 = vunpack.c.h.b16 %v2546
    %v2772 = vunpack.c.l.b16 %v2547
    %v2773 = vunpack.c.h.b16 %v2547
    %v2774 = vunpack.c.l.b16 %v2548
    %v2775 = vunpack.c.h.b16 %v2548
    %v2776 = vunpack.c.l.b16 %v2549
    %v2777 = vunpack.c.h.b16 %v2549
    %v2778 = vunpack.c.l.b16 %v2550
    %v2779 = vunpack.c.h.b16 %v2550
    %v2780 = vunpack.c.l.b16 %v2551
    %v2781 = vunpack.c.h.b16 %v2551
    %v2782 = vunpack.c.l.b16 %v2552
    %v2783 = vunpack.c.h.b16 %v2552
    %v2784 = vunpack.c.l.b16 %v2553
    %v2785 = vunpack.c.h.b16 %v2553
    %v2786 = vunpack.c.l.b16 %v2554
    %v2787 = vunpack.c.h.b16 %v2554
    %v2788 = vunpack.c.l.b16 %v2555
    %v2789 = vunpack.c.h.b16 %v2555
    %v2790 = vunpack.c.l.b16 %v2556
    %v2791 = vunpack.c.h.b16 %v2556
    %v2792 = vunpack.c.l.b16 %v2557
    %v2793 = vunpack.c.h.b16 %v2557
    %v2794 = vunpack.c.l.b16 %v2558
    %v2795 = vunpack.c.h.b16 %v2558
    %v2796 = vunpack.c.l.b16 %v2559
    %v2797 = vunpack.c.h.b16 %v2559
    %v2798 = vunpack.c.l.b16 %v2560
    %v2799 = vunpack.c.h.b16 %v2560
    %v2800 = vunpack.c.l.b16 %v2561
    %v2801 = vunpack.c.h.b16 %v2561
    %v2802 = vunpack.c.l.b16 %v2562
    %v2803 = vunpack.c.h.b16 %v2562
    %v2804 = vunpack.c.l.b16 %v2563
    %v2805 = vunpack.c.h.b16 %v2563
    %v2806 = vunpack.c.l.b16 %v2564
    %v2807 = vunpack.c.h.b16 %v2564
    %v2808 = vunpack.c.l.b16 %v2565
    %v2809 = vunpack.c.h.b16 %v2565
    %v2810 = vunpack.c.l.b16 %v2566
    %v2811 = vunpack.c.h.b16 %v2566
    %v2812 = vunpack.c.l.b16 %v2567
    %v2813 = vunpack.c.h.b16 %v2567
    %v2814 = vunpack.c.l.b16 %v2568
    %v2815 = vunpack.c.h.b16 %v2568
    %v2816 = vunpack.c.l.b16 %v2569
    %v2817 = vunpack.c.h.b16 %v2569
    %v2818 = vunpack.c.l.b16 %v2570
    %v2819 = vunpack.c.h.b16 %v2570
    %v2820 = vunpack.c.l.b16 %v2571
    %v2821 = vunpack.c.h.b16 %v2571
    %v2822 = vunpack.c.l.b16 %v2572
    %v2823 = vunpack.c.h.b16 %v2572
    %v2824 = vunpack.c.l.b16 %v2573
    %v2825 = vunpack.c.h.b16 %v2573
    %v2826 = vunpack.c.l.b16 %v2574
    %v2827 = vunpack.c.h.b16 %v2574
    %v2828 = vunpack.c.l.b16 %v2575
    %v2829 = vunpack.c.h.b16 %v2575
    %v2830 = vunpack.c.l.b16 %v2576
    %v2831 = vunpack.c.h.b16 %v2576
    %v2832 = vunpack.c.l.b16 %v2577
    %v2833 = vunpack.c.h.b16 %v2577
    %v2834 = vunpack.c.l.b16 %v2578
    %v2835 = vunpack.c.h.b16 %v2578
    %v2836 = vunpack.c.l.b16 %v2579
    %v2837 = vunpack.c.h.b16 %v2579
    %v2838 = vunpack.c.l.b16 %v2580
    %v2839 = vunpack.c.h.b16 %v2580
    %v2840 = vunpack.c.l.b16 %v2581
    %v2841 = vunpack.c.h.b16 %v2581
    %v2842 = vunpack.c.l.b16 %v2582
    %v2843 = vunpack.c.h.b16 %v2582
    %v2844 = vunpack.c.l.b16 %v2583
    %v2845 = vunpack.c.h.b16 %v2583
    %v2846 = vunpack.c.l.b16 %v2584
    %v2847 = vunpack.c.h.b16 %v2584
    %v2848 = vunpack.c.l.b16 %v2585
    %v2849 = vunpack.c.h.b16 %v2585
    %v2850 = vunpack.c.l.b16 %v2586
    %v2851 = vunpack.c.h.b16 %v2586
    %v2852 = vunpack.c.l.b16 %v2587
    %v2853 = vunpack.c.h.b16 %v2587
    %v2854 = vunpack.c.l.b16 %v2588
    %v2855 = vunpack.c.h.b16 %v2588
    %v2856 = vunpack.c.l.b16 %v2589
    %v2857 = vunpack.c.h.b16 %v2589
    %v2858 = vunpack.c.l.b16 %v2590
    %v2859 = vunpack.c.h.b16 %v2590
    %v2860 = vunpack.c.l.b16 %v2591
    %v2861 = vunpack.c.h.b16 %v2591
    %v2862 = vunpack.c.l.b16 %v2592
    %v2863 = vunpack.c.h.b16 %v2592
    %v2864 = vunpack.c.l.b16 %v2593
    %v2865 = vunpack.c.h.b16 %v2593
    %v2866 = vunpack.c.l.b16 %v2594
    %v2867 = vunpack.c.h.b16 %v2594
    %v2868 = vunpack.c.l.b16 %v2595
    %v2869 = vunpack.c.h.b16 %v2595
    %v2870 = vunpack.c.l.b16 %v2596
    %v2871 = vunpack.c.h.b16 %v2596
    %v2872 = vunpack.c.l.b16 %v2597
    %v2873 = vunpack.c.h.b16 %v2597
    %v2874 = vunpack.c.l.b16 %v2598
    %v2875 = vunpack.c.h.b16 %v2598
    %v2876 = vunpack.c.l.b16 %v2599
    %v2877 = vunpack.c.h.b16 %v2599
    %v2878 = vunpack.c.l.b16 %v2600
    %v2879 = vunpack.c.h.b16 %v2600
    %v2880 = vunpack.c.l.b16 %v2601
    %v2881 = vunpack.c.h.b16 %v2601
    %v2882 = vunpack.c.l.b16 %v2602
    %v2883 = vunpack.c.h.b16 %v2602
    %v2884 = vunpack.c.l.b16 %v2603
    %v2885 = vunpack.c.h.b16 %v2603
    %v2886 = vunpack.c.l.b16 %v2604
    %v2887 = vunpack.c.h.b16 %v2604
    %v2888 = vunpack.c.l.b16 %v2605
    %v2889 = vunpack.c.h.b16 %v2605
    %v2890 = vunpack.c.l.b16 %v2606
    %v2891 = vunpack.c.h.b16 %v2606
    %v2892 = vunpack.c.l.b16 %v2607
    %v2893 = vunpack.c.h.b16 %v2607
    %v2894 = vunpack.c.l.b16 %v2608
    %v2895 = vunpack.c.h.b16 %v2608
    %v2896 = vunpack.c.l.b16 %v2609
    %v2897 = vunpack.c.h.b16 %v2609
    %v2898 = vunpack.c.l.b16 %v2610
    %v2899 = vunpack.c.h.b16 %v2610
    %v2900 = vpack.c.b16 %v2714, %v2708
    %v2901 = vpack.c.b16 %v2715, %v2709
    %v2902 = vpack.c.b16 %v2716, %v2710
    %v2903 = vpack.c.b16 %v2717, %v2711
    %v2904 = vpack.c.b16 %v2718, %v2712
    %v2905 = vpack.c.b16 %v2719, %v2713
    %v2906 = vpack.c.b16 %v2726, %v2720
    %v2907 = vpack.c.b16 %v2727, %v2721
    %v2908 = vpack.c.b16 %v2728, %v2722
    %v2909 = vpack.c.b16 %v2729, %v2723
    %v2910 = vpack.c.b16 %v2730, %v2724
    %v2911 = vpack.c.b16 %v2731, %v2725
    %v2912 = vpack.c.b16 %v2738, %v2732
    %v2913 = vpack.c.b16 %v2739, %v2733
    %v2914 = vpack.c.b16 %v2740, %v2734
    %v2915 = vpack.c.b16 %v2741, %v2735
    %v2916 = vpack.c.b16 %v2742, %v2736
    %v2917 = vpack.c.b16 %v2743, %v2737
    %v2918 = vpack.c.b16 %v2750, %v2744
    %v2919 = vpack.c.b16 %v2751, %v2745
    %v2920 = vpack.c.b16 %v2752, %v2746
    %v2921 = vpack.c.b16 %v2753, %v2747
    %v2922 = vpack.c.b16 %v2754, %v2748
    %v2923 = vpack.c.b16 %v2755, %v2749
    %v2924 = vpack.c.b16 %v2762, %v2756
    %v2925 = vpack.c.b16 %v2763, %v2757
    %v2926 = vpack.c.b16 %v2764, %v2758
    %v2927 = vpack.c.b16 %v2765, %v2759
    %v2928 = vpack.c.b16 %v2766, %v2760
    %v2929 = vpack.c.b16 %v2767, %v2761
    %v2930 = vpack.c.b16 %v2774, %v2768
    %v2931 = vpack.c.b16 %v2775, %v2769
    %v2932 = vpack.c.b16 %v2776, %v2770
    %v2933 = vpack.c.b16 %v2777, %v2771
    %v2934 = vpack.c.b16 %v2778, %v2772
    %v2935 = vpack.c.b16 %v2779, %v2773
    %v2936 = vpack.c.b16 %v2786, %v2780
    %v2937 = vpack.c.b16 %v2787, %v2781
    %v2938 = vpack.c.b16 %v2788, %v2782
    %v2939 = vpack.c.b16 %v2789, %v2783
    %v2940 = vpack.c.b16 %v2790, %v2784
    %v2941 = vpack.c.b16 %v2791, %v2785
    %v2942 = vpack.c.b16 %v2798, %v2792
    %v2943 = vpack.c.b16 %v2799, %v2793
    %v2944 = vpack.c.b16 %v2800, %v2794
    %v2945 = vpack.c.b16 %v2801, %v2795
    %v2946 = vpack.c.b16 %v2802, %v2796
    %v2947 = vpack.c.b16 %v2803, %v2797
    %v2948 = vpack.c.b16 %v2810, %v2804
    %v2949 = vpack.c.b16 %v2811, %v2805
    %v2950 = vpack.c.b16 %v2812, %v2806
    %v2951 = vpack.c.b16 %v2813, %v2807
    %v2952 = vpack.c.b16 %v2814, %v2808
    %v2953 = vpack.c.b16 %v2815, %v2809
    %v2954 = vpack.c.b16 %v2822, %v2816
    %v2955 = vpack.c.b16 %v2823, %v2817
    %v2956 = vpack.c.b16 %v2824, %v2818
    %v2957 = vpack.c.b16 %v2825, %v2819
    %v2958 = vpack.c.b16 %v2826, %v2820
    %v2959 = vpack.c.b16 %v2827, %v2821
    %v2960 = vpack.c.b16 %v2834, %v2828
    %v2961 = vpack.c.b16 %v2835, %v2829
    %v2962 = vpack.c.b16 %v2836, %v2830
    %v2963 = vpack.c.b16 %v2837, %v2831
    %v2964 = vpack.c.b16 %v2838, %v2832
    %v2965 = vpack.c.b16 %v2839, %v2833
    %v2966 = vpack.c.b16 %v2846, %v2840
    %v2967 = vpack.c.b16 %v2847, %v2841
    %v2968 = vpack.c.b16 %v2848, %v2842
    %v2969 = vpack.c.b16 %v2849, %v2843
    %v2970 = vpack.c.b16 %v2850, %v2844
    %v2971 = vpack.c.b16 %v2851, %v2845
    %v2972 = vpack.c.b16 %v2858, %v2852
    %v2973 = vpack.c.b16 %v2859, %v2853
    %v2974 = vpack.c.b16 %v2860, %v2854
    %v2975 = vpack.c.b16 %v2861, %v2855
    %v2976 = vpack.c.b16 %v2862, %v2856
    %v2977 = vpack.c.b16 %v2863, %v2857
    %v2978 = vpack.c.b16 %v2870, %v2864
    %v2979 = vpack.c.b16 %v2871, %v2865
    %v2980 = vpack.c.b16 %v2872, %v2866
    %v2981 = vpack.c.b16 %v2873, %v2867
    %v2982 = vpack.c.b16 %v2874, %v2868
    %v2983 = vpack.c.b16 %v2875, %v2869
    %v2984 = vpack.c.b16 %v2882, %v2876
    %v2985 = vpack.c.b16 %v2883, %v2877
    %v2986 = vpack.c.b16 %v2884, %v2878
    %v2987 = vpack.c.b16 %v2885, %v2879
    %v2988 = vpack.c.b16 %v2886, %v2880
    %v2989 = vpack.c.b16 %v2887, %v2881
    %v2990 = vpack.c.b16 %v2894, %v2888
    %v2991 = vpack.c.b16 %v2895, %v2889
    %v2992 = vpack.c.b16 %v2896, %v2890
    %v2993 = vpack.c.b16 %v2897, %v2891
    %v2994 = vpack.c.b16 %v2898, %v2892
    %v2995 = vpack.c.b16 %v2899, %v2893
    %v3093 = vlaneseq
    %v3094 = vshrl.u32 %v3093, 7
    %v3095 = vsub.s32 0, %v3094
    %v3096 = vrot.slane %v2611, %v3095
    %v3097 = vlaneseq
    %v3098 = vshrl.u32 %v3097, 7
    %v3099 = vsub.s32 1, %v3098
    %v3100 = vrot.slane %v2611, %v3099
    %v3101 = vlaneseq
    %v3102 = vshrl.u32 %v3101, 7
    %v3103 = vsub.s32 4, %v3102
    %v3104 = vrot.slane %v2611, %v3103
    %v3105 = vlaneseq
    %v3106 = vshrl.u32 %v3105, 7
    %v3107 = vsub.s32 5, %v3106
    %v3108 = vrot.slane %v2611, %v3107
    %v3109 = vlaneseq
    %v3110 = vshrl.u32 %v3109, 7
    %v3111 = vsub.s32 6, %v3110
    %v3112 = vrot.slane %v2611, %v3111
    %v3113 = vlaneseq
    %v3114 = vshrl.u32 %v3113, 7
    %v3115 = vsub.s32 7, %v3114
    %v3116 = vrot.slane %v2611, %v3115
    %3123 = vmatprep.subr.bf16.mxu0 %v2943
    %3124 = vmatpush1.bf16.msra.mxu0 %v2942
    %3125 = vmatprep.subr.bf16.mxu0 %v2937
    %3126 = vmatpush1.bf16.msra.mxu0 %v2936
    %3127 = vmatprep.subr.bf16.mxu0 %v2931
    %3128 = vmatpush1.bf16.msra.mxu0 %v2930
    %3129 = vmatprep.subr.bf16.mxu0 %v2925
    %3130 = vmatpush1.bf16.msra.mxu0 %v2924
    %3131 = vmatprep.subr.bf16.mxu0 %v2919
    %3132 = vmatpush1.bf16.msra.mxu0 %v2918
    %3133 = vmatprep.subr.bf16.mxu0 %v2913
    %3134 = vmatpush1.bf16.msra.mxu0 %v2912
    %3135 = vmatprep.subr.bf16.mxu0 %v2907
    %3136 = vmatpush1.bf16.msra.mxu0 %v2906
    %3137 = vmatprep.subr.bf16.mxu0 %v2901
    %3138 = vmatpush1.bf16.msra.mxu0 %v2900
    %3139 = vmatprep.subr.bf16.mxu0 %v2991
    %3140 = vmatpush2.bf16.msra.mxu0 %v2990
    %3141 = vmatprep.subr.bf16.mxu0 %v2985
    %3142 = vmatpush2.bf16.msra.mxu0 %v2984
    %3143 = vmatprep.subr.bf16.mxu0 %v2979
    %3144 = vmatpush2.bf16.msra.mxu0 %v2978
    %3145 = vmatprep.subr.bf16.mxu0 %v2973
    %3146 = vmatpush2.bf16.msra.mxu0 %v2972
    %3147 = vmatprep.subr.bf16.mxu0 %v2967
    %3148 = vmatpush2.bf16.msra.mxu0 %v2966
    %3149 = vmatprep.subr.bf16.mxu0 %v2961
    %3150 = vmatpush2.bf16.msra.mxu0 %v2960
    %3151 = vmatprep.subr.bf16.mxu0 %v2955
    %3152 = vmatpush2.bf16.msra.mxu0 %v2954
    %3153 = vmatprep.subr.bf16.mxu0 %v2949
    %3154 = vmatpush2.bf16.msra.mxu0 %v2948
    %3155 = vmatprep.mubr.bf16.mxu0 %v2514
    %3156 = vmatmul.mubr.bf16.gmra.mxu0 %v2513
    %v3157 = vpop.f32.mrf.mxu0
    %v3158 = vadd.f32 %v3096, %v3157
    %v3159 = vpop.f32.mrf.mxu0
    %v3160 = vadd.f32 %v3100, %v3159
    %v3161 = vpop.f32.mrf.mxu0
    %v3162 = vpop.f32.mrf.mxu0
    %3163 = vdwg.mxu0
    %3164 = vmatprep.subr.bf16.mxu0 %v2945
    %3165 = vmatpush1.bf16.msra.mxu0 %v2944
    %3166 = vmatprep.subr.bf16.mxu0 %v2939
    %3167 = vmatpush1.bf16.msra.mxu0 %v2938
    %3168 = vmatprep.subr.bf16.mxu0 %v2933
    %3169 = vmatpush1.bf16.msra.mxu0 %v2932
    %3170 = vmatprep.subr.bf16.mxu0 %v2927
    %3171 = vmatpush1.bf16.msra.mxu0 %v2926
    %3172 = vmatprep.subr.bf16.mxu0 %v2921
    %3173 = vmatpush1.bf16.msra.mxu0 %v2920
    %3174 = vmatprep.subr.bf16.mxu0 %v2915
    %3175 = vmatpush1.bf16.msra.mxu0 %v2914
    %3176 = vmatprep.subr.bf16.mxu0 %v2909
    %3177 = vmatpush1.bf16.msra.mxu0 %v2908
    %3178 = vmatprep.subr.bf16.mxu0 %v2903
    %3179 = vmatpush1.bf16.msra.mxu0 %v2902
    %3180 = vmatprep.subr.bf16.mxu0 %v2993
    %3181 = vmatpush2.bf16.msra.mxu0 %v2992
    %3182 = vmatprep.subr.bf16.mxu0 %v2987
    %3183 = vmatpush2.bf16.msra.mxu0 %v2986
    %3184 = vmatprep.subr.bf16.mxu0 %v2981
    %3185 = vmatpush2.bf16.msra.mxu0 %v2980
    %3186 = vmatprep.subr.bf16.mxu0 %v2975
    %3187 = vmatpush2.bf16.msra.mxu0 %v2974
    %3188 = vmatprep.subr.bf16.mxu0 %v2969
    %3189 = vmatpush2.bf16.msra.mxu0 %v2968
    %3190 = vmatprep.subr.bf16.mxu0 %v2963
    %3191 = vmatpush2.bf16.msra.mxu0 %v2962
    %3192 = vmatprep.subr.bf16.mxu0 %v2957
    %3193 = vmatpush2.bf16.msra.mxu0 %v2956
    %3194 = vmatprep.subr.bf16.mxu0 %v2951
    %3195 = vmatpush2.bf16.msra.mxu0 %v2950
    %3196 = vmatprep.mubr.bf16.mxu0 %v2514
    %3197 = vmatmul.mubr.bf16.gmra.mxu0 %v2513
    %v3198 = vpop.f32.mrf.mxu0
    %v3199 = vadd.f32 %v3104, %v3198
    %v3200 = vpop.f32.mrf.mxu0
    %v3201 = vadd.f32 %v3108, %v3200
    %v3202 = vpop.f32.mrf.mxu0
    %v3203 = vpop.f32.mrf.mxu0
    %3204 = vdwg.mxu0
    %3205 = vmatprep.subr.bf16.mxu0 %v2947
    %3206 = vmatpush1.bf16.msra.mxu0 %v2946
    %3207 = vmatprep.subr.bf16.mxu0 %v2941
    %3208 = vmatpush1.bf16.msra.mxu0 %v2940
    %3209 = vmatprep.subr.bf16.mxu0 %v2935
    %3210 = vmatpush1.bf16.msra.mxu0 %v2934
    %3211 = vmatprep.subr.bf16.mxu0 %v2929
    %3212 = vmatpush1.bf16.msra.mxu0 %v2928
    %3213 = vmatprep.subr.bf16.mxu0 %v2923
    %3214 = vmatpush1.bf16.msra.mxu0 %v2922
    %3215 = vmatprep.subr.bf16.mxu0 %v2917
    %3216 = vmatpush1.bf16.msra.mxu0 %v2916
    %3217 = vmatprep.subr.bf16.mxu0 %v2911
    %3218 = vmatpush1.bf16.msra.mxu0 %v2910
    %3219 = vmatprep.subr.bf16.mxu0 %v2905
    %3220 = vmatpush1.bf16.msra.mxu0 %v2904
    %3221 = vmatprep.subr.bf16.mxu0 %v2995
    %3222 = vmatpush2.bf16.msra.mxu0 %v2994
    %3223 = vmatprep.subr.bf16.mxu0 %v2989
    %3224 = vmatpush2.bf16.msra.mxu0 %v2988
    %3225 = vmatprep.subr.bf16.mxu0 %v2983
    %3226 = vmatpush2.bf16.msra.mxu0 %v2982
    %3227 = vmatprep.subr.bf16.mxu0 %v2977
    %3228 = vmatpush2.bf16.msra.mxu0 %v2976
    %3229 = vmatprep.subr.bf16.mxu0 %v2971
    %3230 = vmatpush2.bf16.msra.mxu0 %v2970
    %3231 = vmatprep.subr.bf16.mxu0 %v2965
    %3232 = vmatpush2.bf16.msra.mxu0 %v2964
    %3233 = vmatprep.subr.bf16.mxu0 %v2959
    %3234 = vmatpush2.bf16.msra.mxu0 %v2958
    %3235 = vmatprep.subr.bf16.mxu0 %v2953
    %3236 = vmatpush2.bf16.msra.mxu0 %v2952
    %3237 = vmatprep.mubr.bf16.mxu0 %v2514
    %3238 = vmatmul.mubr.bf16.gmra.mxu0 %v2513
    %v3239 = vpop.f32.mrf.mxu0
    %v3240 = vadd.f32 %v3112, %v3239
    %v3241 = vpop.f32.mrf.mxu0
    %v3242 = vadd.f32 %v3116, %v3241
    %v3243 = vpop.f32.mrf.mxu0
    %v3244 = vpop.f32.mrf.mxu0
    %3245 = vdwg.mxu0
    %v3246 = vxor.u32 %v3158, 2147483648
    %v3247 = vxor.u32 %v3160, 2147483648
    %v3248 = vmul.f32 %v3246, 1.442695
    %v3249 = vpow.pop %v3248
    %v3250 = vmul.f32 %v3247, 1.442695
    %v3251 = vpow.pop %v3250
    %v3252 = vadd.f32 %v3249, 1.0
    %v3253 = vadd.f32 %v3251, 1.0
    %v3254 = vrcp.pop %v3252
    %v3255 = vmul.f32 1.0, %v3254
    %v3256 = vrcp.pop %v3253
    %v3257 = vmul.f32 1.0, %v3256
    %v3258 = vtanh.pop %v3199
    %v3259 = vtanh.pop %v3201
    %v3260 = vxor.u32 %v3240, 2147483648
    %v3261 = vxor.u32 %v3242, 2147483648
    %v3262 = vmul.f32 %v3260, 1.442695
    %v3263 = vpow.pop %v3262
    %v3264 = vmul.f32 %v3261, 1.442695
    %v3265 = vpow.pop %v3264
    %v3266 = vadd.f32 %v3263, 1.0
    %v3267 = vadd.f32 %v3265, 1.0
    %v3268 = vrcp.pop %v3266
    %v3269 = vmul.f32 1.0, %v3268
    %v3270 = vrcp.pop %v3267
    %v3271 = vmul.f32 1.0, %v3270
    %v3272 = vmul.f32 %v3255, %v3258
    %v3273 = vmul.f32 %v3257, %v3259
    %v3274 = vtanh.pop %v3272
    %v3275 = vtanh.pop %v3273
    %v3276 = vmul.f32 %v3269, %v3274
    %v3277 = vmul.f32 %v3271, %v3275
    %v3278 = vpack.c.bf16 %v3276, %v3276
    %v3279 = vpack.c.bf16 %v3277, %v3277
    %v3280 = vld [vmem:[%s11] sm:$0xff]
    %v3281 = vld [vmem:[%s11 + $0x10] sm:$0xff]
    %v3282 = vld [vmem:[%s11 + $0x18] sm:$0xff]
    %v3283 = vld [vmem:[%s11 + $0x20] sm:$0xff]
    %v3284 = vld [vmem:[%s11 + $0x30] sm:$0xff]
    %v3285 = vld [vmem:[%s11 + $0x38] sm:$0xff]
    %v3286 = vld [vmem:[%s11 + $0x40] sm:$0xff]
    %v3287 = vld [vmem:[%s11 + $0x50] sm:$0xff]
    %v3288 = vld [vmem:[%s11 + $0x58] sm:$0xff]
    %v3289 = vld [vmem:[%s11 + $0x60] sm:$0xff]
    %v3290 = vld [vmem:[%s11 + $0x70] sm:$0xff]
    %v3291 = vld [vmem:[%s11 + $0x78] sm:$0xff]
    %v3292 = vld [vmem:[%s11 + $0x80] sm:$0xff]
    %v3293 = vld [vmem:[%s11 + $0x90] sm:$0xff]
    %v3294 = vld [vmem:[%s11 + $0x98] sm:$0xff]
    %v3295 = vld [vmem:[%s11 + $0xa0] sm:$0xff]
    %v3296 = vld [vmem:[%s11 + $0xb0] sm:$0xff]
    %v3297 = vld [vmem:[%s11 + $0xb8] sm:$0xff]
    %v3298 = vld [vmem:[%s11 + $0xc0] sm:$0xff]
    %v3299 = vld [vmem:[%s11 + $0xd0] sm:$0xff]
    %v3300 = vld [vmem:[%s11 + $0xd8] sm:$0xff]
    %v3301 = vld [vmem:[%s11 + $0xe0] sm:$0xff]
    %v3302 = vld [vmem:[%s11 + $0xf0] sm:$0xff]
    %v3303 = vld [vmem:[%s11 + $0xf8] sm:$0xff]
    %v3304 = vld [vmem:[%s11 + $0x100] sm:$0xff]
    %v3305 = vld [vmem:[%s11 + $0x110] sm:$0xff]
    %v3306 = vld [vmem:[%s11 + $0x118] sm:$0xff]
    %v3307 = vld [vmem:[%s11 + $0x120] sm:$0xff]
    %v3308 = vld [vmem:[%s11 + $0x130] sm:$0xff]
    %v3309 = vld [vmem:[%s11 + $0x138] sm:$0xff]
    %v3310 = vld [vmem:[%s11 + $0x140] sm:$0xff]
    %v3311 = vld [vmem:[%s11 + $0x150] sm:$0xff]
    %v3312 = vld [vmem:[%s11 + $0x158] sm:$0xff]
    %v3313 = vld [vmem:[%s11 + $0x160] sm:$0xff]
    %v3314 = vld [vmem:[%s11 + $0x170] sm:$0xff]
    %v3315 = vld [vmem:[%s11 + $0x178] sm:$0xff]
    %v3316 = vld [vmem:[%s11 + $0x180] sm:$0xff]
    %v3317 = vld [vmem:[%s11 + $0x190] sm:$0xff]
    %v3318 = vld [vmem:[%s11 + $0x198] sm:$0xff]
    %v3319 = vld [vmem:[%s11 + $0x1a0] sm:$0xff]
    %v3320 = vld [vmem:[%s11 + $0x1b0] sm:$0xff]
    %v3321 = vld [vmem:[%s11 + $0x1b8] sm:$0xff]
    %v3322 = vld [vmem:[%s11 + $0x1c0] sm:$0xff]
    %v3323 = vld [vmem:[%s11 + $0x1d0] sm:$0xff]
    %v3324 = vld [vmem:[%s11 + $0x1d8] sm:$0xff]
    %v3325 = vld [vmem:[%s11 + $0x1e0] sm:$0xff]
    %v3326 = vld [vmem:[%s11 + $0x1f0] sm:$0xff]
    %v3327 = vld [vmem:[%s11 + $0x1f8] sm:$0xff]
    %v3328 = vld [vmem:[%s11 + $0x200] sm:$0xff]
    %v3329 = vld [vmem:[%s11 + $0x210] sm:$0xff]
    %v3330 = vld [vmem:[%s11 + $0x218] sm:$0xff]
    %v3331 = vld [vmem:[%s11 + $0x220] sm:$0xff]
    %v3332 = vld [vmem:[%s11 + $0x230] sm:$0xff]
    %v3333 = vld [vmem:[%s11 + $0x238] sm:$0xff]
    %v3334 = vld [vmem:[%s11 + $0x240] sm:$0xff]
    %v3335 = vld [vmem:[%s11 + $0x250] sm:$0xff]
    %v3336 = vld [vmem:[%s11 + $0x258] sm:$0xff]
    %v3337 = vld [vmem:[%s11 + $0x260] sm:$0xff]
    %v3338 = vld [vmem:[%s11 + $0x270] sm:$0xff]
    %v3339 = vld [vmem:[%s11 + $0x278] sm:$0xff]
    %v3340 = vld [vmem:[%s11 + $0x280] sm:$0xff]
    %v3341 = vld [vmem:[%s11 + $0x290] sm:$0xff]
    %v3342 = vld [vmem:[%s11 + $0x298] sm:$0xff]
    %v3343 = vld [vmem:[%s11 + $0x2a0] sm:$0xff]
    %v3344 = vld [vmem:[%s11 + $0x2b0] sm:$0xff]
    %v3345 = vld [vmem:[%s11 + $0x2b8] sm:$0xff]
    %v3346 = vld [vmem:[%s11 + $0x2c0] sm:$0xff]
    %v3347 = vld [vmem:[%s11 + $0x2d0] sm:$0xff]
    %v3348 = vld [vmem:[%s11 + $0x2d8] sm:$0xff]
    %v3349 = vld [vmem:[%s11 + $0x2e0] sm:$0xff]
    %v3350 = vld [vmem:[%s11 + $0x2f0] sm:$0xff]
    %v3351 = vld [vmem:[%s11 + $0x2f8] sm:$0xff]
    %v3352 = vld [vmem:[%s11 + $0x300] sm:$0xff]
    %v3353 = vld [vmem:[%s11 + $0x310] sm:$0xff]
    %v3354 = vld [vmem:[%s11 + $0x318] sm:$0xff]
    %v3355 = vld [vmem:[%s11 + $0x320] sm:$0xff]
    %v3356 = vld [vmem:[%s11 + $0x330] sm:$0xff]
    %v3357 = vld [vmem:[%s11 + $0x338] sm:$0xff]
    %v3358 = vld [vmem:[%s11 + $0x340] sm:$0xff]
    %v3359 = vld [vmem:[%s11 + $0x350] sm:$0xff]
    %v3360 = vld [vmem:[%s11 + $0x358] sm:$0xff]
    %v3361 = vld [vmem:[%s11 + $0x360] sm:$0xff]
    %v3362 = vld [vmem:[%s11 + $0x370] sm:$0xff]
    %v3363 = vld [vmem:[%s11 + $0x378] sm:$0xff]
    %v3364 = vld [vmem:[%s11 + $0x380] sm:$0xff]
    %v3365 = vld [vmem:[%s11 + $0x390] sm:$0xff]
    %v3366 = vld [vmem:[%s11 + $0x398] sm:$0xff]
    %v3367 = vld [vmem:[%s11 + $0x3a0] sm:$0xff]
    %v3368 = vld [vmem:[%s11 + $0x3b0] sm:$0xff]
    %v3369 = vld [vmem:[%s11 + $0x3b8] sm:$0xff]
    %v3370 = vld [vmem:[%s11 + $0x3c0] sm:$0xff]
    %v3371 = vld [vmem:[%s11 + $0x3d0] sm:$0xff]
    %v3372 = vld [vmem:[%s11 + $0x3d8] sm:$0xff]
    %v3373 = vld [vmem:[%s11 + $0x3e0] sm:$0xff]
    %v3374 = vld [vmem:[%s11 + $0x3f0] sm:$0xff]
    %v3375 = vld [vmem:[%s11 + $0x3f8] sm:$0xff]
    %v3376 = vld [vmem:[%s12] sm:$0xff]
    %v3473 = vunpack.c.l.b16 %v3280
    %v3474 = vunpack.c.h.b16 %v3280
    %v3475 = vunpack.c.l.b16 %v3281
    %v3476 = vunpack.c.h.b16 %v3281
    %v3477 = vunpack.c.l.b16 %v3282
    %v3478 = vunpack.c.h.b16 %v3282
    %v3479 = vunpack.c.l.b16 %v3283
    %v3480 = vunpack.c.h.b16 %v3283
    %v3481 = vunpack.c.l.b16 %v3284
    %v3482 = vunpack.c.h.b16 %v3284
    %v3483 = vunpack.c.l.b16 %v3285
    %v3484 = vunpack.c.h.b16 %v3285
    %v3485 = vunpack.c.l.b16 %v3286
    %v3486 = vunpack.c.h.b16 %v3286
    %v3487 = vunpack.c.l.b16 %v3287
    %v3488 = vunpack.c.h.b16 %v3287
    %v3489 = vunpack.c.l.b16 %v3288
    %v3490 = vunpack.c.h.b16 %v3288
    %v3491 = vunpack.c.l.b16 %v3289
    %v3492 = vunpack.c.h.b16 %v3289
    %v3493 = vunpack.c.l.b16 %v3290
    %v3494 = vunpack.c.h.b16 %v3290
    %v3495 = vunpack.c.l.b16 %v3291
    %v3496 = vunpack.c.h.b16 %v3291
    %v3497 = vunpack.c.l.b16 %v3292
    %v3498 = vunpack.c.h.b16 %v3292
    %v3499 = vunpack.c.l.b16 %v3293
    %v3500 = vunpack.c.h.b16 %v3293
    %v3501 = vunpack.c.l.b16 %v3294
    %v3502 = vunpack.c.h.b16 %v3294
    %v3503 = vunpack.c.l.b16 %v3295
    %v3504 = vunpack.c.h.b16 %v3295
    %v3505 = vunpack.c.l.b16 %v3296
    %v3506 = vunpack.c.h.b16 %v3296
    %v3507 = vunpack.c.l.b16 %v3297
    %v3508 = vunpack.c.h.b16 %v3297
    %v3509 = vunpack.c.l.b16 %v3298
    %v3510 = vunpack.c.h.b16 %v3298
    %v3511 = vunpack.c.l.b16 %v3299
    %v3512 = vunpack.c.h.b16 %v3299
    %v3513 = vunpack.c.l.b16 %v3300
    %v3514 = vunpack.c.h.b16 %v3300
    %v3515 = vunpack.c.l.b16 %v3301
    %v3516 = vunpack.c.h.b16 %v3301
    %v3517 = vunpack.c.l.b16 %v3302
    %v3518 = vunpack.c.h.b16 %v3302
    %v3519 = vunpack.c.l.b16 %v3303
    %v3520 = vunpack.c.h.b16 %v3303
    %v3521 = vunpack.c.l.b16 %v3304
    %v3522 = vunpack.c.h.b16 %v3304
    %v3523 = vunpack.c.l.b16 %v3305
    %v3524 = vunpack.c.h.b16 %v3305
    %v3525 = vunpack.c.l.b16 %v3306
    %v3526 = vunpack.c.h.b16 %v3306
    %v3527 = vunpack.c.l.b16 %v3307
    %v3528 = vunpack.c.h.b16 %v3307
    %v3529 = vunpack.c.l.b16 %v3308
    %v3530 = vunpack.c.h.b16 %v3308
    %v3531 = vunpack.c.l.b16 %v3309
    %v3532 = vunpack.c.h.b16 %v3309
    %v3533 = vunpack.c.l.b16 %v3310
    %v3534 = vunpack.c.h.b16 %v3310
    %v3535 = vunpack.c.l.b16 %v3311
    %v3536 = vunpack.c.h.b16 %v3311
    %v3537 = vunpack.c.l.b16 %v3312
    %v3538 = vunpack.c.h.b16 %v3312
    %v3539 = vunpack.c.l.b16 %v3313
    %v3540 = vunpack.c.h.b16 %v3313
    %v3541 = vunpack.c.l.b16 %v3314
    %v3542 = vunpack.c.h.b16 %v3314
    %v3543 = vunpack.c.l.b16 %v3315
    %v3544 = vunpack.c.h.b16 %v3315
    %v3545 = vunpack.c.l.b16 %v3316
    %v3546 = vunpack.c.h.b16 %v3316
    %v3547 = vunpack.c.l.b16 %v3317
    %v3548 = vunpack.c.h.b16 %v3317
    %v3549 = vunpack.c.l.b16 %v3318
    %v3550 = vunpack.c.h.b16 %v3318
    %v3551 = vunpack.c.l.b16 %v3319
    %v3552 = vunpack.c.h.b16 %v3319
    %v3553 = vunpack.c.l.b16 %v3320
    %v3554 = vunpack.c.h.b16 %v3320
    %v3555 = vunpack.c.l.b16 %v3321
    %v3556 = vunpack.c.h.b16 %v3321
    %v3557 = vunpack.c.l.b16 %v3322
    %v3558 = vunpack.c.h.b16 %v3322
    %v3559 = vunpack.c.l.b16 %v3323
    %v3560 = vunpack.c.h.b16 %v3323
    %v3561 = vunpack.c.l.b16 %v3324
    %v3562 = vunpack.c.h.b16 %v3324
    %v3563 = vunpack.c.l.b16 %v3325
    %v3564 = vunpack.c.h.b16 %v3325
    %v3565 = vunpack.c.l.b16 %v3326
    %v3566 = vunpack.c.h.b16 %v3326
    %v3567 = vunpack.c.l.b16 %v3327
    %v3568 = vunpack.c.h.b16 %v3327
    %v3569 = vunpack.c.l.b16 %v3328
    %v3570 = vunpack.c.h.b16 %v3328
    %v3571 = vunpack.c.l.b16 %v3329
    %v3572 = vunpack.c.h.b16 %v3329
    %v3573 = vunpack.c.l.b16 %v3330
    %v3574 = vunpack.c.h.b16 %v3330
    %v3575 = vunpack.c.l.b16 %v3331
    %v3576 = vunpack.c.h.b16 %v3331
    %v3577 = vunpack.c.l.b16 %v3332
    %v3578 = vunpack.c.h.b16 %v3332
    %v3579 = vunpack.c.l.b16 %v3333
    %v3580 = vunpack.c.h.b16 %v3333
    %v3581 = vunpack.c.l.b16 %v3334
    %v3582 = vunpack.c.h.b16 %v3334
    %v3583 = vunpack.c.l.b16 %v3335
    %v3584 = vunpack.c.h.b16 %v3335
    %v3585 = vunpack.c.l.b16 %v3336
    %v3586 = vunpack.c.h.b16 %v3336
    %v3587 = vunpack.c.l.b16 %v3337
    %v3588 = vunpack.c.h.b16 %v3337
    %v3589 = vunpack.c.l.b16 %v3338
    %v3590 = vunpack.c.h.b16 %v3338
    %v3591 = vunpack.c.l.b16 %v3339
    %v3592 = vunpack.c.h.b16 %v3339
    %v3593 = vunpack.c.l.b16 %v3340
    %v3594 = vunpack.c.h.b16 %v3340
    %v3595 = vunpack.c.l.b16 %v3341
    %v3596 = vunpack.c.h.b16 %v3341
    %v3597 = vunpack.c.l.b16 %v3342
    %v3598 = vunpack.c.h.b16 %v3342
    %v3599 = vunpack.c.l.b16 %v3343
    %v3600 = vunpack.c.h.b16 %v3343
    %v3601 = vunpack.c.l.b16 %v3344
    %v3602 = vunpack.c.h.b16 %v3344
    %v3603 = vunpack.c.l.b16 %v3345
    %v3604 = vunpack.c.h.b16 %v3345
    %v3605 = vunpack.c.l.b16 %v3346
    %v3606 = vunpack.c.h.b16 %v3346
    %v3607 = vunpack.c.l.b16 %v3347
    %v3608 = vunpack.c.h.b16 %v3347
    %v3609 = vunpack.c.l.b16 %v3348
    %v3610 = vunpack.c.h.b16 %v3348
    %v3611 = vunpack.c.l.b16 %v3349
    %v3612 = vunpack.c.h.b16 %v3349
    %v3613 = vunpack.c.l.b16 %v3350
    %v3614 = vunpack.c.h.b16 %v3350
    %v3615 = vunpack.c.l.b16 %v3351
    %v3616 = vunpack.c.h.b16 %v3351
    %v3617 = vunpack.c.l.b16 %v3352
    %v3618 = vunpack.c.h.b16 %v3352
    %v3619 = vunpack.c.l.b16 %v3353
    %v3620 = vunpack.c.h.b16 %v3353
    %v3621 = vunpack.c.l.b16 %v3354
    %v3622 = vunpack.c.h.b16 %v3354
    %v3623 = vunpack.c.l.b16 %v3355
    %v3624 = vunpack.c.h.b16 %v3355
    %v3625 = vunpack.c.l.b16 %v3356
    %v3626 = vunpack.c.h.b16 %v3356
    %v3627 = vunpack.c.l.b16 %v3357
    %v3628 = vunpack.c.h.b16 %v3357
    %v3629 = vunpack.c.l.b16 %v3358
    %v3630 = vunpack.c.h.b16 %v3358
    %v3631 = vunpack.c.l.b16 %v3359
    %v3632 = vunpack.c.h.b16 %v3359
    %v3633 = vunpack.c.l.b16 %v3360
    %v3634 = vunpack.c.h.b16 %v3360
    %v3635 = vunpack.c.l.b16 %v3361
    %v3636 = vunpack.c.h.b16 %v3361
    %v3637 = vunpack.c.l.b16 %v3362
    %v3638 = vunpack.c.h.b16 %v3362
    %v3639 = vunpack.c.l.b16 %v3363
    %v3640 = vunpack.c.h.b16 %v3363
    %v3641 = vunpack.c.l.b16 %v3364
    %v3642 = vunpack.c.h.b16 %v3364
    %v3643 = vunpack.c.l.b16 %v3365
    %v3644 = vunpack.c.h.b16 %v3365
    %v3645 = vunpack.c.l.b16 %v3366
    %v3646 = vunpack.c.h.b16 %v3366
    %v3647 = vunpack.c.l.b16 %v3367
    %v3648 = vunpack.c.h.b16 %v3367
    %v3649 = vunpack.c.l.b16 %v3368
    %v3650 = vunpack.c.h.b16 %v3368
    %v3651 = vunpack.c.l.b16 %v3369
    %v3652 = vunpack.c.h.b16 %v3369
    %v3653 = vunpack.c.l.b16 %v3370
    %v3654 = vunpack.c.h.b16 %v3370
    %v3655 = vunpack.c.l.b16 %v3371
    %v3656 = vunpack.c.h.b16 %v3371
    %v3657 = vunpack.c.l.b16 %v3372
    %v3658 = vunpack.c.h.b16 %v3372
    %v3659 = vunpack.c.l.b16 %v3373
    %v3660 = vunpack.c.h.b16 %v3373
    %v3661 = vunpack.c.l.b16 %v3374
    %v3662 = vunpack.c.h.b16 %v3374
    %v3663 = vunpack.c.l.b16 %v3375
    %v3664 = vunpack.c.h.b16 %v3375
    %v3665 = vpack.c.b16 %v3479, %v3473
    %v3666 = vpack.c.b16 %v3480, %v3474
    %v3667 = vpack.c.b16 %v3481, %v3475
    %v3668 = vpack.c.b16 %v3482, %v3476
    %v3669 = vpack.c.b16 %v3483, %v3477
    %v3670 = vpack.c.b16 %v3484, %v3478
    %v3671 = vpack.c.b16 %v3491, %v3485
    %v3672 = vpack.c.b16 %v3492, %v3486
    %v3673 = vpack.c.b16 %v3493, %v3487
    %v3674 = vpack.c.b16 %v3494, %v3488
    %v3675 = vpack.c.b16 %v3495, %v3489
    %v3676 = vpack.c.b16 %v3496, %v3490
    %v3677 = vpack.c.b16 %v3503, %v3497
    %v3678 = vpack.c.b16 %v3504, %v3498
    %v3679 = vpack.c.b16 %v3505, %v3499
    %v3680 = vpack.c.b16 %v3506, %v3500
    %v3681 = vpack.c.b16 %v3507, %v3501
    %v3682 = vpack.c.b16 %v3508, %v3502
    %v3683 = vpack.c.b16 %v3515, %v3509
    %v3684 = vpack.c.b16 %v3516, %v3510
    %v3685 = vpack.c.b16 %v3517, %v3511
    %v3686 = vpack.c.b16 %v3518, %v3512
    %v3687 = vpack.c.b16 %v3519, %v3513
    %v3688 = vpack.c.b16 %v3520, %v3514
    %v3689 = vpack.c.b16 %v3527, %v3521
    %v3690 = vpack.c.b16 %v3528, %v3522
    %v3691 = vpack.c.b16 %v3529, %v3523
    %v3692 = vpack.c.b16 %v3530, %v3524
    %v3693 = vpack.c.b16 %v3531, %v3525
    %v3694 = vpack.c.b16 %v3532, %v3526
    %v3695 = vpack.c.b16 %v3539, %v3533
    %v3696 = vpack.c.b16 %v3540, %v3534
    %v3697 = vpack.c.b16 %v3541, %v3535
    %v3698 = vpack.c.b16 %v3542, %v3536
    %v3699 = vpack.c.b16 %v3543, %v3537
    %v3700 = vpack.c.b16 %v3544, %v3538
    %v3701 = vpack.c.b16 %v3551, %v3545
    %v3702 = vpack.c.b16 %v3552, %v3546
    %v3703 = vpack.c.b16 %v3553, %v3547
    %v3704 = vpack.c.b16 %v3554, %v3548
    %v3705 = vpack.c.b16 %v3555, %v3549
    %v3706 = vpack.c.b16 %v3556, %v3550
    %v3707 = vpack.c.b16 %v3563, %v3557
    %v3708 = vpack.c.b16 %v3564, %v3558
    %v3709 = vpack.c.b16 %v3565, %v3559
    %v3710 = vpack.c.b16 %v3566, %v3560
    %v3711 = vpack.c.b16 %v3567, %v3561
    %v3712 = vpack.c.b16 %v3568, %v3562
    %v3713 = vpack.c.b16 %v3575, %v3569
    %v3714 = vpack.c.b16 %v3576, %v3570
    %v3715 = vpack.c.b16 %v3577, %v3571
    %v3716 = vpack.c.b16 %v3578, %v3572
    %v3717 = vpack.c.b16 %v3579, %v3573
    %v3718 = vpack.c.b16 %v3580, %v3574
    %v3719 = vpack.c.b16 %v3587, %v3581
    %v3720 = vpack.c.b16 %v3588, %v3582
    %v3721 = vpack.c.b16 %v3589, %v3583
    %v3722 = vpack.c.b16 %v3590, %v3584
    %v3723 = vpack.c.b16 %v3591, %v3585
    %v3724 = vpack.c.b16 %v3592, %v3586
    %v3725 = vpack.c.b16 %v3599, %v3593
    %v3726 = vpack.c.b16 %v3600, %v3594
    %v3727 = vpack.c.b16 %v3601, %v3595
    %v3728 = vpack.c.b16 %v3602, %v3596
    %v3729 = vpack.c.b16 %v3603, %v3597
    %v3730 = vpack.c.b16 %v3604, %v3598
    %v3731 = vpack.c.b16 %v3611, %v3605
    %v3732 = vpack.c.b16 %v3612, %v3606
    %v3733 = vpack.c.b16 %v3613, %v3607
    %v3734 = vpack.c.b16 %v3614, %v3608
    %v3735 = vpack.c.b16 %v3615, %v3609
    %v3736 = vpack.c.b16 %v3616, %v3610
    %v3737 = vpack.c.b16 %v3623, %v3617
    %v3738 = vpack.c.b16 %v3624, %v3618
    %v3739 = vpack.c.b16 %v3625, %v3619
    %v3740 = vpack.c.b16 %v3626, %v3620
    %v3741 = vpack.c.b16 %v3627, %v3621
    %v3742 = vpack.c.b16 %v3628, %v3622
    %v3743 = vpack.c.b16 %v3635, %v3629
    %v3744 = vpack.c.b16 %v3636, %v3630
    %v3745 = vpack.c.b16 %v3637, %v3631
    %v3746 = vpack.c.b16 %v3638, %v3632
    %v3747 = vpack.c.b16 %v3639, %v3633
    %v3748 = vpack.c.b16 %v3640, %v3634
    %v3749 = vpack.c.b16 %v3647, %v3641
    %v3750 = vpack.c.b16 %v3648, %v3642
    %v3751 = vpack.c.b16 %v3649, %v3643
    %v3752 = vpack.c.b16 %v3650, %v3644
    %v3753 = vpack.c.b16 %v3651, %v3645
    %v3754 = vpack.c.b16 %v3652, %v3646
    %v3755 = vpack.c.b16 %v3659, %v3653
    %v3756 = vpack.c.b16 %v3660, %v3654
    %v3757 = vpack.c.b16 %v3661, %v3655
    %v3758 = vpack.c.b16 %v3662, %v3656
    %v3759 = vpack.c.b16 %v3663, %v3657
    %v3760 = vpack.c.b16 %v3664, %v3658
    %v3858 = vlaneseq
    %v3859 = vshrl.u32 %v3858, 7
    %v3860 = vsub.s32 0, %v3859
    %v3861 = vrot.slane %v3376, %v3860
    %v3862 = vlaneseq
    %v3863 = vshrl.u32 %v3862, 7
    %v3864 = vsub.s32 1, %v3863
    %v3865 = vrot.slane %v3376, %v3864
    %v3866 = vlaneseq
    %v3867 = vshrl.u32 %v3866, 7
    %v3868 = vsub.s32 4, %v3867
    %v3869 = vrot.slane %v3376, %v3868
    %v3870 = vlaneseq
    %v3871 = vshrl.u32 %v3870, 7
    %v3872 = vsub.s32 5, %v3871
    %v3873 = vrot.slane %v3376, %v3872
    %v3874 = vlaneseq
    %v3875 = vshrl.u32 %v3874, 7
    %v3876 = vsub.s32 6, %v3875
    %v3877 = vrot.slane %v3376, %v3876
    %v3878 = vlaneseq
    %v3879 = vshrl.u32 %v3878, 7
    %v3880 = vsub.s32 7, %v3879
    %v3881 = vrot.slane %v3376, %v3880
    %3888 = vmatprep.subr.bf16.mxu0 %v3708
    %3889 = vmatpush1.bf16.msra.mxu0 %v3707
    %3890 = vmatprep.subr.bf16.mxu0 %v3702
    %3891 = vmatpush1.bf16.msra.mxu0 %v3701
    %3892 = vmatprep.subr.bf16.mxu0 %v3696
    %3893 = vmatpush1.bf16.msra.mxu0 %v3695
    %3894 = vmatprep.subr.bf16.mxu0 %v3690
    %3895 = vmatpush1.bf16.msra.mxu0 %v3689
    %3896 = vmatprep.subr.bf16.mxu0 %v3684
    %3897 = vmatpush1.bf16.msra.mxu0 %v3683
    %3898 = vmatprep.subr.bf16.mxu0 %v3678
    %3899 = vmatpush1.bf16.msra.mxu0 %v3677
    %3900 = vmatprep.subr.bf16.mxu0 %v3672
    %3901 = vmatpush1.bf16.msra.mxu0 %v3671
    %3902 = vmatprep.subr.bf16.mxu0 %v3666
    %3903 = vmatpush1.bf16.msra.mxu0 %v3665
    %3904 = vmatprep.subr.bf16.mxu0 %v3756
    %3905 = vmatpush2.bf16.msra.mxu0 %v3755
    %3906 = vmatprep.subr.bf16.mxu0 %v3750
    %3907 = vmatpush2.bf16.msra.mxu0 %v3749
    %3908 = vmatprep.subr.bf16.mxu0 %v3744
    %3909 = vmatpush2.bf16.msra.mxu0 %v3743
    %3910 = vmatprep.subr.bf16.mxu0 %v3738
    %3911 = vmatpush2.bf16.msra.mxu0 %v3737
    %3912 = vmatprep.subr.bf16.mxu0 %v3732
    %3913 = vmatpush2.bf16.msra.mxu0 %v3731
    %3914 = vmatprep.subr.bf16.mxu0 %v3726
    %3915 = vmatpush2.bf16.msra.mxu0 %v3725
    %3916 = vmatprep.subr.bf16.mxu0 %v3720
    %3917 = vmatpush2.bf16.msra.mxu0 %v3719
    %3918 = vmatprep.subr.bf16.mxu0 %v3714
    %3919 = vmatpush2.bf16.msra.mxu0 %v3713
    %3920 = vmatprep.mubr.bf16.mxu0 %v3279
    %3921 = vmatmul.mubr.bf16.gmra.mxu0 %v3278
    %v3922 = vpop.f32.mrf.mxu0
    %v3923 = vadd.f32 %v3861, %v3922
    %v3924 = vpop.f32.mrf.mxu0
    %v3925 = vadd.f32 %v3865, %v3924
    %v3926 = vpop.f32.mrf.mxu0
    %v3927 = vpop.f32.mrf.mxu0
    %3928 = vdwg.mxu0
    %3929 = vmatprep.subr.bf16.mxu0 %v3710
    %3930 = vmatpush1.bf16.msra.mxu0 %v3709
    %3931 = vmatprep.subr.bf16.mxu0 %v3704
    %3932 = vmatpush1.bf16.msra.mxu0 %v3703
    %3933 = vmatprep.subr.bf16.mxu0 %v3698
    %3934 = vmatpush1.bf16.msra.mxu0 %v3697
    %3935 = vmatprep.subr.bf16.mxu0 %v3692
    %3936 = vmatpush1.bf16.msra.mxu0 %v3691
    %3937 = vmatprep.subr.bf16.mxu0 %v3686
    %3938 = vmatpush1.bf16.msra.mxu0 %v3685
    %3939 = vmatprep.subr.bf16.mxu0 %v3680
    %3940 = vmatpush1.bf16.msra.mxu0 %v3679
    %3941 = vmatprep.subr.bf16.mxu0 %v3674
    %3942 = vmatpush1.bf16.msra.mxu0 %v3673
    %3943 = vmatprep.subr.bf16.mxu0 %v3668
    %3944 = vmatpush1.bf16.msra.mxu0 %v3667
    %3945 = vmatprep.subr.bf16.mxu0 %v3758
    %3946 = vmatpush2.bf16.msra.mxu0 %v3757
    %3947 = vmatprep.subr.bf16.mxu0 %v3752
    %3948 = vmatpush2.bf16.msra.mxu0 %v3751
    %3949 = vmatprep.subr.bf16.mxu0 %v3746
    %3950 = vmatpush2.bf16.msra.mxu0 %v3745
    %3951 = vmatprep.subr.bf16.mxu0 %v3740
    %3952 = vmatpush2.bf16.msra.mxu0 %v3739
    %3953 = vmatprep.subr.bf16.mxu0 %v3734
    %3954 = vmatpush2.bf16.msra.mxu0 %v3733
    %3955 = vmatprep.subr.bf16.mxu0 %v3728
    %3956 = vmatpush2.bf16.msra.mxu0 %v3727
    %3957 = vmatprep.subr.bf16.mxu0 %v3722
    %3958 = vmatpush2.bf16.msra.mxu0 %v3721
    %3959 = vmatprep.subr.bf16.mxu0 %v3716
    %3960 = vmatpush2.bf16.msra.mxu0 %v3715
    %3961 = vmatprep.mubr.bf16.mxu0 %v3279
    %3962 = vmatmul.mubr.bf16.gmra.mxu0 %v3278
    %v3963 = vpop.f32.mrf.mxu0
    %v3964 = vadd.f32 %v3869, %v3963
    %v3965 = vpop.f32.mrf.mxu0
    %v3966 = vadd.f32 %v3873, %v3965
    %v3967 = vpop.f32.mrf.mxu0
    %v3968 = vpop.f32.mrf.mxu0
    %3969 = vdwg.mxu0
    %3970 = vmatprep.subr.bf16.mxu0 %v3712
    %3971 = vmatpush1.bf16.msra.mxu0 %v3711
    %3972 = vmatprep.subr.bf16.mxu0 %v3706
    %3973 = vmatpush1.bf16.msra.mxu0 %v3705
    %3974 = vmatprep.subr.bf16.mxu0 %v3700
    %3975 = vmatpush1.bf16.msra.mxu0 %v3699
    %3976 = vmatprep.subr.bf16.mxu0 %v3694
    %3977 = vmatpush1.bf16.msra.mxu0 %v3693
    %3978 = vmatprep.subr.bf16.mxu0 %v3688
    %3979 = vmatpush1.bf16.msra.mxu0 %v3687
    %3980 = vmatprep.subr.bf16.mxu0 %v3682
    %3981 = vmatpush1.bf16.msra.mxu0 %v3681
    %3982 = vmatprep.subr.bf16.mxu0 %v3676
    %3983 = vmatpush1.bf16.msra.mxu0 %v3675
    %3984 = vmatprep.subr.bf16.mxu0 %v3670
    %3985 = vmatpush1.bf16.msra.mxu0 %v3669
    %3986 = vmatprep.subr.bf16.mxu0 %v3760
    %3987 = vmatpush2.bf16.msra.mxu0 %v3759
    %3988 = vmatprep.subr.bf16.mxu0 %v3754
    %3989 = vmatpush2.bf16.msra.mxu0 %v3753
    %3990 = vmatprep.subr.bf16.mxu0 %v3748
    %3991 = vmatpush2.bf16.msra.mxu0 %v3747
    %3992 = vmatprep.subr.bf16.mxu0 %v3742
    %3993 = vmatpush2.bf16.msra.mxu0 %v3741
    %3994 = vmatprep.subr.bf16.mxu0 %v3736
    %3995 = vmatpush2.bf16.msra.mxu0 %v3735
    %3996 = vmatprep.subr.bf16.mxu0 %v3730
    %3997 = vmatpush2.bf16.msra.mxu0 %v3729
    %3998 = vmatprep.subr.bf16.mxu0 %v3724
    %3999 = vmatpush2.bf16.msra.mxu0 %v3723
    %4000 = vmatprep.subr.bf16.mxu0 %v3718
    %4001 = vmatpush2.bf16.msra.mxu0 %v3717
    %4002 = vmatprep.mubr.bf16.mxu0 %v3279
    %4003 = vmatmul.mubr.bf16.gmra.mxu0 %v3278
    %v4004 = vpop.f32.mrf.mxu0
    %v4005 = vadd.f32 %v3877, %v4004
    %v4006 = vpop.f32.mrf.mxu0
    %v4007 = vadd.f32 %v3881, %v4006
    %v4008 = vpop.f32.mrf.mxu0
    %v4009 = vpop.f32.mrf.mxu0
    %4010 = vdwg.mxu0
    %v4011 = vxor.u32 %v3923, 2147483648
    %v4012 = vxor.u32 %v3925, 2147483648
    %v4013 = vmul.f32 %v4011, 1.442695
    %v4014 = vpow.pop %v4013
    %v4015 = vmul.f32 %v4012, 1.442695
    %v4016 = vpow.pop %v4015
    %v4017 = vadd.f32 %v4014, 1.0
    %v4018 = vadd.f32 %v4016, 1.0
    %v4019 = vrcp.pop %v4017
    %v4020 = vmul.f32 1.0, %v4019
    %v4021 = vrcp.pop %v4018
    %v4022 = vmul.f32 1.0, %v4021
    %v4023 = vtanh.pop %v3964
    %v4024 = vtanh.pop %v3966
    %v4025 = vxor.u32 %v4005, 2147483648
    %v4026 = vxor.u32 %v4007, 2147483648
    %v4027 = vmul.f32 %v4025, 1.442695
    %v4028 = vpow.pop %v4027
    %v4029 = vmul.f32 %v4026, 1.442695
    %v4030 = vpow.pop %v4029
    %v4031 = vadd.f32 %v4028, 1.0
    %v4032 = vadd.f32 %v4030, 1.0
    %v4033 = vrcp.pop %v4031
    %v4034 = vmul.f32 1.0, %v4033
    %v4035 = vrcp.pop %v4032
    %v4036 = vmul.f32 1.0, %v4035
    %v4037 = vmul.f32 %v4020, %v4023
    %v4038 = vmul.f32 %v4022, %v4024
    %v4039 = vtanh.pop %v4037
    %v4040 = vtanh.pop %v4038
    %v4041 = vmul.f32 %v4034, %v4039
    %v4042 = vmul.f32 %v4036, %v4040
    %v4043 = vpack.c.bf16 %v4041, %v4041
    %v4044 = vpack.c.bf16 %v4042, %v4042
    %v4045 = vld [vmem:[%s13] sm:$0xf]
    %v4046 = vld [vmem:[%s13 + $0x4] sm:$0xf]
    %v4047 = vld [vmem:[%s13 + $0x8] sm:$0xf]
    %v4048 = vld [vmem:[%s13 + $0xc] sm:$0xf]
    %v4049 = vld [vmem:[%s13 + $0x10] sm:$0xf]
    %v4050 = vld [vmem:[%s13 + $0x14] sm:$0xf]
    %v4051 = vld [vmem:[%s13 + $0x18] sm:$0xf]
    %v4052 = vld [vmem:[%s13 + $0x1c] sm:$0xf]
    %v4053 = vld [vmem:[%s13 + $0x20] sm:$0xf]
    %v4054 = vld [vmem:[%s13 + $0x24] sm:$0xf]
    %v4055 = vld [vmem:[%s13 + $0x28] sm:$0xf]
    %v4056 = vld [vmem:[%s13 + $0x2c] sm:$0xf]
    %v4057 = vld [vmem:[%s13 + $0x30] sm:$0xf]
    %v4058 = vld [vmem:[%s13 + $0x34] sm:$0xf]
    %v4059 = vld [vmem:[%s13 + $0x38] sm:$0xf]
    %v4060 = vld [vmem:[%s13 + $0x3c] sm:$0xf]
    %v4061 = vld [vmem:[%s13 + $0x40] sm:$0xf]
    %v4062 = vld [vmem:[%s13 + $0x44] sm:$0xf]
    %v4063 = vld [vmem:[%s13 + $0x48] sm:$0xf]
    %v4064 = vld [vmem:[%s13 + $0x4c] sm:$0xf]
    %v4065 = vld [vmem:[%s13 + $0x50] sm:$0xf]
    %v4066 = vld [vmem:[%s13 + $0x54] sm:$0xf]
    %v4067 = vld [vmem:[%s13 + $0x58] sm:$0xf]
    %v4068 = vld [vmem:[%s13 + $0x5c] sm:$0xf]
    %v4069 = vld [vmem:[%s13 + $0x60] sm:$0xf]
    %v4070 = vld [vmem:[%s13 + $0x64] sm:$0xf]
    %v4071 = vld [vmem:[%s13 + $0x68] sm:$0xf]
    %v4072 = vld [vmem:[%s13 + $0x6c] sm:$0xf]
    %v4073 = vld [vmem:[%s13 + $0x70] sm:$0xf]
    %v4074 = vld [vmem:[%s13 + $0x74] sm:$0xf]
    %v4075 = vld [vmem:[%s13 + $0x78] sm:$0xf]
    %v4076 = vld [vmem:[%s13 + $0x7c] sm:$0xf]
    %v4077 = vld [vmem:[%s14] sm:$0x1]
    %v4110 = vunpack.c.l.b16 %v4045
    %v4111 = vunpack.c.l.b16 %v4046
    %v4112 = vunpack.c.l.b16 %v4047
    %v4113 = vunpack.c.l.b16 %v4048
    %v4114 = vunpack.c.l.b16 %v4049
    %v4115 = vunpack.c.l.b16 %v4050
    %v4116 = vunpack.c.l.b16 %v4051
    %v4117 = vunpack.c.l.b16 %v4052
    %v4118 = vunpack.c.l.b16 %v4053
    %v4119 = vunpack.c.l.b16 %v4054
    %v4120 = vunpack.c.l.b16 %v4055
    %v4121 = vunpack.c.l.b16 %v4056
    %v4122 = vunpack.c.l.b16 %v4057
    %v4123 = vunpack.c.l.b16 %v4058
    %v4124 = vunpack.c.l.b16 %v4059
    %v4125 = vunpack.c.l.b16 %v4060
    %v4126 = vunpack.c.l.b16 %v4061
    %v4127 = vunpack.c.l.b16 %v4062
    %v4128 = vunpack.c.l.b16 %v4063
    %v4129 = vunpack.c.l.b16 %v4064
    %v4130 = vunpack.c.l.b16 %v4065
    %v4131 = vunpack.c.l.b16 %v4066
    %v4132 = vunpack.c.l.b16 %v4067
    %v4133 = vunpack.c.l.b16 %v4068
    %v4134 = vunpack.c.l.b16 %v4069
    %v4135 = vunpack.c.l.b16 %v4070
    %v4136 = vunpack.c.l.b16 %v4071
    %v4137 = vunpack.c.l.b16 %v4072
    %v4138 = vunpack.c.l.b16 %v4073
    %v4139 = vunpack.c.l.b16 %v4074
    %v4140 = vunpack.c.l.b16 %v4075
    %v4141 = vunpack.c.l.b16 %v4076
    %v4142 = vpack.c.b16 %v4111, %v4110
    %v4143 = vpack.c.b16 %v4113, %v4112
    %v4144 = vpack.c.b16 %v4115, %v4114
    %v4145 = vpack.c.b16 %v4117, %v4116
    %v4146 = vpack.c.b16 %v4119, %v4118
    %v4147 = vpack.c.b16 %v4121, %v4120
    %v4148 = vpack.c.b16 %v4123, %v4122
    %v4149 = vpack.c.b16 %v4125, %v4124
    %v4150 = vpack.c.b16 %v4127, %v4126
    %v4151 = vpack.c.b16 %v4129, %v4128
    %v4152 = vpack.c.b16 %v4131, %v4130
    %v4153 = vpack.c.b16 %v4133, %v4132
    %v4154 = vpack.c.b16 %v4135, %v4134
    %v4155 = vpack.c.b16 %v4137, %v4136
    %v4156 = vpack.c.b16 %v4139, %v4138
    %v4157 = vpack.c.b16 %v4141, %v4140
    %4174 = vmatprep.subr.bf16.mxu0 0
    %4175 = vmatpush1.bf16.msra.mxu0 %v4149
    %4176 = vmatprep.subr.bf16.mxu0 0
    %4177 = vmatpush1.bf16.msra.mxu0 %v4148
    %4178 = vmatprep.subr.bf16.mxu0 0
    %4179 = vmatpush1.bf16.msra.mxu0 %v4147
    %4180 = vmatprep.subr.bf16.mxu0 0
    %4181 = vmatpush1.bf16.msra.mxu0 %v4146
    %4182 = vmatprep.subr.bf16.mxu0 0
    %4183 = vmatpush1.bf16.msra.mxu0 %v4145
    %4184 = vmatprep.subr.bf16.mxu0 0
    %4185 = vmatpush1.bf16.msra.mxu0 %v4144
    %4186 = vmatprep.subr.bf16.mxu0 0
    %4187 = vmatpush1.bf16.msra.mxu0 %v4143
    %4188 = vmatprep.subr.bf16.mxu0 0
    %4189 = vmatpush1.bf16.msra.mxu0 %v4142
    %4190 = vmatprep.subr.bf16.mxu0 0
    %4191 = vmatpush2.bf16.msra.mxu0 %v4157
    %4192 = vmatprep.subr.bf16.mxu0 0
    %4193 = vmatpush2.bf16.msra.mxu0 %v4156
    %4194 = vmatprep.subr.bf16.mxu0 0
    %4195 = vmatpush2.bf16.msra.mxu0 %v4155
    %4196 = vmatprep.subr.bf16.mxu0 0
    %4197 = vmatpush2.bf16.msra.mxu0 %v4154
    %4198 = vmatprep.subr.bf16.mxu0 0
    %4199 = vmatpush2.bf16.msra.mxu0 %v4153
    %4200 = vmatprep.subr.bf16.mxu0 0
    %4201 = vmatpush2.bf16.msra.mxu0 %v4152
    %4202 = vmatprep.subr.bf16.mxu0 0
    %4203 = vmatpush2.bf16.msra.mxu0 %v4151
    %4204 = vmatprep.subr.bf16.mxu0 0
    %4205 = vmatpush2.bf16.msra.mxu0 %v4150
    %4206 = vmatprep.mubr.bf16.mxu0 %v4044
    %4207 = vmatmul.mubr.bf16.gmra.mxu0 %v4043
    %v4208 = vpop.f32.mrf.mxu0
    %v4209 = vadd.f32 %v4077, %v4208
    %v4210 = vpop.f32.mrf.mxu0
    %v4211 = vpop.f32.mrf.mxu0
    %v4212 = vpop.f32.mrf.mxu0
    %4213 = vdwg.mxu0
    %v4214 = vsel %vm1026, %v4209, -inf
    %4215 = vmax.xlane.f32.xlu0 %v4214
    %v4216 = vpop.xlane.xlu0 %4215
    %v4217 = vsub.f32 %v4209, %v4216
    %v4218 = vmul.f32 %v4217, 1.442695
    %v4219 = vpow.pop %v4218
    %v4220 = vsel %vm1026, %v4219, 0.0
    %4221 = vadd.xlane.f32.xlu0 %v4220
    %v4222 = vpop.xlane.xlu0 %4221
    %v4223 = vlog2.pop %v4222
    %v4224 = vmul.f32 %v4223, 0.6931472
    %v4225 = vsub.f32 %v4217, %v4224
    %4226 = vst [vmem:[#allocation2] sm:$0x1] %v4225
    // Predicated region
    $region62: #{combine_forward.3} parent=1 // pred_check
      _
    $region63: #{combine_forward.3} parent=1 // pred_check_branch
      %4228 = sbr.rel (0) target = $region65
    $region64: #{combine_forward.3} parent=1 // pred_region
      %s4230 = ssub.s32 16, 16
      %4231 = vsyncadd [#allocation3], %s4230
      %s4233 = sshll.u32 [#allocation2], 4
      %s4234 = int_to_ptr.vmem [resolvable:$true] %s4233
      %4236 = dma.vmem_to_hbm [thread:$0]  %s4234, 16, %s15, [#allocation3]
    $region65: #{combine_forward.3} parent=1 // pred_fallthru
      _
    // Predicated region
    $region66: #{combine_forward.3} parent=1 // pred_check
      _
    $region67: #{combine_forward.3} parent=1 // pred_check_branch
      %4238 = sbr.rel (0) target = $region69
    $region68: #{combine_forward.3} parent=1 // pred_region
      %4239 = dma.done [#allocation3], 16
    $region69: #{combine_forward.3} parent=1 // pred_fallthru
      _
    %4240 = vsyncpa [#allocation3], 1

</llo_original>
